<compile_context>
chip_gen: v6e
topology: v6e:2x2x1
jax: 0.10.0
libtpu: 0.0.40
codegen_flags: <defaults>
</compile_context>

<pallas_src>
import functools

import jax
import jax.numpy as jnp
import numpy as np
from jax import lax
from jax.experimental import pallas as pl
from jax.experimental.pallas import tpu as pltpu

BN_EPS = 1e-5
LANE = 128
_TAPS = tuple((dy, dx) for dy in range(3) for dx in range(3))


def _round_up(x, m):
    return (x + m - 1) // m * m


def _vmem_limit_bytes():
    # Size the scoped-VMEM budget from the real part (64 MiB/TC on v7x,
    # 128 MiB on v5e/v6e), leaving headroom for double-buffered inputs.
    try:
        cap = int(getattr(pltpu.get_tpu_info(), "vmem_capacity_bytes", 64 << 20))
    except Exception:  # pragma: no cover - conservative fallback
        cap = 64 << 20
    return int(min(cap * 3 // 4, 100 << 20))


VMEM_LIMIT = _vmem_limit_bytes()


# ---------------------------------------------------------------------------
# Kernels (grid = one image per step)
# ---------------------------------------------------------------------------
def _conv1_kernel(nphase, stride, ho, wo, cp):
    """conv1 (3x3, stride s, bias dropped) for one image + BN1 partial stats."""
    mt = ho * wo

    def kernel(*refs):
        ph_refs = refs[:nphase]
        w1_ref = refs[nphase]
        y1_ref, st_ref = refs[nphase + 1], refs[nphase + 2]
        acc_ref = refs[nphase + 3]

        for t, (dy, dx) in enumerate(_TAPS):
            py, px = dy % stride, dx % stride
            oy, ox = dy // stride, dx // stride
            slab = ph_refs[py * stride + px][oy:oy + ho, ox:ox + wo, :]
            contrib = jnp.dot(slab.reshape(mt, cp), w1_ref[t],
                              preferred_element_type=jnp.float32)
            if t == 0:
                acc_ref[...] = contrib
            else:
                acc_ref[...] += contrib

        acc = acc_ref[...]
        y1_ref[...] = acc
        st_ref[0:1, :] = jnp.sum(acc, axis=0, keepdims=True)
        st_ref[1:2, :] = jnp.sum(acc * acc, axis=0, keepdims=True)

    return kernel


def _conv2_kernel(ho, wo, cp):
    """BN1+ReLU (folded scale/shift) -> conv2 (3x3, bias dropped) for one image,
    plus BN2 partial stats of the pre-BN2 output."""
    mt = ho * wo

    def kernel(y1_ref, p_ref, w2_ref, y2_ref, st_ref, h1p_ref, acc_ref):
        # BN1 + ReLU; straight into the bf16 padded scratch (conv2's MXU operand
        # dtype) -> half the scratch bytes + no per-tap casts.
        h1 = jnp.maximum(y1_ref[...] * p_ref[0:1, :] + p_ref[1:2, :], 0.0)

        # Zero only the four 1-wide halo stripes; the interior is fully
        # overwritten every tile (safe under megacore grid sharding).
        h1p_ref[0:1, :, :] = jnp.zeros((1, wo + 2, cp), jnp.bfloat16)
        h1p_ref[ho + 1:ho + 2, :, :] = jnp.zeros((1, wo + 2, cp), jnp.bfloat16)
        h1p_ref[:, 0:1, :] = jnp.zeros((ho + 2, 1, cp), jnp.bfloat16)
        h1p_ref[:, wo + 1:wo + 2, :] = jnp.zeros((ho + 2, 1, cp), jnp.bfloat16)
        h1p_ref[1:ho + 1, 1:wo + 1, :] = h1.reshape(ho, wo, cp).astype(jnp.bfloat16)

        # TODO(synk): when wo % 8 != 0, express the dx shift as a sublane
        # pltpu.roll on a full-width slab to avoid relayout copies.
        for t, (dy, dx) in enumerate(_TAPS):
            slab = h1p_ref[dy:dy + ho, dx:dx + wo, :]
            contrib = jnp.dot(slab.reshape(mt, cp), w2_ref[t],
                              preferred_element_type=jnp.float32)
            if t == 0:
                acc_ref[...] = contrib
            else:
                acc_ref[...] += contrib

        acc = acc_ref[...]
        y2_ref[...] = acc
        st_ref[0:1, :] = jnp.sum(acc, axis=0, keepdims=True)
        st_ref[1:2, :] = jnp.sum(acc * acc, axis=0, keepdims=True)

    return kernel


def _epilogue_kernel(ho, wo, cp, stride):
    """BN2+ReLU + residual 1x1/s conv (recomputed from x's center phase) + add."""
    mt = ho * wo
    oy = ox = 1 // stride  # offset of the 1x1 conv's tap inside its stride-phase

    def kernel(y2_ref, xc_ref, p_ref, wr_ref, o_ref):
        h2 = jnp.maximum(y2_ref[...] * p_ref[0:1, :] + p_ref[1:2, :], 0.0)
        xc = xc_ref[oy:oy + ho, ox:ox + wo, :].reshape(mt, cp)
        res = jnp.dot(xc, wr_ref[...],
                      preferred_element_type=jnp.float32) + p_ref[2:3, :]
        o_ref[...] = h2 + res

    return kernel


# ---------------------------------------------------------------------------
# JAX-side parameter / layout prep
# ---------------------------------------------------------------------------
def _prep_w3x3(w, cp):
    # (Cout, Cin, 3, 3) -> (9, cp, cp) bf16, tap index t = dy*3 + dx
    cout, cin = w.shape[0], w.shape[1]
    wm = jnp.transpose(w, (2, 3, 1, 0)).reshape(9, cin, cout)
    return jnp.pad(wm, ((0, 0), (0, cp - cin), (0, cp - cout))).astype(jnp.bfloat16)


def _prep_w1x1(w, cp):
    cout, cin = w.shape[0], w.shape[1]
    wm = jnp.transpose(w[:, :, 0, 0], (1, 0))
    return jnp.pad(wm, ((0, cp - cin), (0, cp - cout))).astype(jnp.bfloat16)


def _pack_rows(vecs, cp):
    rows = [jnp.pad(v.astype(jnp.float32), (0, cp - v.shape[0])) for v in vecs]
    rows += [jnp.zeros((cp,), jnp.float32)] * (8 - len(rows))
    return jnp.stack(rows, axis=0)


def _bn_scale_shift(part_stats, gamma, beta, m, cp):
    # Reduce per-tile (sum, sumsq) partials -> folded per-channel scale/shift.
    s = jnp.sum(part_stats, axis=0)                    # (2, cp) f32
    mean = s[0] / m
    var = jnp.maximum(s[1] / m - mean * mean, 0.0)
    inv = lax.rsqrt(var + BN_EPS)
    g = jnp.pad(gamma.astype(jnp.float32), (0, cp - gamma.shape[0]))
    b = jnp.pad(beta.astype(jnp.float32), (0, cp - beta.shape[0]))
    scale = g * inv
    return scale, b - mean * scale


# ---------------------------------------------------------------------------
# Forward pass
# ---------------------------------------------------------------------------
@functools.partial(jax.jit, static_argnums=2)
def res_block_forward(x_nchw, params, stride):
    """Pallas implementation of ResBlock.forward. x: (N, Cin, H, W) float32."""
    w1, b1, g1, be1, w2, b2, g2, be2, wr, br = params
    del b1, b2  # pre-BN conv biases cancel exactly in the BN mean subtraction
    n, cin, h, w = x_nchw.shape
    cout = w1.shape[0]
    cp = _round_up(max(cin, cout), LANE)       # lane-dense channel padding
    ho = (h - 1) // stride + 1
    wo = (w - 1) // stride + 1
    mt = ho * wo                               # rows per grid step (one image)
    m = n * mt                                 # BN population per channel

    # NHWC, spatial zero-pad (the 3x3 convs' padding=1), channel pad, bf16 ship.
    x_nhwc = jnp.transpose(x_nchw, (0, 2, 3, 1))
    xp = jnp.pad(x_nhwc, ((0, 0), (1, 1), (1, 1), (0, cp - cin))).astype(jnp.bfloat16)

    # Stride-phase split: phase[py,px] = xp[:, py::s, px::s, :].  Total bytes ==
    # ONE (bf16) copy of the input; conv1's 9 taps become static shifted slices
    # of the per-image phase blocks inside the kernel (no im2col in HBM).
    # Extra rows/cols needed beyond ho/wo = max(dy) // stride = 2 // stride.
    ph_h = ho + (2 // stride)
    ph_w = wo + (2 // stride)
    phases = []
    for py in range(stride):
        for px in range(stride):
            p = xp[:, py::stride, px::stride, :]
            p = jnp.pad(p, ((0, 0), (0, max(0, ph_h - p.shape[1])),
                            (0, max(0, ph_w - p.shape[2])), (0, 0)))
            phases.append(p[:, :ph_h, :ph_w, :])
    nphase = stride * stride

    w1m, w2m, wrm = _prep_w3x3(w1, cp), _prep_w3x3(w2, cp), _prep_w1x1(wr, cp)

    f32 = jnp.float32
    cparams = pltpu.CompilerParams(dimension_semantics=("parallel",),
                                   vmem_limit_bytes=VMEM_LIMIT)
    img_spec = pl.BlockSpec((None, mt, cp), lambda i: (i, 0, 0))
    stat_spec = pl.BlockSpec((None, 2, cp), lambda i: (i, 0, 0))
    phase_spec = pl.BlockSpec((None, ph_h, ph_w, cp), lambda i: (i, 0, 0, 0))
    w3_spec = pl.BlockSpec((9, cp, cp), lambda i: (0, 0, 0))
    par_spec = pl.BlockSpec((8, cp), lambda i: (0, 0))
    wr_spec = pl.BlockSpec((cp, cp), lambda i: (0, 0))

    # ---- pass 1: conv1 (no bias) + per-image BN1 partial stats ----------------
    y1, st1 = pl.pallas_call(
        _conv1_kernel(nphase, stride, ho, wo, cp),
        out_shape=(jax.ShapeDtypeStruct((n, mt, cp), f32),
                   jax.ShapeDtypeStruct((n, 2, cp), f32)),
        grid_spec=pltpu.PrefetchScalarGridSpec(
            num_scalar_prefetch=0, grid=(n,),
            in_specs=[phase_spec] * nphase + [w3_spec],
            out_specs=[img_spec, stat_spec],
            scratch_shapes=[pltpu.VMEM((mt, cp), f32)]),
        compiler_params=cparams,
    )(*phases, w1m)

    scale1, shift1 = _bn_scale_shift(st1, g1, be1, m, cp)
    par2 = _pack_rows((scale1, shift1), cp)

    # ---- pass 2: BN1+ReLU -> conv2 (no bias) + per-image BN2 partial stats ----
    y2, st2 = pl.pallas_call(
        _conv2_kernel(ho, wo, cp),
        out_shape=(jax.ShapeDtypeStruct((n, mt, cp), f32),
                   jax.ShapeDtypeStruct((n, 2, cp), f32)),
        grid_spec=pltpu.PrefetchScalarGridSpec(
            num_scalar_prefetch=0, grid=(n,),
            in_specs=[img_spec, par_spec, w3_spec],
            out_specs=[img_spec, stat_spec],
            scratch_shapes=[pltpu.VMEM((ho + 2, wo + 2, cp), jnp.bfloat16),
                            pltpu.VMEM((mt, cp), f32)]),
        compiler_params=cparams,
    )(y1, par2, w2m)

    scale2, shift2 = _bn_scale_shift(st2, g2, be2, m, cp)
    par3 = _pack_rows((scale2, shift2, jnp.pad(br.astype(f32), (0, cp - cout))), cp)

    # center tap (dy,dx)=(1,1) of the phase split == the 1x1/s residual conv input
    xc = phases[(1 % stride) * stride + (1 % stride)]

    # ---- pass 3: BN2+ReLU + residual 1x1 conv + final add ---------------------
    out2d = pl.pallas_call(
        _epilogue_kernel(ho, wo, cp, stride),
        out_shape=jax.ShapeDtypeStruct((n, mt, cp), f32),
        grid_spec=pltpu.PrefetchScalarGridSpec(
            num_scalar_prefetch=0, grid=(n,),
            in_specs=[img_spec, phase_spec, par_spec, wr_spec],
            out_specs=img_spec),
        compiler_params=cparams,
    )(y2, xc, par3, wrm)

    out = out2d[:, :, :cout].reshape(n, ho, wo, cout)
    return jnp.transpose(out, (0, 3, 1, 2))     # back to NCHW


# ---------------------------------------------------------------------------
# Pure-JAX reference (lax.conv) with the same bf16 MXU-operand rounding
# ---------------------------------------------------------------------------
def _bf16(v):
    return v.astype(jnp.bfloat16).astype(jnp.float32)


def _bn_relu_ref(y, g, b):
    mean = jnp.mean(y, axis=(0, 2, 3), keepdims=True)
    var = jnp.mean((y - mean) ** 2, axis=(0, 2, 3), keepdims=True)
    y = (y - mean) * lax.rsqrt(var + BN_EPS)
    return jnp.maximum(y * g.reshape(1, -1, 1, 1) + b.reshape(1, -1, 1, 1), 0.0)


def res_block_ref(x, params, stride):
    w1, b1, g1, be1, w2, b2, g2, be2, wr, br = params
    dn = ("NCHW", "OIHW", "NCHW")
    xb = _bf16(x)
    residual = lax.conv_general_dilated(
        xb, _bf16(wr), (stride, stride), "VALID", dimension_numbers=dn
    ) + br.reshape(1, -1, 1, 1)
    y = lax.conv_general_dilated(
        xb, _bf16(w1), (stride, stride), ((1, 1), (1, 1)), dimension_numbers=dn
    ) + b1.reshape(1, -1, 1, 1)
    y = _bn_relu_ref(y, g1, be1)
    y = lax.conv_general_dilated(
        _bf16(y), _bf16(w2), (1, 1), ((1, 1), (1, 1)), dimension_numbers=dn
    ) + b2.reshape(1, -1, 1, 1)
    y = _bn_relu_ref(y, g2, be2)
    return y + residual


# ---------------------------------------------------------------------------
if __name__ == "__main__":
    N, CIN, COUT, H, W, STRIDE = 2, 4, 8, 16, 16, 2

    key = jax.random.PRNGKey(0)
    ks = jax.random.split(key, 11)
    params = (
        jax.random.normal(ks[0], (COUT, CIN, 3, 3), jnp.float32) * 0.1,   # w1
        jax.random.normal(ks[1], (COUT,), jnp.float32) * 0.1,             # b1
        1.0 + jax.random.normal(ks[2], (COUT,), jnp.float32) * 0.05,      # gamma1
        jax.random.normal(ks[3], (COUT,), jnp.float32) * 0.05,            # beta1
        jax.random.normal(ks[4], (COUT, COUT, 3, 3), jnp.float32) * 0.1,  # w2
        jax.random.normal(ks[5], (COUT,), jnp.float32) * 0.1,             # b2
        1.0 + jax.random.normal(ks[6], (COUT,), jnp.float32) * 0.05,      # gamma2
        jax.random.normal(ks[7], (COUT,), jnp.float32) * 0.05,            # beta2
        jax.random.normal(ks[8], (COUT, CIN, 1, 1), jnp.float32) * 0.1,   # w_res
        jax.random.normal(ks[9], (COUT,), jnp.float32) * 0.1,             # b_res
    )
    x = jax.random.normal(ks[10], (N, CIN, H, W), jnp.float32)

    out = jax.block_until_ready(res_block_forward(x, params, STRIDE))
    ref = jax.block_until_ready(res_block_ref(x, params, STRIDE))

    assert out.shape == ref.shape == (N, COUT, H // STRIDE, W // STRIDE)
    np.testing.assert_allclose(np.asarray(out), np.asarray(ref), rtol=5e-3, atol=5e-3)

    print("KERNEL_OK")
</pallas_src>

<mosaic_0001>
module attributes {stable_mosaic.version = 11 : i64} {
  func.func @kernel(%arg0: i32, %arg1: memref<1x9x9x128xbf16, #tpu.memory_space<vmem>>, %arg2: memref<1x9x9x128xbf16, #tpu.memory_space<vmem>>, %arg3: memref<1x9x9x128xbf16, #tpu.memory_space<vmem>>, %arg4: memref<1x9x9x128xbf16, #tpu.memory_space<vmem>>, %arg5: memref<9x128x128xbf16, #tpu.memory_space<vmem>>, %arg6: memref<1x64x128xf32, #tpu.memory_space<vmem>>, %arg7: memref<1x2x128xf32, #tpu.memory_space<vmem>>, %arg8: memref<64x128xf32, #tpu.memory_space<vmem>>) attributes {dimension_semantics = [#tpu.dimension_semantics<parallel>], iteration_bounds = array<i64: 2>, scalar_prefetch = 0 : i64, scratch_operands = 1 : i64, tpu.core_type = #tpu.core_type<tc>, window_params = [{transform_indices = @transform_0, window_bounds = array<i64: 1, 9, 9, 128>}, {transform_indices = @transform_1, window_bounds = array<i64: 1, 9, 9, 128>}, {transform_indices = @transform_2, window_bounds = array<i64: 1, 9, 9, 128>}, {transform_indices = @transform_3, window_bounds = array<i64: 1, 9, 9, 128>}, {pipeline_mode = #tpu.pipeline_mode<synchronous>, transform_indices = @transform_4, window_bounds = array<i64: 9, 128, 128>}, {transform_indices = @transform_5, window_bounds = array<i64: 1, 64, 128>}, {transform_indices = @transform_6, window_bounds = array<i64: 1, 2, 128>}]} {
    %c0 = arith.constant 0 : index
    %c0_0 = arith.constant 0 : index
    %c0_1 = arith.constant 0 : index
    %c0_2 = arith.constant 0 : index
    %0 = vector.load %arg1[%c0, %c0_0, %c0_1, %c0_2] : memref<1x9x9x128xbf16, #tpu.memory_space<vmem>>, vector<1x8x8x128xbf16>
    %1 = vector.shape_cast %0 : vector<1x8x8x128xbf16> to vector<8x8x128xbf16>
    %2 = vector.shape_cast %1 : vector<8x8x128xbf16> to vector<64x128xbf16>
    %c0_3 = arith.constant 0 : index
    %c0_4 = arith.constant 0 : index
    %c0_5 = arith.constant 0 : index
    %3 = vector.load %arg5[%c0_3, %c0_4, %c0_5] : memref<9x128x128xbf16, #tpu.memory_space<vmem>>, vector<1x128x128xbf16>
    %4 = vector.shape_cast %3 : vector<1x128x128xbf16> to vector<128x128xbf16>
    %cst = arith.constant dense<0.000000e+00> : vector<64x128xf32>
    %5 = tpu.matmul %2, %4, %cst {dimension_numbers = #tpu.dot_dimension_numbers<[1], [0], [0], [1], [0, 0, 1, 1], [], []>} : vector<64x128xbf16>, vector<128x128xbf16>, vector<64x128xf32> -> vector<64x128xf32>
    %c0_6 = arith.constant 0 : index
    %c0_7 = arith.constant 0 : index
    %6 = vector.load %arg8[%c0_6, %c0_7] : memref<64x128xf32, #tpu.memory_space<vmem>>, vector<64x128xf32>
    tpu.vector_store %arg8[%c0_6, %c0_7], %5 {strides = array<i32>} : memref<64x128xf32, #tpu.memory_space<vmem>>, vector<64x128xf32>,
    %c0_8 = arith.constant 0 : index
    %c0_9 = arith.constant 0 : index
    %c0_10 = arith.constant 0 : index
    %c0_11 = arith.constant 0 : index
    %7 = vector.load %arg2[%c0_8, %c0_9, %c0_10, %c0_11] : memref<1x9x9x128xbf16, #tpu.memory_space<vmem>>, vector<1x8x8x128xbf16>
    %8 = vector.shape_cast %7 : vector<1x8x8x128xbf16> to vector<8x8x128xbf16>
    %9 = vector.shape_cast %8 : vector<8x8x128xbf16> to vector<64x128xbf16>
    %c1 = arith.constant 1 : index
    %c0_12 = arith.constant 0 : index
    %c0_13 = arith.constant 0 : index
    %10 = vector.load %arg5[%c1, %c0_12, %c0_13] : memref<9x128x128xbf16, #tpu.memory_space<vmem>>, vector<1x128x128xbf16>
    %11 = vector.shape_cast %10 : vector<1x128x128xbf16> to vector<128x128xbf16>
    %cst_14 = arith.constant dense<0.000000e+00> : vector<64x128xf32>
    %12 = tpu.matmul %9, %11, %cst_14 {dimension_numbers = #tpu.dot_dimension_numbers<[1], [0], [0], [1], [0, 0, 1, 1], [], []>} : vector<64x128xbf16>, vector<128x128xbf16>, vector<64x128xf32> -> vector<64x128xf32>
    %c0_15 = arith.constant 0 : index
    %c0_16 = arith.constant 0 : index
    %13 = vector.load %arg8[%c0_15, %c0_16] : memref<64x128xf32, #tpu.memory_space<vmem>>, vector<64x128xf32>
    %14 = arith.addf %13, %12 : vector<64x128xf32>
    %c0_17 = arith.constant 0 : index
    %c0_18 = arith.constant 0 : index
    %15 = vector.load %arg8[%c0_17, %c0_18] : memref<64x128xf32, #tpu.memory_space<vmem>>, vector<64x128xf32>
    tpu.vector_store %arg8[%c0_17, %c0_18], %14 {strides = array<i32>} : memref<64x128xf32, #tpu.memory_space<vmem>>, vector<64x128xf32>,
    %c0_19 = arith.constant 0 : index
    %c0_20 = arith.constant 0 : index
    %c1_21 = arith.constant 1 : index
    %c0_22 = arith.constant 0 : index
    %16 = vector.load %arg1[%c0_19, %c0_20, %c1_21, %c0_22] : memref<1x9x9x128xbf16, #tpu.memory_space<vmem>>, vector<1x8x8x128xbf16>
    %17 = vector.shape_cast %16 : vector<1x8x8x128xbf16> to vector<8x8x128xbf16>
    %18 = vector.shape_cast %17 : vector<8x8x128xbf16> to vector<64x128xbf16>
    %c2 = arith.constant 2 : index
    %c0_23 = arith.constant 0 : index
    %c0_24 = arith.constant 0 : index
    %19 = vector.load %arg5[%c2, %c0_23, %c0_24] : memref<9x128x128xbf16, #tpu.memory_space<vmem>>, vector<1x128x128xbf16>
    %20 = vector.shape_cast %19 : vector<1x128x128xbf16> to vector<128x128xbf16>
    %cst_25 = arith.constant dense<0.000000e+00> : vector<64x128xf32>
    %21 = tpu.matmul %18, %20, %cst_25 {dimension_numbers = #tpu.dot_dimension_numbers<[1], [0], [0], [1], [0, 0, 1, 1], [], []>} : vector<64x128xbf16>, vector<128x128xbf16>, vector<64x128xf32> -> vector<64x128xf32>
    %c0_26 = arith.constant 0 : index
    %c0_27 = arith.constant 0 : index
    %22 = vector.load %arg8[%c0_26, %c0_27] : memref<64x128xf32, #tpu.memory_space<vmem>>, vector<64x128xf32>
    %23 = arith.addf %22, %21 : vector<64x128xf32>
    %c0_28 = arith.constant 0 : index
    %c0_29 = arith.constant 0 : index
    %24 = vector.load %arg8[%c0_28, %c0_29] : memref<64x128xf32, #tpu.memory_space<vmem>>, vector<64x128xf32>
    tpu.vector_store %arg8[%c0_28, %c0_29], %23 {strides = array<i32>} : memref<64x128xf32, #tpu.memory_space<vmem>>, vector<64x128xf32>,
    %c0_30 = arith.constant 0 : index
    %c0_31 = arith.constant 0 : index
    %c0_32 = arith.constant 0 : index
    %c0_33 = arith.constant 0 : index
    %25 = vector.load %arg3[%c0_30, %c0_31, %c0_32, %c0_33] : memref<1x9x9x128xbf16, #tpu.memory_space<vmem>>, vector<1x8x8x128xbf16>
    %26 = vector.shape_cast %25 : vector<1x8x8x128xbf16> to vector<8x8x128xbf16>
    %27 = vector.shape_cast %26 : vector<8x8x128xbf16> to vector<64x128xbf16>
    %c3 = arith.constant 3 : index
    %c0_34 = arith.constant 0 : index
    %c0_35 = arith.constant 0 : index
    %28 = vector.load %arg5[%c3, %c0_34, %c0_35] : memref<9x128x128xbf16, #tpu.memory_space<vmem>>, vector<1x128x128xbf16>
    %29 = vector.shape_cast %28 : vector<1x128x128xbf16> to vector<128x128xbf16>
    %cst_36 = arith.constant dense<0.000000e+00> : vector<64x128xf32>
    %30 = tpu.matmul %27, %29, %cst_36 {dimension_numbers = #tpu.dot_dimension_numbers<[1], [0], [0], [1], [0, 0, 1, 1], [], []>} : vector<64x128xbf16>, vector<128x128xbf16>, vector<64x128xf32> -> vector<64x128xf32>
    %c0_37 = arith.constant 0 : index
    %c0_38 = arith.constant 0 : index
    %31 = vector.load %arg8[%c0_37, %c0_38] : memref<64x128xf32, #tpu.memory_space<vmem>>, vector<64x128xf32>
    %32 = arith.addf %31, %30 : vector<64x128xf32>
    %c0_39 = arith.constant 0 : index
    %c0_40 = arith.constant 0 : index
    %33 = vector.load %arg8[%c0_39, %c0_40] : memref<64x128xf32, #tpu.memory_space<vmem>>, vector<64x128xf32>
    tpu.vector_store %arg8[%c0_39, %c0_40], %32 {strides = array<i32>} : memref<64x128xf32, #tpu.memory_space<vmem>>, vector<64x128xf32>,
    %c0_41 = arith.constant 0 : index
    %c0_42 = arith.constant 0 : index
    %c0_43 = arith.constant 0 : index
    %c0_44 = arith.constant 0 : index
    %34 = vector.load %arg4[%c0_41, %c0_42, %c0_43, %c0_44] : memref<1x9x9x128xbf16, #tpu.memory_space<vmem>>, vector<1x8x8x128xbf16>
    %35 = vector.shape_cast %34 : vector<1x8x8x128xbf16> to vector<8x8x128xbf16>
    %36 = vector.shape_cast %35 : vector<8x8x128xbf16> to vector<64x128xbf16>
    %c4 = arith.constant 4 : index
    %c0_45 = arith.constant 0 : index
    %c0_46 = arith.constant 0 : index
    %37 = vector.load %arg5[%c4, %c0_45, %c0_46] : memref<9x128x128xbf16, #tpu.memory_space<vmem>>, vector<1x128x128xbf16>
    %38 = vector.shape_cast %37 : vector<1x128x128xbf16> to vector<128x128xbf16>
    %cst_47 = arith.constant dense<0.000000e+00> : vector<64x128xf32>
    %39 = tpu.matmul %36, %38, %cst_47 {dimension_numbers = #tpu.dot_dimension_numbers<[1], [0], [0], [1], [0, 0, 1, 1], [], []>} : vector<64x128xbf16>, vector<128x128xbf16>, vector<64x128xf32> -> vector<64x128xf32>
    %c0_48 = arith.constant 0 : index
    %c0_49 = arith.constant 0 : index
    %40 = vector.load %arg8[%c0_48, %c0_49] : memref<64x128xf32, #tpu.memory_space<vmem>>, vector<64x128xf32>
    %41 = arith.addf %40, %39 : vector<64x128xf32>
    %c0_50 = arith.constant 0 : index
    %c0_51 = arith.constant 0 : index
    %42 = vector.load %arg8[%c0_50, %c0_51] : memref<64x128xf32, #tpu.memory_space<vmem>>, vector<64x128xf32>
    tpu.vector_store %arg8[%c0_50, %c0_51], %41 {strides = array<i32>} : memref<64x128xf32, #tpu.memory_space<vmem>>, vector<64x128xf32>,
    %c0_52 = arith.constant 0 : index
    %c0_53 = arith.constant 0 : index
    %c1_54 = arith.constant 1 : index
    %c0_55 = arith.constant 0 : index
    %43 = vector.load %arg3[%c0_52, %c0_53, %c1_54, %c0_55] : memref<1x9x9x128xbf16, #tpu.memory_space<vmem>>, vector<1x8x8x128xbf16>
    %44 = vector.shape_cast %43 : vector<1x8x8x128xbf16> to vector<8x8x128xbf16>
    %45 = vector.shape_cast %44 : vector<8x8x128xbf16> to vector<64x128xbf16>
    %c5 = arith.constant 5 : index
    %c0_56 = arith.constant 0 : index
    %c0_57 = arith.constant 0 : index
    %46 = vector.load %arg5[%c5, %c0_56, %c0_57] : memref<9x128x128xbf16, #tpu.memory_space<vmem>>, vector<1x128x128xbf16>
    %47 = vector.shape_cast %46 : vector<1x128x128xbf16> to vector<128x128xbf16>
    %cst_58 = arith.constant dense<0.000000e+00> : vector<64x128xf32>
    %48 = tpu.matmul %45, %47, %cst_58 {dimension_numbers = #tpu.dot_dimension_numbers<[1], [0], [0], [1], [0, 0, 1, 1], [], []>} : vector<64x128xbf16>, vector<128x128xbf16>, vector<64x128xf32> -> vector<64x128xf32>
    %c0_59 = arith.constant 0 : index
    %c0_60 = arith.constant 0 : index
    %49 = vector.load %arg8[%c0_59, %c0_60] : memref<64x128xf32, #tpu.memory_space<vmem>>, vector<64x128xf32>
    %50 = arith.addf %49, %48 : vector<64x128xf32>
    %c0_61 = arith.constant 0 : index
    %c0_62 = arith.constant 0 : index
    %51 = vector.load %arg8[%c0_61, %c0_62] : memref<64x128xf32, #tpu.memory_space<vmem>>, vector<64x128xf32>
    tpu.vector_store %arg8[%c0_61, %c0_62], %50 {strides = array<i32>} : memref<64x128xf32, #tpu.memory_space<vmem>>, vector<64x128xf32>,
    %c0_63 = arith.constant 0 : index
    %c1_64 = arith.constant 1 : index
    %c0_65 = arith.constant 0 : index
    %c0_66 = arith.constant 0 : index
    %52 = vector.load %arg1[%c0_63, %c1_64, %c0_65, %c0_66] : memref<1x9x9x128xbf16, #tpu.memory_space<vmem>>, vector<1x8x8x128xbf16>
    %53 = vector.shape_cast %52 : vector<1x8x8x128xbf16> to vector<8x8x128xbf16>
    %54 = vector.shape_cast %53 : vector<8x8x128xbf16> to vector<64x128xbf16>
    %c6 = arith.constant 6 : index
    %c0_67 = arith.constant 0 : index
    %c0_68 = arith.constant 0 : index
    %55 = vector.load %arg5[%c6, %c0_67, %c0_68] : memref<9x128x128xbf16, #tpu.memory_space<vmem>>, vector<1x128x128xbf16>
    %56 = vector.shape_cast %55 : vector<1x128x128xbf16> to vector<128x128xbf16>
    %cst_69 = arith.constant dense<0.000000e+00> : vector<64x128xf32>
    %57 = tpu.matmul %54, %56, %cst_69 {dimension_numbers = #tpu.dot_dimension_numbers<[1], [0], [0], [1], [0, 0, 1, 1], [], []>} : vector<64x128xbf16>, vector<128x128xbf16>, vector<64x128xf32> -> vector<64x128xf32>
    %c0_70 = arith.constant 0 : index
    %c0_71 = arith.constant 0 : index
    %58 = vector.load %arg8[%c0_70, %c0_71] : memref<64x128xf32, #tpu.memory_space<vmem>>, vector<64x128xf32>
    %59 = arith.addf %58, %57 : vector<64x128xf32>
    %c0_72 = arith.constant 0 : index
    %c0_73 = arith.constant 0 : index
    %60 = vector.load %arg8[%c0_72, %c0_73] : memref<64x128xf32, #tpu.memory_space<vmem>>, vector<64x128xf32>
    tpu.vector_store %arg8[%c0_72, %c0_73], %59 {strides = array<i32>} : memref<64x128xf32, #tpu.memory_space<vmem>>, vector<64x128xf32>,
    %c0_74 = arith.constant 0 : index
    %c1_75 = arith.constant 1 : index
    %c0_76 = arith.constant 0 : index
    %c0_77 = arith.constant 0 : index
    %61 = vector.load %arg2[%c0_74, %c1_75, %c0_76, %c0_77] : memref<1x9x9x128xbf16, #tpu.memory_space<vmem>>, vector<1x8x8x128xbf16>
    %62 = vector.shape_cast %61 : vector<1x8x8x128xbf16> to vector<8x8x128xbf16>
    %63 = vector.shape_cast %62 : vector<8x8x128xbf16> to vector<64x128xbf16>
    %c7 = arith.constant 7 : index
    %c0_78 = arith.constant 0 : index
    %c0_79 = arith.constant 0 : index
    %64 = vector.load %arg5[%c7, %c0_78, %c0_79] : memref<9x128x128xbf16, #tpu.memory_space<vmem>>, vector<1x128x128xbf16>
    %65 = vector.shape_cast %64 : vector<1x128x128xbf16> to vector<128x128xbf16>
    %cst_80 = arith.constant dense<0.000000e+00> : vector<64x128xf32>
    %66 = tpu.matmul %63, %65, %cst_80 {dimension_numbers = #tpu.dot_dimension_numbers<[1], [0], [0], [1], [0, 0, 1, 1], [], []>} : vector<64x128xbf16>, vector<128x128xbf16>, vector<64x128xf32> -> vector<64x128xf32>
    %c0_81 = arith.constant 0 : index
    %c0_82 = arith.constant 0 : index
    %67 = vector.load %arg8[%c0_81, %c0_82] : memref<64x128xf32, #tpu.memory_space<vmem>>, vector<64x128xf32>
    %68 = arith.addf %67, %66 : vector<64x128xf32>
    %c0_83 = arith.constant 0 : index
    %c0_84 = arith.constant 0 : index
    %69 = vector.load %arg8[%c0_83, %c0_84] : memref<64x128xf32, #tpu.memory_space<vmem>>, vector<64x128xf32>
    tpu.vector_store %arg8[%c0_83, %c0_84], %68 {strides = array<i32>} : memref<64x128xf32, #tpu.memory_space<vmem>>, vector<64x128xf32>,
    %c0_85 = arith.constant 0 : index
    %c1_86 = arith.constant 1 : index
    %c1_87 = arith.constant 1 : index
    %c0_88 = arith.constant 0 : index
    %70 = vector.load %arg1[%c0_85, %c1_86, %c1_87, %c0_88] : memref<1x9x9x128xbf16, #tpu.memory_space<vmem>>, vector<1x8x8x128xbf16>
    %71 = vector.shape_cast %70 : vector<1x8x8x128xbf16> to vector<8x8x128xbf16>
    %72 = vector.shape_cast %71 : vector<8x8x128xbf16> to vector<64x128xbf16>
    %c8 = arith.constant 8 : index
    %c0_89 = arith.constant 0 : index
    %c0_90 = arith.constant 0 : index
    %73 = vector.load %arg5[%c8, %c0_89, %c0_90] : memref<9x128x128xbf16, #tpu.memory_space<vmem>>, vector<1x128x128xbf16>
    %74 = vector.shape_cast %73 : vector<1x128x128xbf16> to vector<128x128xbf16>
    %cst_91 = arith.constant dense<0.000000e+00> : vector<64x128xf32>
    %75 = tpu.matmul %72, %74, %cst_91 {dimension_numbers = #tpu.dot_dimension_numbers<[1], [0], [0], [1], [0, 0, 1, 1], [], []>} : vector<64x128xbf16>, vector<128x128xbf16>, vector<64x128xf32> -> vector<64x128xf32>
    %c0_92 = arith.constant 0 : index
    %c0_93 = arith.constant 0 : index
    %76 = vector.load %arg8[%c0_92, %c0_93] : memref<64x128xf32, #tpu.memory_space<vmem>>, vector<64x128xf32>
    %77 = arith.addf %76, %75 : vector<64x128xf32>
    %c0_94 = arith.constant 0 : index
    %c0_95 = arith.constant 0 : index
    %78 = vector.load %arg8[%c0_94, %c0_95] : memref<64x128xf32, #tpu.memory_space<vmem>>, vector<64x128xf32>
    tpu.vector_store %arg8[%c0_94, %c0_95], %77 {strides = array<i32>} : memref<64x128xf32, #tpu.memory_space<vmem>>, vector<64x128xf32>,
    %c0_96 = arith.constant 0 : index
    %c0_97 = arith.constant 0 : index
    %79 = vector.load %arg8[%c0_96, %c0_97] : memref<64x128xf32, #tpu.memory_space<vmem>>, vector<64x128xf32>
    %c0_98 = arith.constant 0 : index
    %c0_99 = arith.constant 0 : index
    %c0_100 = arith.constant 0 : index
    %80 = vector.load %arg6[%c0_98, %c0_99, %c0_100] : memref<1x64x128xf32, #tpu.memory_space<vmem>>, vector<1x64x128xf32>
    %81 = vector.shape_cast %80 : vector<1x64x128xf32> to vector<64x128xf32>
    %82 = vector.shape_cast %79 : vector<64x128xf32> to vector<1x64x128xf32>
    tpu.vector_store %arg6[%c0_98, %c0_99, %c0_100], %82 {strides = array<i32>} : memref<1x64x128xf32, #tpu.memory_space<vmem>>, vector<1x64x128xf32>,
    %cst_101 = arith.constant dense<0.000000e+00> : vector<128xf32>
    %83 = vector.multi_reduction <add>, %79, %cst_101 [0] : vector<64x128xf32> to vector<128xf32>
    %84 = vector.shape_cast %83 : vector<128xf32> to vector<1x128xf32>
    %c0_102 = arith.constant 0 : index
    %c0_103 = arith.constant 0 : index
    %c0_104 = arith.constant 0 : index
    %85 = vector.load %arg7[%c0_102, %c0_103, %c0_104] : memref<1x2x128xf32, #tpu.memory_space<vmem>>, vector<1x1x128xf32>
    %86 = vector.shape_cast %85 : vector<1x1x128xf32> to vector<1x128xf32>
    %87 = vector.shape_cast %84 : vector<1x128xf32> to vector<1x1x128xf32>
    tpu.vector_store %arg7[%c0_102, %c0_103, %c0_104], %87 {strides = array<i32>} : memref<1x2x128xf32, #tpu.memory_space<vmem>>, vector<1x1x128xf32>,
    %88 = arith.mulf %79, %79 : vector<64x128xf32>
    %cst_105 = arith.constant dense<0.000000e+00> : vector<128xf32>
    %89 = vector.multi_reduction <add>, %88, %cst_105 [0] : vector<64x128xf32> to vector<128xf32>
    %90 = vector.shape_cast %89 : vector<128xf32> to vector<1x128xf32>
    %c0_106 = arith.constant 0 : index
    %c1_107 = arith.constant 1 : index
    %c0_108 = arith.constant 0 : index
    %91 = vector.load %arg7[%c0_106, %c1_107, %c0_108] : memref<1x2x128xf32, #tpu.memory_space<vmem>>, vector<1x1x128xf32>
    %92 = vector.shape_cast %91 : vector<1x1x128xf32> to vector<1x128xf32>
    %93 = vector.shape_cast %90 : vector<1x128xf32> to vector<1x1x128xf32>
    tpu.vector_store %arg7[%c0_106, %c1_107, %c0_108], %93 {strides = array<i32>} : memref<1x2x128xf32, #tpu.memory_space<vmem>>, vector<1x1x128xf32>,
    return
  }
  func.func @transform_0(%arg0: i32) -> (i32, i32, i32, i32) {
    %c0_i32 = arith.constant 0 : i32
    %c0_i32_0 = arith.constant 0 : i32
    %c0_i32_1 = arith.constant 0 : i32
    %c0_i32_2 = arith.constant 0 : i32
    return %arg0, %c0_i32, %c0_i32_0, %c0_i32_1 : i32, i32, i32, i32
  }
  func.func @transform_1(%arg0: i32) -> (i32, i32, i32, i32) {
    %c0_i32 = arith.constant 0 : i32
    %c0_i32_0 = arith.constant 0 : i32
    %c0_i32_1 = arith.constant 0 : i32
    %c0_i32_2 = arith.constant 0 : i32
    return %arg0, %c0_i32, %c0_i32_0, %c0_i32_1 : i32, i32, i32, i32
  }
  func.func @transform_2(%arg0: i32) -> (i32, i32, i32, i32) {
    %c0_i32 = arith.constant 0 : i32
    %c0_i32_0 = arith.constant 0 : i32
    %c0_i32_1 = arith.constant 0 : i32
    %c0_i32_2 = arith.constant 0 : i32
    return %arg0, %c0_i32, %c0_i32_0, %c0_i32_1 : i32, i32, i32, i32
  }
  func.func @transform_3(%arg0: i32) -> (i32, i32, i32, i32) {
    %c0_i32 = arith.constant 0 : i32
    %c0_i32_0 = arith.constant 0 : i32
    %c0_i32_1 = arith.constant 0 : i32
    %c0_i32_2 = arith.constant 0 : i32
    return %arg0, %c0_i32, %c0_i32_0, %c0_i32_1 : i32, i32, i32, i32
  }
  func.func @transform_4(%arg0: i32) -> (i32, i32, i32) {
    %c0_i32 = arith.constant 0 : i32
    %c0_i32_0 = arith.constant 0 : i32
    %c0_i32_1 = arith.constant 0 : i32
    %c0_i32_2 = arith.constant 0 : i32
    return %c0_i32, %c0_i32_0, %c0_i32_1 : i32, i32, i32
  }
  func.func @transform_5(%arg0: i32) -> (i32, i32, i32) {
    %c0_i32 = arith.constant 0 : i32
    %c0_i32_0 = arith.constant 0 : i32
    %c0_i32_1 = arith.constant 0 : i32
    return %arg0, %c0_i32, %c0_i32_0 : i32, i32, i32
  }
  func.func @transform_6(%arg0: i32) -> (i32, i32, i32) {
    %c0_i32 = arith.constant 0 : i32
    %c0_i32_0 = arith.constant 0 : i32
    %c0_i32_1 = arith.constant 0 : i32
    return %arg0, %c0_i32, %c0_i32_0 : i32, i32, i32
  }
}

module attributes {stable_mosaic.version = 11 : i64} {
  func.func @kernel(%arg0: i32, %arg1: memref<1x64x128xf32, #tpu.memory_space<vmem>>, %arg2: memref<8x128xf32, #tpu.memory_space<vmem>>, %arg3: memref<9x128x128xbf16, #tpu.memory_space<vmem>>, %arg4: memref<1x64x128xf32, #tpu.memory_space<vmem>>, %arg5: memref<1x2x128xf32, #tpu.memory_space<vmem>>, %arg6: memref<10x10x128xbf16, #tpu.memory_space<vmem>>, %arg7: memref<64x128xf32, #tpu.memory_space<vmem>>) attributes {dimension_semantics = [#tpu.dimension_semantics<parallel>], iteration_bounds = array<i64: 2>, scalar_prefetch = 0 : i64, scratch_operands = 2 : i64, tpu.core_type = #tpu.core_type<tc>, window_params = [{transform_indices = @transform_0, window_bounds = array<i64: 1, 64, 128>}, {pipeline_mode = #tpu.pipeline_mode<synchronous>, transform_indices = @transform_1, window_bounds = array<i64: 8, 128>}, {pipeline_mode = #tpu.pipeline_mode<synchronous>, transform_indices = @transform_2, window_bounds = array<i64: 9, 128, 128>}, {transform_indices = @transform_3, window_bounds = array<i64: 1, 64, 128>}, {transform_indices = @transform_4, window_bounds = array<i64: 1, 2, 128>}]} {
    %c0 = arith.constant 0 : index
    %c0_0 = arith.constant 0 : index
    %c0_1 = arith.constant 0 : index
    %0 = vector.load %arg1[%c0, %c0_0, %c0_1] : memref<1x64x128xf32, #tpu.memory_space<vmem>>, vector<1x64x128xf32>
    %1 = vector.shape_cast %0 : vector<1x64x128xf32> to vector<64x128xf32>
    %c0_2 = arith.constant 0 : index
    %c0_3 = arith.constant 0 : index
    %2 = vector.load %arg2[%c0_2, %c0_3] : memref<8x128xf32, #tpu.memory_space<vmem>>, vector<1x128xf32>
    %3 = vector.broadcast %2 : vector<1x128xf32> to vector<64x128xf32>
    %4 = arith.mulf %1, %3 : vector<64x128xf32>
    %c1 = arith.constant 1 : index
    %c0_4 = arith.constant 0 : index
    %5 = vector.load %arg2[%c1, %c0_4] : memref<8x128xf32, #tpu.memory_space<vmem>>, vector<1x128xf32>
    %6 = vector.broadcast %5 : vector<1x128xf32> to vector<64x128xf32>
    %7 = arith.addf %4, %6 : vector<64x128xf32>
    %cst = arith.constant 0.000000e+00 : f32
    %8 = vector.broadcast %cst : f32 to vector<64x128xf32>
    %9 = arith.maximumf %7, %8 : vector<64x128xf32>
    %cst_5 = arith.constant 0.000000e+00 : bf16
    %10 = vector.broadcast %cst_5 : bf16 to vector<1x10x128xbf16>
    %c0_6 = arith.constant 0 : index
    %c0_7 = arith.constant 0 : index
    %c0_8 = arith.constant 0 : index
    %11 = vector.load %arg6[%c0_6, %c0_7, %c0_8] : memref<10x10x128xbf16, #tpu.memory_space<vmem>>, vector<1x10x128xbf16>
    tpu.vector_store %arg6[%c0_6, %c0_7, %c0_8], %10 {strides = array<i32>} : memref<10x10x128xbf16, #tpu.memory_space<vmem>>, vector<1x10x128xbf16>,
    %cst_9 = arith.constant 0.000000e+00 : bf16
    %12 = vector.broadcast %cst_9 : bf16 to vector<1x10x128xbf16>
    %c9 = arith.constant 9 : index
    %c0_10 = arith.constant 0 : index
    %c0_11 = arith.constant 0 : index
    %13 = vector.load %arg6[%c9, %c0_10, %c0_11] : memref<10x10x128xbf16, #tpu.memory_space<vmem>>, vector<1x10x128xbf16>
    tpu.vector_store %arg6[%c9, %c0_10, %c0_11], %12 {strides = array<i32>} : memref<10x10x128xbf16, #tpu.memory_space<vmem>>, vector<1x10x128xbf16>,
    %cst_12 = arith.constant 0.000000e+00 : bf16
    %14 = vector.broadcast %cst_12 : bf16 to vector<10x1x128xbf16>
    %c0_13 = arith.constant 0 : index
    %c0_14 = arith.constant 0 : index
    %c0_15 = arith.constant 0 : index
    %15 = vector.load %arg6[%c0_13, %c0_14, %c0_15] : memref<10x10x128xbf16, #tpu.memory_space<vmem>>, vector<10x1x128xbf16>
    tpu.vector_store %arg6[%c0_13, %c0_14, %c0_15], %14 {strides = array<i32>} : memref<10x10x128xbf16, #tpu.memory_space<vmem>>, vector<10x1x128xbf16>,
    %cst_16 = arith.constant 0.000000e+00 : bf16
    %16 = vector.broadcast %cst_16 : bf16 to vector<10x1x128xbf16>
    %c0_17 = arith.constant 0 : index
    %c9_18 = arith.constant 9 : index
    %c0_19 = arith.constant 0 : index
    %17 = vector.load %arg6[%c0_17, %c9_18, %c0_19] : memref<10x10x128xbf16, #tpu.memory_space<vmem>>, vector<10x1x128xbf16>
    tpu.vector_store %arg6[%c0_17, %c9_18, %c0_19], %16 {strides = array<i32>} : memref<10x10x128xbf16, #tpu.memory_space<vmem>>, vector<10x1x128xbf16>,
    %18 = vector.shape_cast %9 : vector<64x128xf32> to vector<8x8x128xf32>
    %19 = arith.truncf %18 : vector<8x8x128xf32> to vector<8x8x128xbf16>
    %c1_20 = arith.constant 1 : index
    %c1_21 = arith.constant 1 : index
    %c0_22 = arith.constant 0 : index
    %20 = vector.load %arg6[%c1_20, %c1_21, %c0_22] : memref<10x10x128xbf16, #tpu.memory_space<vmem>>, vector<8x8x128xbf16>
    tpu.vector_store %arg6[%c1_20, %c1_21, %c0_22], %19 {strides = array<i32>} : memref<10x10x128xbf16, #tpu.memory_space<vmem>>, vector<8x8x128xbf16>,
    %c0_23 = arith.constant 0 : index
    %c0_24 = arith.constant 0 : index
    %c0_25 = arith.constant 0 : index
    %21 = vector.load %arg6[%c0_23, %c0_24, %c0_25] : memref<10x10x128xbf16, #tpu.memory_space<vmem>>, vector<8x8x128xbf16>
    %22 = vector.shape_cast %21 : vector<8x8x128xbf16> to vector<64x128xbf16>
    %c0_26 = arith.constant 0 : index
    %c0_27 = arith.constant 0 : index
    %c0_28 = arith.constant 0 : index
    %23 = vector.load %arg3[%c0_26, %c0_27, %c0_28] : memref<9x128x128xbf16, #tpu.memory_space<vmem>>, vector<1x128x128xbf16>
    %24 = vector.shape_cast %23 : vector<1x128x128xbf16> to vector<128x128xbf16>
    %cst_29 = arith.constant dense<0.000000e+00> : vector<64x128xf32>
    %25 = tpu.matmul %22, %24, %cst_29 {dimension_numbers = #tpu.dot_dimension_numbers<[1], [0], [0], [1], [0, 0, 1, 1], [], []>} : vector<64x128xbf16>, vector<128x128xbf16>, vector<64x128xf32> -> vector<64x128xf32>
    %c0_30 = arith.constant 0 : index
    %c0_31 = arith.constant 0 : index
    %26 = vector.load %arg7[%c0_30, %c0_31] : memref<64x128xf32, #tpu.memory_space<vmem>>, vector<64x128xf32>
    tpu.vector_store %arg7[%c0_30, %c0_31], %25 {strides = array<i32>} : memref<64x128xf32, #tpu.memory_space<vmem>>, vector<64x128xf32>,
    %c0_32 = arith.constant 0 : index
    %c1_33 = arith.constant 1 : index
    %c0_34 = arith.constant 0 : index
    %27 = vector.load %arg6[%c0_32, %c1_33, %c0_34] : memref<10x10x128xbf16, #tpu.memory_space<vmem>>, vector<8x8x128xbf16>
    %28 = vector.shape_cast %27 : vector<8x8x128xbf16> to vector<64x128xbf16>
    %c1_35 = arith.constant 1 : index
    %c0_36 = arith.constant 0 : index
    %c0_37 = arith.constant 0 : index
    %29 = vector.load %arg3[%c1_35, %c0_36, %c0_37] : memref<9x128x128xbf16, #tpu.memory_space<vmem>>, vector<1x128x128xbf16>
    %30 = vector.shape_cast %29 : vector<1x128x128xbf16> to vector<128x128xbf16>
    %cst_38 = arith.constant dense<0.000000e+00> : vector<64x128xf32>
    %31 = tpu.matmul %28, %30, %cst_38 {dimension_numbers = #tpu.dot_dimension_numbers<[1], [0], [0], [1], [0, 0, 1, 1], [], []>} : vector<64x128xbf16>, vector<128x128xbf16>, vector<64x128xf32> -> vector<64x128xf32>
    %c0_39 = arith.constant 0 : index
    %c0_40 = arith.constant 0 : index
    %32 = vector.load %arg7[%c0_39, %c0_40] : memref<64x128xf32, #tpu.memory_space<vmem>>, vector<64x128xf32>
    %33 = arith.addf %32, %31 : vector<64x128xf32>
    %c0_41 = arith.constant 0 : index
    %c0_42 = arith.constant 0 : index
    %34 = vector.load %arg7[%c0_41, %c0_42] : memref<64x128xf32, #tpu.memory_space<vmem>>, vector<64x128xf32>
    tpu.vector_store %arg7[%c0_41, %c0_42], %33 {strides = array<i32>} : memref<64x128xf32, #tpu.memory_space<vmem>>, vector<64x128xf32>,
    %c0_43 = arith.constant 0 : index
    %c2 = arith.constant 2 : index
    %c0_44 = arith.constant 0 : index
    %35 = vector.load %arg6[%c0_43, %c2, %c0_44] : memref<10x10x128xbf16, #tpu.memory_space<vmem>>, vector<8x8x128xbf16>
    %36 = vector.shape_cast %35 : vector<8x8x128xbf16> to vector<64x128xbf16>
    %c2_45 = arith.constant 2 : index
    %c0_46 = arith.constant 0 : index
    %c0_47 = arith.constant 0 : index
    %37 = vector.load %arg3[%c2_45, %c0_46, %c0_47] : memref<9x128x128xbf16, #tpu.memory_space<vmem>>, vector<1x128x128xbf16>
    %38 = vector.shape_cast %37 : vector<1x128x128xbf16> to vector<128x128xbf16>
    %cst_48 = arith.constant dense<0.000000e+00> : vector<64x128xf32>
    %39 = tpu.matmul %36, %38, %cst_48 {dimension_numbers = #tpu.dot_dimension_numbers<[1], [0], [0], [1], [0, 0, 1, 1], [], []>} : vector<64x128xbf16>, vector<128x128xbf16>, vector<64x128xf32> -> vector<64x128xf32>
    %c0_49 = arith.constant 0 : index
    %c0_50 = arith.constant 0 : index
    %40 = vector.load %arg7[%c0_49, %c0_50] : memref<64x128xf32, #tpu.memory_space<vmem>>, vector<64x128xf32>
    %41 = arith.addf %40, %39 : vector<64x128xf32>
    %c0_51 = arith.constant 0 : index
    %c0_52 = arith.constant 0 : index
    %42 = vector.load %arg7[%c0_51, %c0_52] : memref<64x128xf32, #tpu.memory_space<vmem>>, vector<64x128xf32>
    tpu.vector_store %arg7[%c0_51, %c0_52], %41 {strides = array<i32>} : memref<64x128xf32, #tpu.memory_space<vmem>>, vector<64x128xf32>,
    %c1_53 = arith.constant 1 : index
    %c0_54 = arith.constant 0 : index
    %c0_55 = arith.constant 0 : index
    %43 = vector.load %arg6[%c1_53, %c0_54, %c0_55] : memref<10x10x128xbf16, #tpu.memory_space<vmem>>, vector<8x8x128xbf16>
    %44 = vector.shape_cast %43 : vector<8x8x128xbf16> to vector<64x128xbf16>
    %c3 = arith.constant 3 : index
    %c0_56 = arith.constant 0 : index
    %c0_57 = arith.constant 0 : index
    %45 = vector.load %arg3[%c3, %c0_56, %c0_57] : memref<9x128x128xbf16, #tpu.memory_space<vmem>>, vector<1x128x128xbf16>
    %46 = vector.shape_cast %45 : vector<1x128x128xbf16> to vector<128x128xbf16>
    %cst_58 = arith.constant dense<0.000000e+00> : vector<64x128xf32>
    %47 = tpu.matmul %44, %46, %cst_58 {dimension_numbers = #tpu.dot_dimension_numbers<[1], [0], [0], [1], [0, 0, 1, 1], [], []>} : vector<64x128xbf16>, vector<128x128xbf16>, vector<64x128xf32> -> vector<64x128xf32>
    %c0_59 = arith.constant 0 : index
    %c0_60 = arith.constant 0 : index
    %48 = vector.load %arg7[%c0_59, %c0_60] : memref<64x128xf32, #tpu.memory_space<vmem>>, vector<64x128xf32>
    %49 = arith.addf %48, %47 : vector<64x128xf32>
    %c0_61 = arith.constant 0 : index
    %c0_62 = arith.constant 0 : index
    %50 = vector.load %arg7[%c0_61, %c0_62] : memref<64x128xf32, #tpu.memory_space<vmem>>, vector<64x128xf32>
    tpu.vector_store %arg7[%c0_61, %c0_62], %49 {strides = array<i32>} : memref<64x128xf32, #tpu.memory_space<vmem>>, vector<64x128xf32>,
    %c1_63 = arith.constant 1 : index
    %c1_64 = arith.constant 1 : index
    %c0_65 = arith.constant 0 : index
    %51 = vector.load %arg6[%c1_63, %c1_64, %c0_65] : memref<10x10x128xbf16, #tpu.memory_space<vmem>>, vector<8x8x128xbf16>
    %52 = vector.shape_cast %51 : vector<8x8x128xbf16> to vector<64x128xbf16>
    %c4 = arith.constant 4 : index
    %c0_66 = arith.constant 0 : index
    %c0_67 = arith.constant 0 : index
    %53 = vector.load %arg3[%c4, %c0_66, %c0_67] : memref<9x128x128xbf16, #tpu.memory_space<vmem>>, vector<1x128x128xbf16>
    %54 = vector.shape_cast %53 : vector<1x128x128xbf16> to vector<128x128xbf16>
    %cst_68 = arith.constant dense<0.000000e+00> : vector<64x128xf32>
    %55 = tpu.matmul %52, %54, %cst_68 {dimension_numbers = #tpu.dot_dimension_numbers<[1], [0], [0], [1], [0, 0, 1, 1], [], []>} : vector<64x128xbf16>, vector<128x128xbf16>, vector<64x128xf32> -> vector<64x128xf32>
    %c0_69 = arith.constant 0 : index
    %c0_70 = arith.constant 0 : index
    %56 = vector.load %arg7[%c0_69, %c0_70] : memref<64x128xf32, #tpu.memory_space<vmem>>, vector<64x128xf32>
    %57 = arith.addf %56, %55 : vector<64x128xf32>
    %c0_71 = arith.constant 0 : index
    %c0_72 = arith.constant 0 : index
    %58 = vector.load %arg7[%c0_71, %c0_72] : memref<64x128xf32, #tpu.memory_space<vmem>>, vector<64x128xf32>
    tpu.vector_store %arg7[%c0_71, %c0_72], %57 {strides = array<i32>} : memref<64x128xf32, #tpu.memory_space<vmem>>, vector<64x128xf32>,
    %c1_73 = arith.constant 1 : index
    %c2_74 = arith.constant 2 : index
    %c0_75 = arith.constant 0 : index
    %59 = vector.load %arg6[%c1_73, %c2_74, %c0_75] : memref<10x10x128xbf16, #tpu.memory_space<vmem>>, vector<8x8x128xbf16>
    %60 = vector.shape_cast %59 : vector<8x8x128xbf16> to vector<64x128xbf16>
    %c5 = arith.constant 5 : index
    %c0_76 = arith.constant 0 : index
    %c0_77 = arith.constant 0 : index
    %61 = vector.load %arg3[%c5, %c0_76, %c0_77] : memref<9x128x128xbf16, #tpu.memory_space<vmem>>, vector<1x128x128xbf16>
    %62 = vector.shape_cast %61 : vector<1x128x128xbf16> to vector<128x128xbf16>
    %cst_78 = arith.constant dense<0.000000e+00> : vector<64x128xf32>
    %63 = tpu.matmul %60, %62, %cst_78 {dimension_numbers = #tpu.dot_dimension_numbers<[1], [0], [0], [1], [0, 0, 1, 1], [], []>} : vector<64x128xbf16>, vector<128x128xbf16>, vector<64x128xf32> -> vector<64x128xf32>
    %c0_79 = arith.constant 0 : index
    %c0_80 = arith.constant 0 : index
    %64 = vector.load %arg7[%c0_79, %c0_80] : memref<64x128xf32, #tpu.memory_space<vmem>>, vector<64x128xf32>
    %65 = arith.addf %64, %63 : vector<64x128xf32>
    %c0_81 = arith.constant 0 : index
    %c0_82 = arith.constant 0 : index
    %66 = vector.load %arg7[%c0_81, %c0_82] : memref<64x128xf32, #tpu.memory_space<vmem>>, vector<64x128xf32>
    tpu.vector_store %arg7[%c0_81, %c0_82], %65 {strides = array<i32>} : memref<64x128xf32, #tpu.memory_space<vmem>>, vector<64x128xf32>,
    %c2_83 = arith.constant 2 : index
    %c0_84 = arith.constant 0 : index
    %c0_85 = arith.constant 0 : index
    %67 = vector.load %arg6[%c2_83, %c0_84, %c0_85] : memref<10x10x128xbf16, #tpu.memory_space<vmem>>, vector<8x8x128xbf16>
    %68 = vector.shape_cast %67 : vector<8x8x128xbf16> to vector<64x128xbf16>
    %c6 = arith.constant 6 : index
    %c0_86 = arith.constant 0 : index
    %c0_87 = arith.constant 0 : index
    %69 = vector.load %arg3[%c6, %c0_86, %c0_87] : memref<9x128x128xbf16, #tpu.memory_space<vmem>>, vector<1x128x128xbf16>
    %70 = vector.shape_cast %69 : vector<1x128x128xbf16> to vector<128x128xbf16>
    %cst_88 = arith.constant dense<0.000000e+00> : vector<64x128xf32>
    %71 = tpu.matmul %68, %70, %cst_88 {dimension_numbers = #tpu.dot_dimension_numbers<[1], [0], [0], [1], [0, 0, 1, 1], [], []>} : vector<64x128xbf16>, vector<128x128xbf16>, vector<64x128xf32> -> vector<64x128xf32>
    %c0_89 = arith.constant 0 : index
    %c0_90 = arith.constant 0 : index
    %72 = vector.load %arg7[%c0_89, %c0_90] : memref<64x128xf32, #tpu.memory_space<vmem>>, vector<64x128xf32>
    %73 = arith.addf %72, %71 : vector<64x128xf32>
    %c0_91 = arith.constant 0 : index
    %c0_92 = arith.constant 0 : index
    %74 = vector.load %arg7[%c0_91, %c0_92] : memref<64x128xf32, #tpu.memory_space<vmem>>, vector<64x128xf32>
    tpu.vector_store %arg7[%c0_91, %c0_92], %73 {strides = array<i32>} : memref<64x128xf32, #tpu.memory_space<vmem>>, vector<64x128xf32>,
    %c2_93 = arith.constant 2 : index
    %c1_94 = arith.constant 1 : index
    %c0_95 = arith.constant 0 : index
    %75 = vector.load %arg6[%c2_93, %c1_94, %c0_95] : memref<10x10x128xbf16, #tpu.memory_space<vmem>>, vector<8x8x128xbf16>
    %76 = vector.shape_cast %75 : vector<8x8x128xbf16> to vector<64x128xbf16>
    %c7 = arith.constant 7 : index
    %c0_96 = arith.constant 0 : index
    %c0_97 = arith.constant 0 : index
    %77 = vector.load %arg3[%c7, %c0_96, %c0_97] : memref<9x128x128xbf16, #tpu.memory_space<vmem>>, vector<1x128x128xbf16>
    %78 = vector.shape_cast %77 : vector<1x128x128xbf16> to vector<128x128xbf16>
    %cst_98 = arith.constant dense<0.000000e+00> : vector<64x128xf32>
    %79 = tpu.matmul %76, %78, %cst_98 {dimension_numbers = #tpu.dot_dimension_numbers<[1], [0], [0], [1], [0, 0, 1, 1], [], []>} : vector<64x128xbf16>, vector<128x128xbf16>, vector<64x128xf32> -> vector<64x128xf32>
    %c0_99 = arith.constant 0 : index
    %c0_100 = arith.constant 0 : index
    %80 = vector.load %arg7[%c0_99, %c0_100] : memref<64x128xf32, #tpu.memory_space<vmem>>, vector<64x128xf32>
    %81 = arith.addf %80, %79 : vector<64x128xf32>
    %c0_101 = arith.constant 0 : index
    %c0_102 = arith.constant 0 : index
    %82 = vector.load %arg7[%c0_101, %c0_102] : memref<64x128xf32, #tpu.memory_space<vmem>>, vector<64x128xf32>
    tpu.vector_store %arg7[%c0_101, %c0_102], %81 {strides = array<i32>} : memref<64x128xf32, #tpu.memory_space<vmem>>, vector<64x128xf32>,
    %c2_103 = arith.constant 2 : index
    %c2_104 = arith.constant 2 : index
    %c0_105 = arith.constant 0 : index
    %83 = vector.load %arg6[%c2_103, %c2_104, %c0_105] : memref<10x10x128xbf16, #tpu.memory_space<vmem>>, vector<8x8x128xbf16>
    %84 = vector.shape_cast %83 : vector<8x8x128xbf16> to vector<64x128xbf16>
    %c8 = arith.constant 8 : index
    %c0_106 = arith.constant 0 : index
    %c0_107 = arith.constant 0 : index
    %85 = vector.load %arg3[%c8, %c0_106, %c0_107] : memref<9x128x128xbf16, #tpu.memory_space<vmem>>, vector<1x128x128xbf16>
    %86 = vector.shape_cast %85 : vector<1x128x128xbf16> to vector<128x128xbf16>
    %cst_108 = arith.constant dense<0.000000e+00> : vector<64x128xf32>
    %87 = tpu.matmul %84, %86, %cst_108 {dimension_numbers = #tpu.dot_dimension_numbers<[1], [0], [0], [1], [0, 0, 1, 1], [], []>} : vector<64x128xbf16>, vector<128x128xbf16>, vector<64x128xf32> -> vector<64x128xf32>
    %c0_109 = arith.constant 0 : index
    %c0_110 = arith.constant 0 : index
    %88 = vector.load %arg7[%c0_109, %c0_110] : memref<64x128xf32, #tpu.memory_space<vmem>>, vector<64x128xf32>
    %89 = arith.addf %88, %87 : vector<64x128xf32>
    %c0_111 = arith.constant 0 : index
    %c0_112 = arith.constant 0 : index
    %90 = vector.load %arg7[%c0_111, %c0_112] : memref<64x128xf32, #tpu.memory_space<vmem>>, vector<64x128xf32>
    tpu.vector_store %arg7[%c0_111, %c0_112], %89 {strides = array<i32>} : memref<64x128xf32, #tpu.memory_space<vmem>>, vector<64x128xf32>,
    %c0_113 = arith.constant 0 : index
    %c0_114 = arith.constant 0 : index
    %91 = vector.load %arg7[%c0_113, %c0_114] : memref<64x128xf32, #tpu.memory_space<vmem>>, vector<64x128xf32>
    %c0_115 = arith.constant 0 : index
    %c0_116 = arith.constant 0 : index
    %c0_117 = arith.constant 0 : index
    %92 = vector.load %arg4[%c0_115, %c0_116, %c0_117] : memref<1x64x128xf32, #tpu.memory_space<vmem>>, vector<1x64x128xf32>
    %93 = vector.shape_cast %92 : vector<1x64x128xf32> to vector<64x128xf32>
    %94 = vector.shape_cast %91 : vector<64x128xf32> to vector<1x64x128xf32>
    tpu.vector_store %arg4[%c0_115, %c0_116, %c0_117], %94 {strides = array<i32>} : memref<1x64x128xf32, #tpu.memory_space<vmem>>, vector<1x64x128xf32>,
    %cst_118 = arith.constant dense<0.000000e+00> : vector<128xf32>
    %95 = vector.multi_reduction <add>, %91, %cst_118 [0] : vector<64x128xf32> to vector<128xf32>
    %96 = vector.shape_cast %95 : vector<128xf32> to vector<1x128xf32>
    %c0_119 = arith.constant 0 : index
    %c0_120 = arith.constant 0 : index
    %c0_121 = arith.constant 0 : index
    %97 = vector.load %arg5[%c0_119, %c0_120, %c0_121] : memref<1x2x128xf32, #tpu.memory_space<vmem>>, vector<1x1x128xf32>
    %98 = vector.shape_cast %97 : vector<1x1x128xf32> to vector<1x128xf32>
    %99 = vector.shape_cast %96 : vector<1x128xf32> to vector<1x1x128xf32>
    tpu.vector_store %arg5[%c0_119, %c0_120, %c0_121], %99 {strides = array<i32>} : memref<1x2x128xf32, #tpu.memory_space<vmem>>, vector<1x1x128xf32>,
    %100 = arith.mulf %91, %91 : vector<64x128xf32>
    %cst_122 = arith.constant dense<0.000000e+00> : vector<128xf32>
    %101 = vector.multi_reduction <add>, %100, %cst_122 [0] : vector<64x128xf32> to vector<128xf32>
    %102 = vector.shape_cast %101 : vector<128xf32> to vector<1x128xf32>
    %c0_123 = arith.constant 0 : index
    %c1_124 = arith.constant 1 : index
    %c0_125 = arith.constant 0 : index
    %103 = vector.load %arg5[%c0_123, %c1_124, %c0_125] : memref<1x2x128xf32, #tpu.memory_space<vmem>>, vector<1x1x128xf32>
    %104 = vector.shape_cast %103 : vector<1x1x128xf32> to vector<1x128xf32>
    %105 = vector.shape_cast %102 : vector<1x128xf32> to vector<1x1x128xf32>
    tpu.vector_store %arg5[%c0_123, %c1_124, %c0_125], %105 {strides = array<i32>} : memref<1x2x128xf32, #tpu.memory_space<vmem>>, vector<1x1x128xf32>,
    return
  }
  func.func @transform_0(%arg0: i32) -> (i32, i32, i32) {
    %c0_i32 = arith.constant 0 : i32
    %c0_i32_0 = arith.constant 0 : i32
    %c0_i32_1 = arith.constant 0 : i32
    return %arg0, %c0_i32, %c0_i32_0 : i32, i32, i32
  }
  func.func @transform_1(%arg0: i32) -> (i32, i32) {
    %c0_i32 = arith.constant 0 : i32
    %c0_i32_0 = arith.constant 0 : i32
    %c0_i32_1 = arith.constant 0 : i32
    return %c0_i32, %c0_i32_0 : i32, i32
  }
  func.func @transform_2(%arg0: i32) -> (i32, i32, i32) {
    %c0_i32 = arith.constant 0 : i32
    %c0_i32_0 = arith.constant 0 : i32
    %c0_i32_1 = arith.constant 0 : i32
    %c0_i32_2 = arith.constant 0 : i32
    return %c0_i32, %c0_i32_0, %c0_i32_1 : i32, i32, i32
  }
  func.func @transform_3(%arg0: i32) -> (i32, i32, i32) {
    %c0_i32 = arith.constant 0 : i32
    %c0_i32_0 = arith.constant 0 : i32
    %c0_i32_1 = arith.constant 0 : i32
    return %arg0, %c0_i32, %c0_i32_0 : i32, i32, i32
  }
  func.func @transform_4(%arg0: i32) -> (i32, i32, i32) {
    %c0_i32 = arith.constant 0 : i32
    %c0_i32_0 = arith.constant 0 : i32
    %c0_i32_1 = arith.constant 0 : i32
    return %arg0, %c0_i32, %c0_i32_0 : i32, i32, i32
  }
}

module attributes {stable_mosaic.version = 11 : i64} {
  func.func @kernel(%arg0: i32, %arg1: memref<1x64x128xf32, #tpu.memory_space<vmem>>, %arg2: memref<1x9x9x128xbf16, #tpu.memory_space<vmem>>, %arg3: memref<8x128xf32, #tpu.memory_space<vmem>>, %arg4: memref<128x128xbf16, #tpu.memory_space<vmem>>, %arg5: memref<1x64x128xf32, #tpu.memory_space<vmem>>) attributes {dimension_semantics = [#tpu.dimension_semantics<parallel>], iteration_bounds = array<i64: 2>, scalar_prefetch = 0 : i64, scratch_operands = 0 : i64, tpu.core_type = #tpu.core_type<tc>, window_params = [{transform_indices = @transform_0, window_bounds = array<i64: 1, 64, 128>}, {transform_indices = @transform_1, window_bounds = array<i64: 1, 9, 9, 128>}, {pipeline_mode = #tpu.pipeline_mode<synchronous>, transform_indices = @transform_2, window_bounds = array<i64: 8, 128>}, {pipeline_mode = #tpu.pipeline_mode<synchronous>, transform_indices = @transform_3, window_bounds = array<i64: 128, 128>}, {transform_indices = @transform_4, window_bounds = array<i64: 1, 64, 128>}]} {
    %c0 = arith.constant 0 : index
    %c0_0 = arith.constant 0 : index
    %c0_1 = arith.constant 0 : index
    %0 = vector.load %arg1[%c0, %c0_0, %c0_1] : memref<1x64x128xf32, #tpu.memory_space<vmem>>, vector<1x64x128xf32>
    %1 = vector.shape_cast %0 : vector<1x64x128xf32> to vector<64x128xf32>
    %c0_2 = arith.constant 0 : index
    %c0_3 = arith.constant 0 : index
    %2 = vector.load %arg3[%c0_2, %c0_3] : memref<8x128xf32, #tpu.memory_space<vmem>>, vector<1x128xf32>
    %3 = vector.broadcast %2 : vector<1x128xf32> to vector<64x128xf32>
    %4 = arith.mulf %1, %3 : vector<64x128xf32>
    %c1 = arith.constant 1 : index
    %c0_4 = arith.constant 0 : index
    %5 = vector.load %arg3[%c1, %c0_4] : memref<8x128xf32, #tpu.memory_space<vmem>>, vector<1x128xf32>
    %6 = vector.broadcast %5 : vector<1x128xf32> to vector<64x128xf32>
    %7 = arith.addf %4, %6 : vector<64x128xf32>
    %cst = arith.constant 0.000000e+00 : f32
    %8 = vector.broadcast %cst : f32 to vector<64x128xf32>
    %9 = arith.maximumf %7, %8 : vector<64x128xf32>
    %c0_5 = arith.constant 0 : index
    %c0_6 = arith.constant 0 : index
    %c0_7 = arith.constant 0 : index
    %c0_8 = arith.constant 0 : index
    %10 = vector.load %arg2[%c0_5, %c0_6, %c0_7, %c0_8] : memref<1x9x9x128xbf16, #tpu.memory_space<vmem>>, vector<1x8x8x128xbf16>
    %11 = vector.shape_cast %10 : vector<1x8x8x128xbf16> to vector<8x8x128xbf16>
    %12 = vector.shape_cast %11 : vector<8x8x128xbf16> to vector<64x128xbf16>
    %c0_9 = arith.constant 0 : index
    %c0_10 = arith.constant 0 : index
    %13 = vector.load %arg4[%c0_9, %c0_10] : memref<128x128xbf16, #tpu.memory_space<vmem>>, vector<128x128xbf16>
    %cst_11 = arith.constant dense<0.000000e+00> : vector<64x128xf32>
    %14 = tpu.matmul %12, %13, %cst_11 {dimension_numbers = #tpu.dot_dimension_numbers<[1], [0], [0], [1], [0, 0, 1, 1], [], []>} : vector<64x128xbf16>, vector<128x128xbf16>, vector<64x128xf32> -> vector<64x128xf32>
    %c2 = arith.constant 2 : index
    %c0_12 = arith.constant 0 : index
    %15 = vector.load %arg3[%c2, %c0_12] : memref<8x128xf32, #tpu.memory_space<vmem>>, vector<1x128xf32>
    %16 = vector.broadcast %15 : vector<1x128xf32> to vector<64x128xf32>
    %17 = arith.addf %14, %16 : vector<64x128xf32>
    %18 = arith.addf %9, %17 : vector<64x128xf32>
    %c0_13 = arith.constant 0 : index
    %c0_14 = arith.constant 0 : index
    %c0_15 = arith.constant 0 : index
    %19 = vector.load %arg5[%c0_13, %c0_14, %c0_15] : memref<1x64x128xf32, #tpu.memory_space<vmem>>, vector<1x64x128xf32>
    %20 = vector.shape_cast %19 : vector<1x64x128xf32> to vector<64x128xf32>
    %21 = vector.shape_cast %18 : vector<64x128xf32> to vector<1x64x128xf32>
    tpu.vector_store %arg5[%c0_13, %c0_14, %c0_15], %21 {strides = array<i32>} : memref<1x64x128xf32, #tpu.memory_space<vmem>>, vector<1x64x128xf32>,
    return
  }
  func.func @transform_0(%arg0: i32) -> (i32, i32, i32) {
    %c0_i32 = arith.constant 0 : i32
    %c0_i32_0 = arith.constant 0 : i32
    %c0_i32_1 = arith.constant 0 : i32
    return %arg0, %c0_i32, %c0_i32_0 : i32, i32, i32
  }
  func.func @transform_1(%arg0: i32) -> (i32, i32, i32, i32) {
    %c0_i32 = arith.constant 0 : i32
    %c0_i32_0 = arith.constant 0 : i32
    %c0_i32_1 = arith.constant 0 : i32
    %c0_i32_2 = arith.constant 0 : i32
    return %arg0, %c0_i32, %c0_i32_0, %c0_i32_1 : i32, i32, i32, i32
  }
  func.func @transform_2(%arg0: i32) -> (i32, i32) {
    %c0_i32 = arith.constant 0 : i32
    %c0_i32_0 = arith.constant 0 : i32
    %c0_i32_1 = arith.constant 0 : i32
    return %c0_i32, %c0_i32_0 : i32, i32
  }
  func.func @transform_3(%arg0: i32) -> (i32, i32) {
    %c0_i32 = arith.constant 0 : i32
    %c0_i32_0 = arith.constant 0 : i32
    %c0_i32_1 = arith.constant 0 : i32
    return %c0_i32, %c0_i32_0 : i32, i32
  }
  func.func @transform_4(%arg0: i32) -> (i32, i32, i32) {
    %c0_i32 = arith.constant 0 : i32
    %c0_i32_0 = arith.constant 0 : i32
    %c0_i32_1 = arith.constant 0 : i32
    return %arg0, %c0_i32, %c0_i32_0 : i32, i32, i32
  }
}

</mosaic_0001>

<llo_original>
// kernel: res_block_forward.5
$region0: #{res_block_forward.5}
  #allocation0 [shape = 'u32[]', space=smem, size = 0x4, offset = 0x4, fixed_abs, tag = 'smem constant byte address 0x4 - core index']
  #allocation1 [shape = 'u32[144,128]{1,0:T(1,128)}', space=vmem, size = 0x12000, scoped, tag = 'internal scratch']
  %s0 = inlined_call_operand.vmem [shape: f32[2,64,128], index: 0, kind: input, shape index: {}]
  %s1 = inlined_call_operand.vmem [shape: bf16[2,9,9,128], index: 1, kind: input, shape index: {}]
  %s2 = inlined_call_operand.vmem [shape: f32[8,128], index: 2, kind: input, shape index: {}]
  %s3 = inlined_call_operand.vmem [shape: bf16[128,128], index: 3, kind: input, shape index: {}]
  %s4 = inlined_call_operand.vmem [shape: f32[2,64,128], index: 4, kind: output, shape index: {}]
  %s5 = sld [smem:[#allocation0]]
  $region49: #{res_block_forward.5} parent=0
    _
  %s7 = ssub.s32 1, %s5
  %s8 = scalar_select 0, %s7, %s5
  loop: start=0, step=1, limit=4
  $region2: #{res_block_forward.5} parent=0 // loop_pre_header
    _
  $region3: #{res_block_forward.5} parent=0 // loop_header
    %s10 = sphi 0, %s14
    %p11 = scmp.ge.s32.totalorder %s10, 4
    %s20 = sphi 0, %s22
    %s23 = sphi 0, %s20
    %s24 = sphi 0, %s23
    %s40 = sphi 0, %s24
    %s46 = sphi 0, %s48
    %s49 = sphi 0, %s46
    %s50 = sphi 0, %s49
    %s66 = sphi 0, %s50
    %s70 = sphi 0, %s70
    %s72 = sphi 0, %s70
    %s73 = sphi 0, %s72
    %s87 = sphi 0, %s73
    %s91 = sphi 0, %s91
    %s93 = sphi 0, %s91
    %s94 = sphi 0, %s93
    %s108 = sphi 0, %s94
    %s114 = sphi 0, %s116
    %s117 = sphi 0, %s114
    %s118 = sphi 0, %s117
    %s134 = sphi 0, %s118
  $region4: #{res_block_forward.5} parent=0 // loop_header_branch
    %13 = sbr.rel (%p11) target = $region8
  $region5: #{res_block_forward.5} parent=0 // loop_body
    %s15 = ssub.s32 %s10, 1
    %s16 = ssub.s32 %s10, 2
    %s17 = sadd.s32 %s10, 1
    %s18 = ssub.s32 %s10, %s17
    %p19 = scmp.eq.s32.totalorder %s18, 0
    %s21 = sadd.s32 %s20, 1
    %s22 = scalar_select %p19, %s20, %s21
    %p25 = pneg %p19
    %p26 = scmp.eq.s32.totalorder %s10, 1
    %p27 = por %p25, %p26
    %p28 = scmp.ne.s32.totalorder %s20, %s23
    %p29 = scmp.eq.s32.totalorder %s10, 0
    %p30 = por %p28, %p29
    %p31 = scmp.ne.s32.totalorder %s20, %s23
    %p32 = scmp.eq.s32.totalorder %s15, 1
    %p33 = por %p31, %p32
    %p34 = scmp.ne.s32.totalorder %s23, %s24
    %p35 = scmp.eq.s32.totalorder %s15, 0
    %p36 = por %p34, %p35
    %p37 = scmp.ne.s32.totalorder %s23, %s24
    %p38 = scmp.eq.s32.totalorder %s16, 1
    %p39 = por %p37, %p38
    %p41 = scmp.ne.s32.totalorder %s24, %s40
    %p42 = scmp.eq.s32.totalorder %s16, 0
    %p43 = por %p41, %p42
    %s44 = ssub.s32 %s10, %s17
    %p45 = scmp.eq.s32.totalorder %s44, 0
    %s47 = sadd.s32 %s46, 1
    %s48 = scalar_select %p45, %s46, %s47
    %p51 = pneg %p45
    %p52 = scmp.eq.s32.totalorder %s10, 1
    %p53 = por %p51, %p52
    %p54 = scmp.ne.s32.totalorder %s46, %s49
    %p55 = scmp.eq.s32.totalorder %s10, 0
    %p56 = por %p54, %p55
    %p57 = scmp.ne.s32.totalorder %s46, %s49
    %p58 = scmp.eq.s32.totalorder %s15, 1
    %p59 = por %p57, %p58
    %p60 = scmp.ne.s32.totalorder %s49, %s50
    %p61 = scmp.eq.s32.totalorder %s15, 0
    %p62 = por %p60, %p61
    %p63 = scmp.ne.s32.totalorder %s49, %s50
    %p64 = scmp.eq.s32.totalorder %s16, 1
    %p65 = por %p63, %p64
    %p67 = scmp.ne.s32.totalorder %s50, %s66
    %p68 = scmp.eq.s32.totalorder %s16, 0
    %p69 = por %p67, %p68
    %s71 = sadd.s32 %s70, 1
    %p74 = scmp.eq.s32.totalorder %s10, 1
    %p75 = scmp.ne.s32.totalorder %s70, %s72
    %p76 = scmp.eq.s32.totalorder %s10, 0
    %p77 = por %p75, %p76
    %p78 = scmp.ne.s32.totalorder %s70, %s72
    %p79 = scmp.eq.s32.totalorder %s15, 1
    %p80 = por %p78, %p79
    %p81 = scmp.ne.s32.totalorder %s72, %s73
    %p82 = scmp.eq.s32.totalorder %s15, 0
    %p83 = por %p81, %p82
    %p84 = scmp.ne.s32.totalorder %s72, %s73
    %p85 = scmp.eq.s32.totalorder %s16, 1
    %p86 = por %p84, %p85
    %p88 = scmp.ne.s32.totalorder %s73, %s87
    %p89 = scmp.eq.s32.totalorder %s16, 0
    %p90 = por %p88, %p89
    %s92 = sadd.s32 %s91, 1
    %p95 = scmp.eq.s32.totalorder %s10, 1
    %p96 = scmp.ne.s32.totalorder %s91, %s93
    %p97 = scmp.eq.s32.totalorder %s10, 0
    %p98 = por %p96, %p97
    %p99 = scmp.ne.s32.totalorder %s91, %s93
    %p100 = scmp.eq.s32.totalorder %s15, 1
    %p101 = por %p99, %p100
    %p102 = scmp.ne.s32.totalorder %s93, %s94
    %p103 = scmp.eq.s32.totalorder %s15, 0
    %p104 = por %p102, %p103
    %p105 = scmp.ne.s32.totalorder %s93, %s94
    %p106 = scmp.eq.s32.totalorder %s16, 1
    %p107 = por %p105, %p106
    %p109 = scmp.ne.s32.totalorder %s94, %s108
    %p110 = scmp.eq.s32.totalorder %s16, 0
    %p111 = por %p109, %p110
    %s112 = ssub.s32 %s10, %s17
    %p113 = scmp.eq.s32.totalorder %s112, 0
    %s115 = sadd.s32 %s114, 1
    %s116 = scalar_select %p113, %s114, %s115
    %p119 = pneg %p113
    %p120 = scmp.eq.s32.totalorder %s10, 1
    %p121 = por %p119, %p120
    %p122 = scmp.ne.s32.totalorder %s114, %s117
    %p123 = scmp.eq.s32.totalorder %s10, 0
    %p124 = por %p122, %p123
    %p125 = scmp.ne.s32.totalorder %s114, %s117
    %p126 = scmp.eq.s32.totalorder %s15, 1
    %p127 = por %p125, %p126
    %p128 = scmp.ne.s32.totalorder %s117, %s118
    %p129 = scmp.eq.s32.totalorder %s15, 0
    %p130 = por %p128, %p129
    %p131 = scmp.ne.s32.totalorder %s117, %s118
    %p132 = scmp.eq.s32.totalorder %s16, 1
    %p133 = por %p131, %p132
    %p135 = scmp.ne.s32.totalorder %s118, %s134
    %p136 = scmp.eq.s32.totalorder %s16, 0
    %p137 = por %p135, %p136
    %p138 = scmp.le.s32.totalorder 1, %s10
    %p139 = scmp.lt.s32.totalorder %s10, 3
    %p140 = pnand %p138, %p139
    %p141 = pneg %p140
    // Predicated region
    $region9: #{res_block_forward.5} parent=5 // pred_check
      _
    $region10: #{res_block_forward.5} parent=5 // pred_check_branch
      %143 = sbr.rel (%p140) target = $region12
    $region11: #{res_block_forward.5} parent=5 // pred_region
      %s144 = ssub.s32 %s10, 1
      // Predicated region
      $region13: #{res_block_forward.5} parent=11 // pred_check
        %p145 = pneg %p83
      $region14: #{res_block_forward.5} parent=11 // pred_check_branch
        %147 = sbr.rel (%p145) target = $region16
      $region15: #{res_block_forward.5} parent=11 // pred_region
        _
      $region16: #{res_block_forward.5} parent=11 // pred_fallthru
        _
      // Predicated region
      $region17: #{res_block_forward.5} parent=11 // pred_check
        %p148 = pneg %p104
      $region18: #{res_block_forward.5} parent=11 // pred_check_branch
        %150 = sbr.rel (%p148) target = $region20
      $region19: #{res_block_forward.5} parent=11 // pred_region
        _
      $region20: #{res_block_forward.5} parent=11 // pred_fallthru
        _
    $region12: #{res_block_forward.5} parent=5 // pred_fallthru
      _
    %p151 = scmp.lt.s32.totalorder %s10, 2
    // Predicated region
    $region21: #{res_block_forward.5} parent=5 // pred_check
      %p152 = pneg %p151
    $region22: #{res_block_forward.5} parent=5 // pred_check_branch
      %154 = sbr.rel (%p152) target = $region24
    $region23: #{res_block_forward.5} parent=5 // pred_region
      // Predicated region
      $region25: #{res_block_forward.5} parent=23 // pred_check
        %p155 = pneg %p30
      $region26: #{res_block_forward.5} parent=23 // pred_check_branch
        %157 = sbr.rel (%p155) target = $region28
      $region27: #{res_block_forward.5} parent=23 // pred_region
        %p158 = scmp.lt.s32.totalorder %s10, 1
        %s159 = scalar_select %p158, %s10, 1
        %s160 = smul.addr %s159, 8
        %s161 = smul.addr %s160, 8
        %s162 = scalar_lea.vmem %s0, %s161
      $region28: #{res_block_forward.5} parent=23 // pred_fallthru
        _
      // Predicated region
      $region29: #{res_block_forward.5} parent=23 // pred_check
        %p163 = pneg %p56
      $region30: #{res_block_forward.5} parent=23 // pred_check_branch
        %165 = sbr.rel (%p163) target = $region32
      $region31: #{res_block_forward.5} parent=23 // pred_region
        %p166 = scmp.lt.s32.totalorder %s10, 1
        %s167 = scalar_select %p166, %s10, 1
        %s168 = smul.addr %s167, 18
        %s169 = smul.addr %s168, 4
        %s170 = scalar_lea.vmem %s1, %s169
      $region32: #{res_block_forward.5} parent=23 // pred_fallthru
        _
    $region24: #{res_block_forward.5} parent=5 // pred_fallthru
      _
    %p171 = scmp.le.s32.totalorder 1, %s10
    %p172 = scmp.lt.s32.totalorder %s10, 3
    %p173 = pnand %p171, %p172
    %p174 = pneg %p173
    // Predicated region
    $region33: #{res_block_forward.5} parent=5 // pred_check
      _
    $region34: #{res_block_forward.5} parent=5 // pred_check_branch
      %176 = sbr.rel (%p173) target = $region36
    $region35: #{res_block_forward.5} parent=5 // pred_region
      %s177 = ssub.s32 %s10, 1
      %p178 = scmp.lt.s32.totalorder %s15, 1
      %s179 = scalar_select %p178, %s15, 1
      %s180 = smul.addr %s179, 8
      %s181 = smul.addr %s180, 8
      %s182 = scalar_lea.vmem %s0, %s181
      %p183 = pneg %p36
      %p184 = pneg %p33
      %p185 = scmp.lt.s32.totalorder %s15, 1
      %s186 = scalar_select %p185, %s15, 1
      %s187 = smul.addr %s186, 18
      %s188 = smul.addr %s187, 4
      %s189 = scalar_lea.vmem %s1, %s188
      %p190 = pneg %p62
      %p191 = pneg %p59
      %p192 = pneg %p83
      %p193 = pneg %p80
      %p194 = pneg %p104
      %p195 = pneg %p101
      %p196 = pneg %p130
      %p197 = pneg %p127
      %p198 = scmp.lt.s32.totalorder %s15, 1
      %s199 = scalar_select %p198, %s15, 1
      %s200 = smul.addr %s199, 8
      %s201 = smul.addr %s200, 8
      %s202 = scalar_lea.vmem %s4, %s201
      %p203 = scmp.lt.s32.totalorder %s15, 1
      %s204 = scalar_select %p203, %s15, 1
      %s205 = smul.addr %s204, 8
      %s206 = smul.addr %s205, 8
      %s207 = scalar_lea.vmem %s0, %s206
      %p208 = scmp.lt.s32.totalorder %s15, 1
      %s209 = scalar_select %p208, %s15, 1
      %s210 = smul.addr %s209, 18
      %s211 = smul.addr %s210, 4
      %s212 = scalar_lea.vmem %s1, %s211
      %p213 = scmp.lt.s32.totalorder %s15, 1
      %s214 = scalar_select %p213, %s15, 1
      %s215 = smul.addr %s214, 8
      %s216 = smul.addr %s215, 8
      %s217 = scalar_lea.vmem %s4, %s216
      %v219 = vld [vmem:[%s207] sm:$0xff]
      %v220 = vld [vmem:[%s207 + $0x8] sm:$0xff]
      %v221 = vld [vmem:[%s207 + $0x10] sm:$0xff]
      %v222 = vld [vmem:[%s207 + $0x18] sm:$0xff]
      %v223 = vld [vmem:[%s207 + $0x20] sm:$0xff]
      %v224 = vld [vmem:[%s207 + $0x28] sm:$0xff]
      %v225 = vld [vmem:[%s207 + $0x30] sm:$0xff]
      %v226 = vld [vmem:[%s207 + $0x38] sm:$0xff]
      %v227 = vld [vmem:[%s2] sm:$0x1]
      %v228 = vlaneseq
      %v229 = vshrl.u32 %v228, 7
      %v230 = vsub.s32 0, %v229
      %v231 = vrot.slane %v227, %v230
      %v232 = vmul.f32 %v219, %v231
      %v233 = vmul.f32 %v220, %v231
      %v234 = vmul.f32 %v221, %v231
      %v235 = vmul.f32 %v222, %v231
      %v236 = vmul.f32 %v223, %v231
      %v237 = vmul.f32 %v224, %v231
      %v238 = vmul.f32 %v225, %v231
      %v239 = vmul.f32 %v226, %v231
      %v240 = vld [vmem:[%s2 + $0x1] sm:$0x1]
      %v241 = vlaneseq
      %v242 = vshrl.u32 %v241, 7
      %v243 = vsub.s32 0, %v242
      %v244 = vrot.slane %v240, %v243
      %v245 = vadd.f32 %v232, %v244
      %v246 = vadd.f32 %v233, %v244
      %v247 = vadd.f32 %v234, %v244
      %v248 = vadd.f32 %v235, %v244
      %v249 = vadd.f32 %v236, %v244
      %v250 = vadd.f32 %v237, %v244
      %v251 = vadd.f32 %v238, %v244
      %v252 = vadd.f32 %v239, %v244
      %v253 = vmax.f32 %v245, 0.0
      %v254 = vmax.f32 %v246, 0.0
      %v255 = vmax.f32 %v247, 0.0
      %v256 = vmax.f32 %v248, 0.0
      %v257 = vmax.f32 %v249, 0.0
      %v258 = vmax.f32 %v250, 0.0
      %v259 = vmax.f32 %v251, 0.0
      %v260 = vmax.f32 %v252, 0.0
      %v261 = vld [vmem:[%s212] sm:$0xf]
      %v262 = vld [vmem:[%s212 + $0x8] sm:$0xf]
      %v263 = vld [vmem:[%s212 + $0x10] sm:$0xf]
      %v264 = vld [vmem:[%s212 + $0x18] sm:$0xf]
      %v265 = vld [vmem:[%s212 + $0x20] sm:$0xf]
      %v266 = vld [vmem:[%s212 + $0x28] sm:$0xf]
      %v267 = vld [vmem:[%s212 + $0x30] sm:$0xf]
      %v268 = vld [vmem:[%s212 + $0x38] sm:$0xf]
      %v269 = vld [vmem:[%s3] sm:$0xf]
      %v270 = vld [vmem:[%s3 + $0x4] sm:$0xf]
      %v271 = vld [vmem:[%s3 + $0x8] sm:$0xf]
      %v272 = vld [vmem:[%s3 + $0xc] sm:$0xf]
      %v273 = vld [vmem:[%s3 + $0x10] sm:$0xf]
      %v274 = vld [vmem:[%s3 + $0x14] sm:$0xf]
      %v275 = vld [vmem:[%s3 + $0x18] sm:$0xf]
      %v276 = vld [vmem:[%s3 + $0x1c] sm:$0xf]
      %v277 = vld [vmem:[%s3 + $0x20] sm:$0xf]
      %v278 = vld [vmem:[%s3 + $0x24] sm:$0xf]
      %v279 = vld [vmem:[%s3 + $0x28] sm:$0xf]
      %v280 = vld [vmem:[%s3 + $0x2c] sm:$0xf]
      %v281 = vld [vmem:[%s3 + $0x30] sm:$0xf]
      %v282 = vld [vmem:[%s3 + $0x34] sm:$0xf]
      %v283 = vld [vmem:[%s3 + $0x38] sm:$0xf]
      %v284 = vld [vmem:[%s3 + $0x3c] sm:$0xf]
      %v285 = vld [vmem:[%s2 + $0x2] sm:$0x1]
      %v286 = vlaneseq
      %v287 = vshrl.u32 %v286, 7
      %v288 = vsub.s32 0, %v287
      %v289 = vrot.slane %v285, %v288
      %v298 = vunpack.c.l.b16 %v261
      %v299 = vunpack.c.l.b16 %v262
      %v300 = vunpack.c.l.b16 %v263
      %v301 = vunpack.c.l.b16 %v264
      %v302 = vunpack.c.l.b16 %v265
      %v303 = vunpack.c.l.b16 %v266
      %v304 = vunpack.c.l.b16 %v267
      %v305 = vunpack.c.l.b16 %v268
      %v306 = vpack.c.b16 %v299, %v298
      %v307 = vpack.c.b16 %v301, %v300
      %v308 = vpack.c.b16 %v303, %v302
      %v309 = vpack.c.b16 %v305, %v304
      %v330 = vunpack.c.l.b16 %v269
      %v331 = vunpack.c.l.b16 %v270
      %v332 = vunpack.c.l.b16 %v271
      %v333 = vunpack.c.l.b16 %v272
      %v334 = vunpack.c.l.b16 %v273
      %v335 = vunpack.c.l.b16 %v274
      %v336 = vunpack.c.l.b16 %v275
      %v337 = vunpack.c.l.b16 %v276
      %v338 = vunpack.c.l.b16 %v277
      %v339 = vunpack.c.l.b16 %v278
      %v340 = vunpack.c.l.b16 %v279
      %v341 = vunpack.c.l.b16 %v280
      %v342 = vunpack.c.l.b16 %v281
      %v343 = vunpack.c.l.b16 %v282
      %v344 = vunpack.c.l.b16 %v283
      %v345 = vunpack.c.l.b16 %v284
      %v346 = vpack.c.b16 %v331, %v330
      %v347 = vpack.c.b16 %v333, %v332
      %v348 = vpack.c.b16 %v335, %v334
      %v349 = vpack.c.b16 %v337, %v336
      %v350 = vpack.c.b16 %v339, %v338
      %v351 = vpack.c.b16 %v341, %v340
      %v352 = vpack.c.b16 %v343, %v342
      %v353 = vpack.c.b16 %v345, %v344
      %362 = vmatprep.subr.bf16.mxu0 0
      %363 = vmatpush1.bf16.msra.mxu0 %v353
      %364 = vmatprep.subr.bf16.mxu0 0
      %365 = vmatpush1.bf16.msra.mxu0 %v352
      %366 = vmatprep.subr.bf16.mxu0 0
      %367 = vmatpush1.bf16.msra.mxu0 %v351
      %368 = vmatprep.subr.bf16.mxu0 0
      %369 = vmatpush1.bf16.msra.mxu0 %v350
      %370 = vmatprep.subr.bf16.mxu0 0
      %371 = vmatpush1.bf16.msra.mxu0 %v349
      %372 = vmatprep.subr.bf16.mxu0 0
      %373 = vmatpush1.bf16.msra.mxu0 %v348
      %374 = vmatprep.subr.bf16.mxu0 0
      %375 = vmatpush1.bf16.msra.mxu0 %v347
      %376 = vmatprep.subr.bf16.mxu0 0
      %377 = vmatpush1.bf16.msra.mxu0 %v346
      %378 = vmatprep.subr.bf16.mxu0 0
      %379 = vmatpush2.bf16.msra.mxu0 0
      %380 = vmatprep.subr.bf16.mxu0 0
      %381 = vmatpush2.bf16.msra.mxu0 0
      %382 = vmatprep.subr.bf16.mxu0 0
      %383 = vmatpush2.bf16.msra.mxu0 0
      %384 = vmatprep.subr.bf16.mxu0 0
      %385 = vmatpush2.bf16.msra.mxu0 0
      %386 = vmatprep.subr.bf16.mxu0 0
      %387 = vmatpush2.bf16.msra.mxu0 0
      %388 = vmatprep.subr.bf16.mxu0 0
      %389 = vmatpush2.bf16.msra.mxu0 0
      %390 = vmatprep.subr.bf16.mxu0 0
      %391 = vmatpush2.bf16.msra.mxu0 0
      %392 = vmatprep.subr.bf16.mxu0 0
      %393 = vmatpush2.bf16.msra.mxu0 0
      %394 = vmatprep.mubr.bf16.mxu0 0
      %395 = vmatmul.mubr.bf16.gmra.mxu0 %v306
      %v396 = vpop.f32.mrf.mxu0
      %v397 = vadd.f32 %v289, %v396
      %v398 = vpop.f32.mrf.mxu0
      %v399 = vpop.f32.mrf.mxu0
      %v400 = vadd.f32 %v289, %v399
      %v401 = vpop.f32.mrf.mxu0
      %402 = vmatprep.mubr.bf16.mxu0 0
      %403 = vmatmul.mubr.bf16.gmra.mxu0 %v307
      %v404 = vpop.f32.mrf.mxu0
      %v405 = vadd.f32 %v289, %v404
      %v406 = vpop.f32.mrf.mxu0
      %v407 = vpop.f32.mrf.mxu0
      %v408 = vadd.f32 %v289, %v407
      %v409 = vpop.f32.mrf.mxu0
      %410 = vmatprep.mubr.bf16.mxu0 0
      %411 = vmatmul.mubr.bf16.gmra.mxu0 %v308
      %v412 = vpop.f32.mrf.mxu0
      %v413 = vadd.f32 %v289, %v412
      %v414 = vpop.f32.mrf.mxu0
      %v415 = vpop.f32.mrf.mxu0
      %v416 = vadd.f32 %v289, %v415
      %v417 = vpop.f32.mrf.mxu0
      %418 = vmatprep.mubr.bf16.mxu0 0
      %419 = vmatmul.mubr.bf16.gmra.mxu0 %v309
      %v420 = vpop.f32.mrf.mxu0
      %v421 = vadd.f32 %v289, %v420
      %v422 = vpop.f32.mrf.mxu0
      %v423 = vpop.f32.mrf.mxu0
      %v424 = vadd.f32 %v289, %v423
      %v425 = vpop.f32.mrf.mxu0
      %426 = vdwg.mxu0
      %v427 = vadd.f32 %v253, %v397
      %v428 = vadd.f32 %v254, %v400
      %v429 = vadd.f32 %v255, %v405
      %v430 = vadd.f32 %v256, %v408
      %v431 = vadd.f32 %v257, %v413
      %v432 = vadd.f32 %v258, %v416
      %v433 = vadd.f32 %v259, %v421
      %v434 = vadd.f32 %v260, %v424
      %435 = vst [vmem:[%s217] sm:$0xff] %v427
      %436 = vst [vmem:[%s217 + $0x8] sm:$0xff] %v428
      %437 = vst [vmem:[%s217 + $0x10] sm:$0xff] %v429
      %438 = vst [vmem:[%s217 + $0x18] sm:$0xff] %v430
      %439 = vst [vmem:[%s217 + $0x20] sm:$0xff] %v431
      %440 = vst [vmem:[%s217 + $0x28] sm:$0xff] %v432
      %441 = vst [vmem:[%s217 + $0x30] sm:$0xff] %v433
      %442 = vst [vmem:[%s217 + $0x38] sm:$0xff] %v434
      %p443 = scmp.lt.s32.totalorder %s15, 1
      %s444 = scalar_select %p443, %s15, 1
      %s445 = smul.addr %s444, 8
      %s446 = smul.addr %s445, 8
      %s447 = scalar_lea.vmem %s4, %s446
      // Predicated region
      $region37: #{res_block_forward.5} parent=35 // pred_check
        %p448 = pneg %p127
      $region38: #{res_block_forward.5} parent=35 // pred_check_branch
        %450 = sbr.rel (%p448) target = $region40
      $region39: #{res_block_forward.5} parent=35 // pred_region
        _
      $region40: #{res_block_forward.5} parent=35 // pred_fallthru
        _
    $region36: #{res_block_forward.5} parent=5 // pred_fallthru
      _
    %p451 = scmp.le.s32.totalorder 2, %s10
    // Predicated region
    $region41: #{res_block_forward.5} parent=5 // pred_check
      %p452 = pneg %p451
    $region42: #{res_block_forward.5} parent=5 // pred_check_branch
      %454 = sbr.rel (%p452) target = $region44
    $region43: #{res_block_forward.5} parent=5 // pred_region
      %s455 = ssub.s32 %s10, 2
      // Predicated region
      $region45: #{res_block_forward.5} parent=43 // pred_check
        %p456 = pneg %p133
      $region46: #{res_block_forward.5} parent=43 // pred_check_branch
        %458 = sbr.rel (%p456) target = $region48
      $region47: #{res_block_forward.5} parent=43 // pred_region
        %p459 = scmp.lt.s32.totalorder %s16, 1
        %s460 = scalar_select %p459, %s16, 1
        %s461 = smul.addr %s460, 8
        %s462 = smul.addr %s461, 8
        %s463 = scalar_lea.vmem %s4, %s462
      $region48: #{res_block_forward.5} parent=43 // pred_fallthru
        _
    $region44: #{res_block_forward.5} parent=5 // pred_fallthru
      _
  $region6: #{res_block_forward.5} parent=0 // loop_footer
    %s14 = sadd.s32 1, %s10
  $region7: #{res_block_forward.5} parent=0 // loop_footer_branch
    %9 = sbr.rel target = $region3
  $region8: #{res_block_forward.5} parent=0 // loop_exit
    _

// kernel: res_block_forward.3
$region0: #{res_block_forward.3}
  #allocation0 [shape = 'u32[]', space=smem, size = 0x4, offset = 0x4, fixed_abs, tag = 'smem constant byte address 0x4 - core index']
  #allocation1 [shape = 'u32[144,128]{1,0:T(1,128)}', space=vmem, size = 0x12000, scoped, tag = 'internal scratch']
  #allocation2 [shape = 'f32[64,128]{1,0:T(8,128)}', space=vmem, size = 0x8000, scoped, tag = 'scratch operand']
  %s0 = inlined_call_operand.vmem [shape: bf16[2,9,9,128], index: 0, kind: input, shape index: {}]
  %s1 = inlined_call_operand.vmem [shape: bf16[2,9,9,128], index: 1, kind: input, shape index: {}]
  %s2 = inlined_call_operand.vmem [shape: bf16[2,9,9,128], index: 2, kind: input, shape index: {}]
  %s3 = inlined_call_operand.vmem [shape: bf16[2,9,9,128], index: 3, kind: input, shape index: {}]
  %s4 = inlined_call_operand.vmem [shape: bf16[9,128,128], index: 4, kind: input, shape index: {}]
  %s5 = inlined_call_operand.vmem [shape: f32[2,64,128], index: 5, kind: output, shape index: {0}]
  %s6 = inlined_call_operand.vmem [shape: f32[2,2,128], index: 6, kind: output, shape index: {1}]
  %7 = xla_tuple %s5, %s6
  %s8 = sld [smem:[#allocation0]]
  $region61: #{res_block_forward.3} parent=0
    _
  %s10 = ssub.s32 1, %s8
  %s11 = scalar_select 0, %s10, %s8
  loop: start=0, step=1, limit=4
  $region2: #{res_block_forward.3} parent=0 // loop_pre_header
    _
  $region3: #{res_block_forward.3} parent=0 // loop_header
    %s13 = sphi 0, %s17
    %p14 = scmp.ge.s32.totalorder %s13, 4
    %s23 = sphi 0, %s25
    %s26 = sphi 0, %s23
    %s27 = sphi 0, %s26
    %s43 = sphi 0, %s27
    %s49 = sphi 0, %s51
    %s52 = sphi 0, %s49
    %s53 = sphi 0, %s52
    %s69 = sphi 0, %s53
    %s75 = sphi 0, %s77
    %s78 = sphi 0, %s75
    %s79 = sphi 0, %s78
    %s95 = sphi 0, %s79
    %s101 = sphi 0, %s103
    %s104 = sphi 0, %s101
    %s105 = sphi 0, %s104
    %s121 = sphi 0, %s105
    %s125 = sphi 0, %s125
    %s127 = sphi 0, %s125
    %s128 = sphi 0, %s127
    %s142 = sphi 0, %s128
    %s148 = sphi 0, %s150
    %s151 = sphi 0, %s148
    %s152 = sphi 0, %s151
    %s168 = sphi 0, %s152
    %s174 = sphi 0, %s176
    %s177 = sphi 0, %s174
    %s178 = sphi 0, %s177
    %s194 = sphi 0, %s178
  $region4: #{res_block_forward.3} parent=0 // loop_header_branch
    %16 = sbr.rel (%p14) target = $region8
  $region5: #{res_block_forward.3} parent=0 // loop_body
    %s18 = ssub.s32 %s13, 1
    %s19 = ssub.s32 %s13, 2
    %s20 = sadd.s32 %s13, 1
    %s21 = ssub.s32 %s13, %s20
    %p22 = scmp.eq.s32.totalorder %s21, 0
    %s24 = sadd.s32 %s23, 1
    %s25 = scalar_select %p22, %s23, %s24
    %p28 = pneg %p22
    %p29 = scmp.eq.s32.totalorder %s13, 1
    %p30 = por %p28, %p29
    %p31 = scmp.ne.s32.totalorder %s23, %s26
    %p32 = scmp.eq.s32.totalorder %s13, 0
    %p33 = por %p31, %p32
    %p34 = scmp.ne.s32.totalorder %s23, %s26
    %p35 = scmp.eq.s32.totalorder %s18, 1
    %p36 = por %p34, %p35
    %p37 = scmp.ne.s32.totalorder %s26, %s27
    %p38 = scmp.eq.s32.totalorder %s18, 0
    %p39 = por %p37, %p38
    %p40 = scmp.ne.s32.totalorder %s26, %s27
    %p41 = scmp.eq.s32.totalorder %s19, 1
    %p42 = por %p40, %p41
    %p44 = scmp.ne.s32.totalorder %s27, %s43
    %p45 = scmp.eq.s32.totalorder %s19, 0
    %p46 = por %p44, %p45
    %s47 = ssub.s32 %s13, %s20
    %p48 = scmp.eq.s32.totalorder %s47, 0
    %s50 = sadd.s32 %s49, 1
    %s51 = scalar_select %p48, %s49, %s50
    %p54 = pneg %p48
    %p55 = scmp.eq.s32.totalorder %s13, 1
    %p56 = por %p54, %p55
    %p57 = scmp.ne.s32.totalorder %s49, %s52
    %p58 = scmp.eq.s32.totalorder %s13, 0
    %p59 = por %p57, %p58
    %p60 = scmp.ne.s32.totalorder %s49, %s52
    %p61 = scmp.eq.s32.totalorder %s18, 1
    %p62 = por %p60, %p61
    %p63 = scmp.ne.s32.totalorder %s52, %s53
    %p64 = scmp.eq.s32.totalorder %s18, 0
    %p65 = por %p63, %p64
    %p66 = scmp.ne.s32.totalorder %s52, %s53
    %p67 = scmp.eq.s32.totalorder %s19, 1
    %p68 = por %p66, %p67
    %p70 = scmp.ne.s32.totalorder %s53, %s69
    %p71 = scmp.eq.s32.totalorder %s19, 0
    %p72 = por %p70, %p71
    %s73 = ssub.s32 %s13, %s20
    %p74 = scmp.eq.s32.totalorder %s73, 0
    %s76 = sadd.s32 %s75, 1
    %s77 = scalar_select %p74, %s75, %s76
    %p80 = pneg %p74
    %p81 = scmp.eq.s32.totalorder %s13, 1
    %p82 = por %p80, %p81
    %p83 = scmp.ne.s32.totalorder %s75, %s78
    %p84 = scmp.eq.s32.totalorder %s13, 0
    %p85 = por %p83, %p84
    %p86 = scmp.ne.s32.totalorder %s75, %s78
    %p87 = scmp.eq.s32.totalorder %s18, 1
    %p88 = por %p86, %p87
    %p89 = scmp.ne.s32.totalorder %s78, %s79
    %p90 = scmp.eq.s32.totalorder %s18, 0
    %p91 = por %p89, %p90
    %p92 = scmp.ne.s32.totalorder %s78, %s79
    %p93 = scmp.eq.s32.totalorder %s19, 1
    %p94 = por %p92, %p93
    %p96 = scmp.ne.s32.totalorder %s79, %s95
    %p97 = scmp.eq.s32.totalorder %s19, 0
    %p98 = por %p96, %p97
    %s99 = ssub.s32 %s13, %s20
    %p100 = scmp.eq.s32.totalorder %s99, 0
    %s102 = sadd.s32 %s101, 1
    %s103 = scalar_select %p100, %s101, %s102
    %p106 = pneg %p100
    %p107 = scmp.eq.s32.totalorder %s13, 1
    %p108 = por %p106, %p107
    %p109 = scmp.ne.s32.totalorder %s101, %s104
    %p110 = scmp.eq.s32.totalorder %s13, 0
    %p111 = por %p109, %p110
    %p112 = scmp.ne.s32.totalorder %s101, %s104
    %p113 = scmp.eq.s32.totalorder %s18, 1
    %p114 = por %p112, %p113
    %p115 = scmp.ne.s32.totalorder %s104, %s105
    %p116 = scmp.eq.s32.totalorder %s18, 0
    %p117 = por %p115, %p116
    %p118 = scmp.ne.s32.totalorder %s104, %s105
    %p119 = scmp.eq.s32.totalorder %s19, 1
    %p120 = por %p118, %p119
    %p122 = scmp.ne.s32.totalorder %s105, %s121
    %p123 = scmp.eq.s32.totalorder %s19, 0
    %p124 = por %p122, %p123
    %s126 = sadd.s32 %s125, 1
    %p129 = scmp.eq.s32.totalorder %s13, 1
    %p130 = scmp.ne.s32.totalorder %s125, %s127
    %p131 = scmp.eq.s32.totalorder %s13, 0
    %p132 = por %p130, %p131
    %p133 = scmp.ne.s32.totalorder %s125, %s127
    %p134 = scmp.eq.s32.totalorder %s18, 1
    %p135 = por %p133, %p134
    %p136 = scmp.ne.s32.totalorder %s127, %s128
    %p137 = scmp.eq.s32.totalorder %s18, 0
    %p138 = por %p136, %p137
    %p139 = scmp.ne.s32.totalorder %s127, %s128
    %p140 = scmp.eq.s32.totalorder %s19, 1
    %p141 = por %p139, %p140
    %p143 = scmp.ne.s32.totalorder %s128, %s142
    %p144 = scmp.eq.s32.totalorder %s19, 0
    %p145 = por %p143, %p144
    %s146 = ssub.s32 %s13, %s20
    %p147 = scmp.eq.s32.totalorder %s146, 0
    %s149 = sadd.s32 %s148, 1
    %s150 = scalar_select %p147, %s148, %s149
    %p153 = pneg %p147
    %p154 = scmp.eq.s32.totalorder %s13, 1
    %p155 = por %p153, %p154
    %p156 = scmp.ne.s32.totalorder %s148, %s151
    %p157 = scmp.eq.s32.totalorder %s13, 0
    %p158 = por %p156, %p157
    %p159 = scmp.ne.s32.totalorder %s148, %s151
    %p160 = scmp.eq.s32.totalorder %s18, 1
    %p161 = por %p159, %p160
    %p162 = scmp.ne.s32.totalorder %s151, %s152
    %p163 = scmp.eq.s32.totalorder %s18, 0
    %p164 = por %p162, %p163
    %p165 = scmp.ne.s32.totalorder %s151, %s152
    %p166 = scmp.eq.s32.totalorder %s19, 1
    %p167 = por %p165, %p166
    %p169 = scmp.ne.s32.totalorder %s152, %s168
    %p170 = scmp.eq.s32.totalorder %s19, 0
    %p171 = por %p169, %p170
    %s172 = ssub.s32 %s13, %s20
    %p173 = scmp.eq.s32.totalorder %s172, 0
    %s175 = sadd.s32 %s174, 1
    %s176 = scalar_select %p173, %s174, %s175
    %p179 = pneg %p173
    %p180 = scmp.eq.s32.totalorder %s13, 1
    %p181 = por %p179, %p180
    %p182 = scmp.ne.s32.totalorder %s174, %s177
    %p183 = scmp.eq.s32.totalorder %s13, 0
    %p184 = por %p182, %p183
    %p185 = scmp.ne.s32.totalorder %s174, %s177
    %p186 = scmp.eq.s32.totalorder %s18, 1
    %p187 = por %p185, %p186
    %p188 = scmp.ne.s32.totalorder %s177, %s178
    %p189 = scmp.eq.s32.totalorder %s18, 0
    %p190 = por %p188, %p189
    %p191 = scmp.ne.s32.totalorder %s177, %s178
    %p192 = scmp.eq.s32.totalorder %s19, 1
    %p193 = por %p191, %p192
    %p195 = scmp.ne.s32.totalorder %s178, %s194
    %p196 = scmp.eq.s32.totalorder %s19, 0
    %p197 = por %p195, %p196
    %p198 = scmp.le.s32.totalorder 1, %s13
    %p199 = scmp.lt.s32.totalorder %s13, 3
    %p200 = pnand %p198, %p199
    %p201 = pneg %p200
    // Predicated region
    $region9: #{res_block_forward.3} parent=5 // pred_check
      _
    $region10: #{res_block_forward.3} parent=5 // pred_check_branch
      %203 = sbr.rel (%p200) target = $region12
    $region11: #{res_block_forward.3} parent=5 // pred_region
      %s204 = ssub.s32 %s13, 1
      // Predicated region
      $region13: #{res_block_forward.3} parent=11 // pred_check
        %p205 = pneg %p138
      $region14: #{res_block_forward.3} parent=11 // pred_check_branch
        %207 = sbr.rel (%p205) target = $region16
      $region15: #{res_block_forward.3} parent=11 // pred_region
        _
      $region16: #{res_block_forward.3} parent=11 // pred_fallthru
        _
    $region12: #{res_block_forward.3} parent=5 // pred_fallthru
      _
    %p208 = scmp.lt.s32.totalorder %s13, 2
    // Predicated region
    $region17: #{res_block_forward.3} parent=5 // pred_check
      %p209 = pneg %p208
    $region18: #{res_block_forward.3} parent=5 // pred_check_branch
      %211 = sbr.rel (%p209) target = $region20
    $region19: #{res_block_forward.3} parent=5 // pred_region
      // Predicated region
      $region21: #{res_block_forward.3} parent=19 // pred_check
        %p212 = pneg %p33
      $region22: #{res_block_forward.3} parent=19 // pred_check_branch
        %214 = sbr.rel (%p212) target = $region24
      $region23: #{res_block_forward.3} parent=19 // pred_region
        %p215 = scmp.lt.s32.totalorder %s13, 1
        %s216 = scalar_select %p215, %s13, 1
        %s217 = smul.addr %s216, 18
        %s218 = smul.addr %s217, 4
        %s219 = scalar_lea.vmem %s0, %s218
      $region24: #{res_block_forward.3} parent=19 // pred_fallthru
        _
      // Predicated region
      $region25: #{res_block_forward.3} parent=19 // pred_check
        %p220 = pneg %p59
      $region26: #{res_block_forward.3} parent=19 // pred_check_branch
        %222 = sbr.rel (%p220) target = $region28
      $region27: #{res_block_forward.3} parent=19 // pred_region
        %p223 = scmp.lt.s32.totalorder %s13, 1
        %s224 = scalar_select %p223, %s13, 1
        %s225 = smul.addr %s224, 18
        %s226 = smul.addr %s225, 4
        %s227 = scalar_lea.vmem %s1, %s226
      $region28: #{res_block_forward.3} parent=19 // pred_fallthru
        _
      // Predicated region
      $region29: #{res_block_forward.3} parent=19 // pred_check
        %p228 = pneg %p85
      $region30: #{res_block_forward.3} parent=19 // pred_check_branch
        %230 = sbr.rel (%p228) target = $region32
      $region31: #{res_block_forward.3} parent=19 // pred_region
        %p231 = scmp.lt.s32.totalorder %s13, 1
        %s232 = scalar_select %p231, %s13, 1
        %s233 = smul.addr %s232, 18
        %s234 = smul.addr %s233, 4
        %s235 = scalar_lea.vmem %s2, %s234
      $region32: #{res_block_forward.3} parent=19 // pred_fallthru
        _
      // Predicated region
      $region33: #{res_block_forward.3} parent=19 // pred_check
        %p236 = pneg %p111
      $region34: #{res_block_forward.3} parent=19 // pred_check_branch
        %238 = sbr.rel (%p236) target = $region36
      $region35: #{res_block_forward.3} parent=19 // pred_region
        %p239 = scmp.lt.s32.totalorder %s13, 1
        %s240 = scalar_select %p239, %s13, 1
        %s241 = smul.addr %s240, 18
        %s242 = smul.addr %s241, 4
        %s243 = scalar_lea.vmem %s3, %s242
      $region36: #{res_block_forward.3} parent=19 // pred_fallthru
        _
    $region20: #{res_block_forward.3} parent=5 // pred_fallthru
      _
    %p244 = scmp.le.s32.totalorder 1, %s13
    %p245 = scmp.lt.s32.totalorder %s13, 3
    %p246 = pnand %p244, %p245
    %p247 = pneg %p246
    // Predicated region
    $region37: #{res_block_forward.3} parent=5 // pred_check
      _
    $region38: #{res_block_forward.3} parent=5 // pred_check_branch
      %249 = sbr.rel (%p246) target = $region40
    $region39: #{res_block_forward.3} parent=5 // pred_region
      %s250 = ssub.s32 %s13, 1
      %p251 = scmp.lt.s32.totalorder %s18, 1
      %s252 = scalar_select %p251, %s18, 1
      %s253 = smul.addr %s252, 18
      %s254 = smul.addr %s253, 4
      %s255 = scalar_lea.vmem %s0, %s254
      %p256 = pneg %p39
      %p257 = pneg %p36
      %p258 = scmp.lt.s32.totalorder %s18, 1
      %s259 = scalar_select %p258, %s18, 1
      %s260 = smul.addr %s259, 18
      %s261 = smul.addr %s260, 4
      %s262 = scalar_lea.vmem %s1, %s261
      %p263 = pneg %p65
      %p264 = pneg %p62
      %p265 = scmp.lt.s32.totalorder %s18, 1
      %s266 = scalar_select %p265, %s18, 1
      %s267 = smul.addr %s266, 18
      %s268 = smul.addr %s267, 4
      %s269 = scalar_lea.vmem %s2, %s268
      %p270 = pneg %p91
      %p271 = pneg %p88
      %p272 = scmp.lt.s32.totalorder %s18, 1
      %s273 = scalar_select %p272, %s18, 1
      %s274 = smul.addr %s273, 18
      %s275 = smul.addr %s274, 4
      %s276 = scalar_lea.vmem %s3, %s275
      %p277 = pneg %p117
      %p278 = pneg %p114
      %p279 = pneg %p138
      %p280 = pneg %p135
      %p281 = pneg %p164
      %p282 = pneg %p161
      %p283 = scmp.lt.s32.totalorder %s18, 1
      %s284 = scalar_select %p283, %s18, 1
      %s285 = smul.addr %s284, 8
      %s286 = smul.addr %s285, 8
      %s287 = scalar_lea.vmem %s5, %s286
      %p288 = pneg %p190
      %p289 = pneg %p187
      %p290 = scmp.lt.s32.totalorder %s18, 1
      %s291 = scalar_select %p290, %s18, 1
      %s292 = smul.addr %s291, 2
      %s293 = scalar_lea.vmem %s6, %s292
      %p294 = scmp.lt.s32.totalorder %s18, 1
      %s295 = scalar_select %p294, %s18, 1
      %s296 = smul.addr %s295, 18
      %s297 = smul.addr %s296, 4
      %s298 = scalar_lea.vmem %s0, %s297
      %p299 = scmp.lt.s32.totalorder %s18, 1
      %s300 = scalar_select %p299, %s18, 1
      %s301 = smul.addr %s300, 18
      %s302 = smul.addr %s301, 4
      %s303 = scalar_lea.vmem %s1, %s302
      %p304 = scmp.lt.s32.totalorder %s18, 1
      %s305 = scalar_select %p304, %s18, 1
      %s306 = smul.addr %s305, 18
      %s307 = smul.addr %s306, 4
      %s308 = scalar_lea.vmem %s2, %s307
      %p309 = scmp.lt.s32.totalorder %s18, 1
      %s310 = scalar_select %p309, %s18, 1
      %s311 = smul.addr %s310, 18
      %s312 = smul.addr %s311, 4
      %s313 = scalar_lea.vmem %s3, %s312
      %p314 = scmp.lt.s32.totalorder %s18, 1
      %s315 = scalar_select %p314, %s18, 1
      %s316 = smul.addr %s315, 8
      %s317 = smul.addr %s316, 8
      %s318 = scalar_lea.vmem %s5, %s317
      %p319 = scmp.lt.s32.totalorder %s18, 1
      %s320 = scalar_select %p319, %s18, 1
      %s321 = smul.addr %s320, 2
      %s322 = scalar_lea.vmem %s6, %s321
      %v324 = vld [vmem:[%s298] sm:$0xf]
      %v325 = vld [vmem:[%s298 + $0x8] sm:$0xf]
      %v326 = vld [vmem:[%s298 + $0x10] sm:$0xf]
      %v327 = vld [vmem:[%s298 + $0x18] sm:$0xf]
      %v328 = vld [vmem:[%s298 + $0x20] sm:$0xf]
      %v329 = vld [vmem:[%s298 + $0x28] sm:$0xf]
      %v330 = vld [vmem:[%s298 + $0x30] sm:$0xf]
      %v331 = vld [vmem:[%s298 + $0x38] sm:$0xf]
      %v332 = vld [vmem:[%s4] sm:$0xf]
      %v333 = vld [vmem:[%s4 + $0x4] sm:$0xf]
      %v334 = vld [vmem:[%s4 + $0x8] sm:$0xf]
      %v335 = vld [vmem:[%s4 + $0xc] sm:$0xf]
      %v336 = vld [vmem:[%s4 + $0x10] sm:$0xf]
      %v337 = vld [vmem:[%s4 + $0x14] sm:$0xf]
      %v338 = vld [vmem:[%s4 + $0x18] sm:$0xf]
      %v339 = vld [vmem:[%s4 + $0x1c] sm:$0xf]
      %v340 = vld [vmem:[%s4 + $0x20] sm:$0xf]
      %v341 = vld [vmem:[%s4 + $0x24] sm:$0xf]
      %v342 = vld [vmem:[%s4 + $0x28] sm:$0xf]
      %v343 = vld [vmem:[%s4 + $0x2c] sm:$0xf]
      %v344 = vld [vmem:[%s4 + $0x30] sm:$0xf]
      %v345 = vld [vmem:[%s4 + $0x34] sm:$0xf]
      %v346 = vld [vmem:[%s4 + $0x38] sm:$0xf]
      %v347 = vld [vmem:[%s4 + $0x3c] sm:$0xf]
      %v356 = vunpack.c.l.b16 %v324
      %v357 = vunpack.c.l.b16 %v325
      %v358 = vunpack.c.l.b16 %v326
      %v359 = vunpack.c.l.b16 %v327
      %v360 = vunpack.c.l.b16 %v328
      %v361 = vunpack.c.l.b16 %v329
      %v362 = vunpack.c.l.b16 %v330
      %v363 = vunpack.c.l.b16 %v331
      %v364 = vpack.c.b16 %v357, %v356
      %v365 = vpack.c.b16 %v359, %v358
      %v366 = vpack.c.b16 %v361, %v360
      %v367 = vpack.c.b16 %v363, %v362
      %v388 = vunpack.c.l.b16 %v332
      %v389 = vunpack.c.l.b16 %v333
      %v390 = vunpack.c.l.b16 %v334
      %v391 = vunpack.c.l.b16 %v335
      %v392 = vunpack.c.l.b16 %v336
      %v393 = vunpack.c.l.b16 %v337
      %v394 = vunpack.c.l.b16 %v338
      %v395 = vunpack.c.l.b16 %v339
      %v396 = vunpack.c.l.b16 %v340
      %v397 = vunpack.c.l.b16 %v341
      %v398 = vunpack.c.l.b16 %v342
      %v399 = vunpack.c.l.b16 %v343
      %v400 = vunpack.c.l.b16 %v344
      %v401 = vunpack.c.l.b16 %v345
      %v402 = vunpack.c.l.b16 %v346
      %v403 = vunpack.c.l.b16 %v347
      %v404 = vpack.c.b16 %v389, %v388
      %v405 = vpack.c.b16 %v391, %v390
      %v406 = vpack.c.b16 %v393, %v392
      %v407 = vpack.c.b16 %v395, %v394
      %v408 = vpack.c.b16 %v397, %v396
      %v409 = vpack.c.b16 %v399, %v398
      %v410 = vpack.c.b16 %v401, %v400
      %v411 = vpack.c.b16 %v403, %v402
      %420 = vmatprep.subr.bf16.mxu0 0
      %421 = vmatpush1.bf16.msra.mxu0 %v411
      %422 = vmatprep.subr.bf16.mxu0 0
      %423 = vmatpush1.bf16.msra.mxu0 %v410
      %424 = vmatprep.subr.bf16.mxu0 0
      %425 = vmatpush1.bf16.msra.mxu0 %v409
      %426 = vmatprep.subr.bf16.mxu0 0
      %427 = vmatpush1.bf16.msra.mxu0 %v408
      %428 = vmatprep.subr.bf16.mxu0 0
      %429 = vmatpush1.bf16.msra.mxu0 %v407
      %430 = vmatprep.subr.bf16.mxu0 0
      %431 = vmatpush1.bf16.msra.mxu0 %v406
      %432 = vmatprep.subr.bf16.mxu0 0
      %433 = vmatpush1.bf16.msra.mxu0 %v405
      %434 = vmatprep.subr.bf16.mxu0 0
      %435 = vmatpush1.bf16.msra.mxu0 %v404
      %436 = vmatprep.subr.bf16.mxu0 0
      %437 = vmatpush2.bf16.msra.mxu0 0
      %438 = vmatprep.subr.bf16.mxu0 0
      %439 = vmatpush2.bf16.msra.mxu0 0
      %440 = vmatprep.subr.bf16.mxu0 0
      %441 = vmatpush2.bf16.msra.mxu0 0
      %442 = vmatprep.subr.bf16.mxu0 0
      %443 = vmatpush2.bf16.msra.mxu0 0
      %444 = vmatprep.subr.bf16.mxu0 0
      %445 = vmatpush2.bf16.msra.mxu0 0
      %446 = vmatprep.subr.bf16.mxu0 0
      %447 = vmatpush2.bf16.msra.mxu0 0
      %448 = vmatprep.subr.bf16.mxu0 0
      %449 = vmatpush2.bf16.msra.mxu0 0
      %450 = vmatprep.subr.bf16.mxu0 0
      %451 = vmatpush2.bf16.msra.mxu0 0
      %452 = vmatprep.mubr.bf16.mxu0 0
      %453 = vmatmul.mubr.bf16.gmra.mxu0 %v364
      %v454 = vpop.f32.mrf.mxu0
      %v455 = vadd.f32 0.0, %v454
      %v456 = vpop.f32.mrf.mxu0
      %v457 = vpop.f32.mrf.mxu0
      %v458 = vadd.f32 0.0, %v457
      %v459 = vpop.f32.mrf.mxu0
      %460 = vmatprep.mubr.bf16.mxu0 0
      %461 = vmatmul.mubr.bf16.gmra.mxu0 %v365
      %v462 = vpop.f32.mrf.mxu0
      %v463 = vadd.f32 0.0, %v462
      %v464 = vpop.f32.mrf.mxu0
      %v465 = vpop.f32.mrf.mxu0
      %v466 = vadd.f32 0.0, %v465
      %v467 = vpop.f32.mrf.mxu0
      %468 = vmatprep.mubr.bf16.mxu0 0
      %469 = vmatmul.mubr.bf16.gmra.mxu0 %v366
      %v470 = vpop.f32.mrf.mxu0
      %v471 = vadd.f32 0.0, %v470
      %v472 = vpop.f32.mrf.mxu0
      %v473 = vpop.f32.mrf.mxu0
      %v474 = vadd.f32 0.0, %v473
      %v475 = vpop.f32.mrf.mxu0
      %476 = vmatprep.mubr.bf16.mxu0 0
      %477 = vmatmul.mubr.bf16.gmra.mxu0 %v367
      %v478 = vpop.f32.mrf.mxu0
      %v479 = vadd.f32 0.0, %v478
      %v480 = vpop.f32.mrf.mxu0
      %v481 = vpop.f32.mrf.mxu0
      %v482 = vadd.f32 0.0, %v481
      %v483 = vpop.f32.mrf.mxu0
      %484 = vdwg.mxu0
      %485 = vst [vmem:[#allocation2] sm:$0xff] %v455
      %486 = vst [vmem:[#allocation2 + $0x8] sm:$0xff] %v458
      %487 = vst [vmem:[#allocation2 + $0x10] sm:$0xff] %v463
      %488 = vst [vmem:[#allocation2 + $0x18] sm:$0xff] %v466
      %489 = vst [vmem:[#allocation2 + $0x20] sm:$0xff] %v471
      %490 = vst [vmem:[#allocation2 + $0x28] sm:$0xff] %v474
      %491 = vst [vmem:[#allocation2 + $0x30] sm:$0xff] %v479
      %492 = vst [vmem:[#allocation2 + $0x38] sm:$0xff] %v482
      %v493 = vld [vmem:[%s303] sm:$0xf]
      %v494 = vld [vmem:[%s303 + $0x8] sm:$0xf]
      %v495 = vld [vmem:[%s303 + $0x10] sm:$0xf]
      %v496 = vld [vmem:[%s303 + $0x18] sm:$0xf]
      %v497 = vld [vmem:[%s303 + $0x20] sm:$0xf]
      %v498 = vld [vmem:[%s303 + $0x28] sm:$0xf]
      %v499 = vld [vmem:[%s303 + $0x30] sm:$0xf]
      %v500 = vld [vmem:[%s303 + $0x38] sm:$0xf]
      %s501 = scalar_lea.vmem %s4, 64
      %v502 = vld [vmem:[%s501] sm:$0xf]
      %v503 = vld [vmem:[%s501 + $0x4] sm:$0xf]
      %v504 = vld [vmem:[%s501 + $0x8] sm:$0xf]
      %v505 = vld [vmem:[%s501 + $0xc] sm:$0xf]
      %v506 = vld [vmem:[%s501 + $0x10] sm:$0xf]
      %v507 = vld [vmem:[%s501 + $0x14] sm:$0xf]
      %v508 = vld [vmem:[%s501 + $0x18] sm:$0xf]
      %v509 = vld [vmem:[%s501 + $0x1c] sm:$0xf]
      %v510 = vld [vmem:[%s501 + $0x20] sm:$0xf]
      %v511 = vld [vmem:[%s501 + $0x24] sm:$0xf]
      %v512 = vld [vmem:[%s501 + $0x28] sm:$0xf]
      %v513 = vld [vmem:[%s501 + $0x2c] sm:$0xf]
      %v514 = vld [vmem:[%s501 + $0x30] sm:$0xf]
      %v515 = vld [vmem:[%s501 + $0x34] sm:$0xf]
      %v516 = vld [vmem:[%s501 + $0x38] sm:$0xf]
      %v517 = vld [vmem:[%s501 + $0x3c] sm:$0xf]
      %v526 = vunpack.c.l.b16 %v493
      %v527 = vunpack.c.l.b16 %v494
      %v528 = vunpack.c.l.b16 %v495
      %v529 = vunpack.c.l.b16 %v496
      %v530 = vunpack.c.l.b16 %v497
      %v531 = vunpack.c.l.b16 %v498
      %v532 = vunpack.c.l.b16 %v499
      %v533 = vunpack.c.l.b16 %v500
      %v534 = vpack.c.b16 %v527, %v526
      %v535 = vpack.c.b16 %v529, %v528
      %v536 = vpack.c.b16 %v531, %v530
      %v537 = vpack.c.b16 %v533, %v532
      %v558 = vunpack.c.l.b16 %v502
      %v559 = vunpack.c.l.b16 %v503
      %v560 = vunpack.c.l.b16 %v504
      %v561 = vunpack.c.l.b16 %v505
      %v562 = vunpack.c.l.b16 %v506
      %v563 = vunpack.c.l.b16 %v507
      %v564 = vunpack.c.l.b16 %v508
      %v565 = vunpack.c.l.b16 %v509
      %v566 = vunpack.c.l.b16 %v510
      %v567 = vunpack.c.l.b16 %v511
      %v568 = vunpack.c.l.b16 %v512
      %v569 = vunpack.c.l.b16 %v513
      %v570 = vunpack.c.l.b16 %v514
      %v571 = vunpack.c.l.b16 %v515
      %v572 = vunpack.c.l.b16 %v516
      %v573 = vunpack.c.l.b16 %v517
      %v574 = vpack.c.b16 %v559, %v558
      %v575 = vpack.c.b16 %v561, %v560
      %v576 = vpack.c.b16 %v563, %v562
      %v577 = vpack.c.b16 %v565, %v564
      %v578 = vpack.c.b16 %v567, %v566
      %v579 = vpack.c.b16 %v569, %v568
      %v580 = vpack.c.b16 %v571, %v570
      %v581 = vpack.c.b16 %v573, %v572
      %590 = vmatprep.subr.bf16.mxu0 0
      %591 = vmatpush1.bf16.msra.mxu0 %v581
      %592 = vmatprep.subr.bf16.mxu0 0
      %593 = vmatpush1.bf16.msra.mxu0 %v580
      %594 = vmatprep.subr.bf16.mxu0 0
      %595 = vmatpush1.bf16.msra.mxu0 %v579
      %596 = vmatprep.subr.bf16.mxu0 0
      %597 = vmatpush1.bf16.msra.mxu0 %v578
      %598 = vmatprep.subr.bf16.mxu0 0
      %599 = vmatpush1.bf16.msra.mxu0 %v577
      %600 = vmatprep.subr.bf16.mxu0 0
      %601 = vmatpush1.bf16.msra.mxu0 %v576
      %602 = vmatprep.subr.bf16.mxu0 0
      %603 = vmatpush1.bf16.msra.mxu0 %v575
      %604 = vmatprep.subr.bf16.mxu0 0
      %605 = vmatpush1.bf16.msra.mxu0 %v574
      %606 = vmatprep.subr.bf16.mxu0 0
      %607 = vmatpush2.bf16.msra.mxu0 0
      %608 = vmatprep.subr.bf16.mxu0 0
      %609 = vmatpush2.bf16.msra.mxu0 0
      %610 = vmatprep.subr.bf16.mxu0 0
      %611 = vmatpush2.bf16.msra.mxu0 0
      %612 = vmatprep.subr.bf16.mxu0 0
      %613 = vmatpush2.bf16.msra.mxu0 0
      %614 = vmatprep.subr.bf16.mxu0 0
      %615 = vmatpush2.bf16.msra.mxu0 0
      %616 = vmatprep.subr.bf16.mxu0 0
      %617 = vmatpush2.bf16.msra.mxu0 0
      %618 = vmatprep.subr.bf16.mxu0 0
      %619 = vmatpush2.bf16.msra.mxu0 0
      %620 = vmatprep.subr.bf16.mxu0 0
      %621 = vmatpush2.bf16.msra.mxu0 0
      %622 = vmatprep.mubr.bf16.mxu0 0
      %623 = vmatmul.mubr.bf16.gmra.mxu0 %v534
      %v624 = vpop.f32.mrf.mxu0
      %v625 = vadd.f32 0.0, %v624
      %v626 = vpop.f32.mrf.mxu0
      %v627 = vpop.f32.mrf.mxu0
      %v628 = vadd.f32 0.0, %v627
      %v629 = vpop.f32.mrf.mxu0
      %630 = vmatprep.mubr.bf16.mxu0 0
      %631 = vmatmul.mubr.bf16.gmra.mxu0 %v535
      %v632 = vpop.f32.mrf.mxu0
      %v633 = vadd.f32 0.0, %v632
      %v634 = vpop.f32.mrf.mxu0
      %v635 = vpop.f32.mrf.mxu0
      %v636 = vadd.f32 0.0, %v635
      %v637 = vpop.f32.mrf.mxu0
      %638 = vmatprep.mubr.bf16.mxu0 0
      %639 = vmatmul.mubr.bf16.gmra.mxu0 %v536
      %v640 = vpop.f32.mrf.mxu0
      %v641 = vadd.f32 0.0, %v640
      %v642 = vpop.f32.mrf.mxu0
      %v643 = vpop.f32.mrf.mxu0
      %v644 = vadd.f32 0.0, %v643
      %v645 = vpop.f32.mrf.mxu0
      %646 = vmatprep.mubr.bf16.mxu0 0
      %647 = vmatmul.mubr.bf16.gmra.mxu0 %v537
      %v648 = vpop.f32.mrf.mxu0
      %v649 = vadd.f32 0.0, %v648
      %v650 = vpop.f32.mrf.mxu0
      %v651 = vpop.f32.mrf.mxu0
      %v652 = vadd.f32 0.0, %v651
      %v653 = vpop.f32.mrf.mxu0
      %654 = vdwg.mxu0
      %v655 = vld [vmem:[#allocation2] sm:$0xff]
      %v656 = vld [vmem:[#allocation2 + $0x8] sm:$0xff]
      %v657 = vld [vmem:[#allocation2 + $0x10] sm:$0xff]
      %v658 = vld [vmem:[#allocation2 + $0x18] sm:$0xff]
      %v659 = vld [vmem:[#allocation2 + $0x20] sm:$0xff]
      %v660 = vld [vmem:[#allocation2 + $0x28] sm:$0xff]
      %v661 = vld [vmem:[#allocation2 + $0x30] sm:$0xff]
      %v662 = vld [vmem:[#allocation2 + $0x38] sm:$0xff]
      %v663 = vadd.f32 %v655, %v625
      %v664 = vadd.f32 %v656, %v628
      %v665 = vadd.f32 %v657, %v633
      %v666 = vadd.f32 %v658, %v636
      %v667 = vadd.f32 %v659, %v641
      %v668 = vadd.f32 %v660, %v644
      %v669 = vadd.f32 %v661, %v649
      %v670 = vadd.f32 %v662, %v652
      %671 = vst [vmem:[#allocation2] sm:$0xff] %v663
      %672 = vst [vmem:[#allocation2 + $0x8] sm:$0xff] %v664
      %673 = vst [vmem:[#allocation2 + $0x10] sm:$0xff] %v665
      %674 = vst [vmem:[#allocation2 + $0x18] sm:$0xff] %v666
      %675 = vst [vmem:[#allocation2 + $0x20] sm:$0xff] %v667
      %676 = vst [vmem:[#allocation2 + $0x28] sm:$0xff] %v668
      %677 = vst [vmem:[#allocation2 + $0x30] sm:$0xff] %v669
      %678 = vst [vmem:[#allocation2 + $0x38] sm:$0xff] %v670
      %v679 = vld [vmem:[%s298] sm:$0xf]
      %v680 = vld [vmem:[%s298 + $0x4] sm:$0x1]
      %v681 = vld [vmem:[%s298 + $0x8] sm:$0xf]
      %v682 = vld [vmem:[%s298 + $0xc] sm:$0x1]
      %v683 = vld [vmem:[%s298 + $0x10] sm:$0xf]
      %v684 = vld [vmem:[%s298 + $0x14] sm:$0x1]
      %v685 = vld [vmem:[%s298 + $0x18] sm:$0xf]
      %v686 = vld [vmem:[%s298 + $0x1c] sm:$0x1]
      %v687 = vld [vmem:[%s298 + $0x20] sm:$0xf]
      %v688 = vld [vmem:[%s298 + $0x24] sm:$0x1]
      %v689 = vld [vmem:[%s298 + $0x28] sm:$0xf]
      %v690 = vld [vmem:[%s298 + $0x2c] sm:$0x1]
      %v691 = vld [vmem:[%s298 + $0x30] sm:$0xf]
      %v692 = vld [vmem:[%s298 + $0x34] sm:$0x1]
      %v693 = vld [vmem:[%s298 + $0x38] sm:$0xf]
      %v694 = vld [vmem:[%s298 + $0x3c] sm:$0x1]
      %vm695 = vsmask.f32 3328
      %vm696 = vsmask.f32 7440
      %vm697 = vmor %vm695, %vm696
      %v699 = vshrl.u32 %v679, 16
      %v701 = vrot.slane %v699, 4
      %v702 = vshll.u32 %v679, 16
      %v704 = vrot.slane %v702, 5
      %v705 = vor.u32 %v701, %v704
      %v706 = vrot.slane %v705, 4
      %v708 = vshll.u32 %v680, 16
      %v710 = vrot.slane %v708, 5
      %v711 = vsel %vm697, %v706, %v710
      %v713 = vshrl.u32 %v681, 16
      %v715 = vrot.slane %v713, 4
      %v716 = vshll.u32 %v681, 16
      %v718 = vrot.slane %v716, 5
      %v719 = vor.u32 %v715, %v718
      %v720 = vrot.slane %v719, 4
      %v722 = vshll.u32 %v682, 16
      %v724 = vrot.slane %v722, 5
      %v725 = vsel %vm697, %v720, %v724
      %v727 = vshrl.u32 %v683, 16
      %v729 = vrot.slane %v727, 4
      %v730 = vshll.u32 %v683, 16
      %v732 = vrot.slane %v730, 5
      %v733 = vor.u32 %v729, %v732
      %v734 = vrot.slane %v733, 4
      %v736 = vshll.u32 %v684, 16
      %v738 = vrot.slane %v736, 5
      %v739 = vsel %vm697, %v734, %v738
      %v741 = vshrl.u32 %v685, 16
      %v743 = vrot.slane %v741, 4
      %v744 = vshll.u32 %v685, 16
      %v746 = vrot.slane %v744, 5
      %v747 = vor.u32 %v743, %v746
      %v748 = vrot.slane %v747, 4
      %v750 = vshll.u32 %v686, 16
      %v752 = vrot.slane %v750, 5
      %v753 = vsel %vm697, %v748, %v752
      %v755 = vshrl.u32 %v687, 16
      %v757 = vrot.slane %v755, 4
      %v758 = vshll.u32 %v687, 16
      %v760 = vrot.slane %v758, 5
      %v761 = vor.u32 %v757, %v760
      %v762 = vrot.slane %v761, 4
      %v764 = vshll.u32 %v688, 16
      %v766 = vrot.slane %v764, 5
      %v767 = vsel %vm697, %v762, %v766
      %v769 = vshrl.u32 %v689, 16
      %v771 = vrot.slane %v769, 4
      %v772 = vshll.u32 %v689, 16
      %v774 = vrot.slane %v772, 5
      %v775 = vor.u32 %v771, %v774
      %v776 = vrot.slane %v775, 4
      %v778 = vshll.u32 %v690, 16
      %v780 = vrot.slane %v778, 5
      %v781 = vsel %vm697, %v776, %v780
      %v783 = vshrl.u32 %v691, 16
      %v785 = vrot.slane %v783, 4
      %v786 = vshll.u32 %v691, 16
      %v788 = vrot.slane %v786, 5
      %v789 = vor.u32 %v785, %v788
      %v790 = vrot.slane %v789, 4
      %v792 = vshll.u32 %v692, 16
      %v794 = vrot.slane %v792, 5
      %v795 = vsel %vm697, %v790, %v794
      %v797 = vshrl.u32 %v693, 16
      %v799 = vrot.slane %v797, 4
      %v800 = vshll.u32 %v693, 16
      %v802 = vrot.slane %v800, 5
      %v803 = vor.u32 %v799, %v802
      %v804 = vrot.slane %v803, 4
      %v806 = vshll.u32 %v694, 16
      %v808 = vrot.slane %v806, 5
      %v809 = vsel %vm697, %v804, %v808
      %s810 = scalar_lea.vmem %s4, 128
      %v811 = vld [vmem:[%s810] sm:$0xf]
      %v812 = vld [vmem:[%s810 + $0x4] sm:$0xf]
      %v813 = vld [vmem:[%s810 + $0x8] sm:$0xf]
      %v814 = vld [vmem:[%s810 + $0xc] sm:$0xf]
      %v815 = vld [vmem:[%s810 + $0x10] sm:$0xf]
      %v816 = vld [vmem:[%s810 + $0x14] sm:$0xf]
      %v817 = vld [vmem:[%s810 + $0x18] sm:$0xf]
      %v818 = vld [vmem:[%s810 + $0x1c] sm:$0xf]
      %v819 = vld [vmem:[%s810 + $0x20] sm:$0xf]
      %v820 = vld [vmem:[%s810 + $0x24] sm:$0xf]
      %v821 = vld [vmem:[%s810 + $0x28] sm:$0xf]
      %v822 = vld [vmem:[%s810 + $0x2c] sm:$0xf]
      %v823 = vld [vmem:[%s810 + $0x30] sm:$0xf]
      %v824 = vld [vmem:[%s810 + $0x34] sm:$0xf]
      %v825 = vld [vmem:[%s810 + $0x38] sm:$0xf]
      %v826 = vld [vmem:[%s810 + $0x3c] sm:$0xf]
      %v827 = vunpack.c.l.b16 %v711
      %v828 = vunpack.c.l.b16 %v725
      %v829 = vunpack.c.l.b16 %v739
      %v830 = vunpack.c.l.b16 %v753
      %v831 = vunpack.c.l.b16 %v767
      %v832 = vunpack.c.l.b16 %v781
      %v833 = vunpack.c.l.b16 %v795
      %v834 = vunpack.c.l.b16 %v809
      %v835 = vpack.c.b16 %v828, %v827
      %v836 = vpack.c.b16 %v830, %v829
      %v837 = vpack.c.b16 %v832, %v831
      %v838 = vpack.c.b16 %v834, %v833
      %v859 = vunpack.c.l.b16 %v811
      %v860 = vunpack.c.l.b16 %v812
      %v861 = vunpack.c.l.b16 %v813
      %v862 = vunpack.c.l.b16 %v814
      %v863 = vunpack.c.l.b16 %v815
      %v864 = vunpack.c.l.b16 %v816
      %v865 = vunpack.c.l.b16 %v817
      %v866 = vunpack.c.l.b16 %v818
      %v867 = vunpack.c.l.b16 %v819
      %v868 = vunpack.c.l.b16 %v820
      %v869 = vunpack.c.l.b16 %v821
      %v870 = vunpack.c.l.b16 %v822
      %v871 = vunpack.c.l.b16 %v823
      %v872 = vunpack.c.l.b16 %v824
      %v873 = vunpack.c.l.b16 %v825
      %v874 = vunpack.c.l.b16 %v826
      %v875 = vpack.c.b16 %v860, %v859
      %v876 = vpack.c.b16 %v862, %v861
      %v877 = vpack.c.b16 %v864, %v863
      %v878 = vpack.c.b16 %v866, %v865
      %v879 = vpack.c.b16 %v868, %v867
      %v880 = vpack.c.b16 %v870, %v869
      %v881 = vpack.c.b16 %v872, %v871
      %v882 = vpack.c.b16 %v874, %v873
      %891 = vmatprep.subr.bf16.mxu0 0
      %892 = vmatpush1.bf16.msra.mxu0 %v882
      %893 = vmatprep.subr.bf16.mxu0 0
      %894 = vmatpush1.bf16.msra.mxu0 %v881
      %895 = vmatprep.subr.bf16.mxu0 0
      %896 = vmatpush1.bf16.msra.mxu0 %v880
      %897 = vmatprep.subr.bf16.mxu0 0
      %898 = vmatpush1.bf16.msra.mxu0 %v879
      %899 = vmatprep.subr.bf16.mxu0 0
      %900 = vmatpush1.bf16.msra.mxu0 %v878
      %901 = vmatprep.subr.bf16.mxu0 0
      %902 = vmatpush1.bf16.msra.mxu0 %v877
      %903 = vmatprep.subr.bf16.mxu0 0
      %904 = vmatpush1.bf16.msra.mxu0 %v876
      %905 = vmatprep.subr.bf16.mxu0 0
      %906 = vmatpush1.bf16.msra.mxu0 %v875
      %907 = vmatprep.subr.bf16.mxu0 0
      %908 = vmatpush2.bf16.msra.mxu0 0
      %909 = vmatprep.subr.bf16.mxu0 0
      %910 = vmatpush2.bf16.msra.mxu0 0
      %911 = vmatprep.subr.bf16.mxu0 0
      %912 = vmatpush2.bf16.msra.mxu0 0
      %913 = vmatprep.subr.bf16.mxu0 0
      %914 = vmatpush2.bf16.msra.mxu0 0
      %915 = vmatprep.subr.bf16.mxu0 0
      %916 = vmatpush2.bf16.msra.mxu0 0
      %917 = vmatprep.subr.bf16.mxu0 0
      %918 = vmatpush2.bf16.msra.mxu0 0
      %919 = vmatprep.subr.bf16.mxu0 0
      %920 = vmatpush2.bf16.msra.mxu0 0
      %921 = vmatprep.subr.bf16.mxu0 0
      %922 = vmatpush2.bf16.msra.mxu0 0
      %923 = vmatprep.mubr.bf16.mxu0 0
      %924 = vmatmul.mubr.bf16.gmra.mxu0 %v835
      %v925 = vpop.f32.mrf.mxu0
      %v926 = vadd.f32 0.0, %v925
      %v927 = vpop.f32.mrf.mxu0
      %v928 = vpop.f32.mrf.mxu0
      %v929 = vadd.f32 0.0, %v928
      %v930 = vpop.f32.mrf.mxu0
      %931 = vmatprep.mubr.bf16.mxu0 0
      %932 = vmatmul.mubr.bf16.gmra.mxu0 %v836
      %v933 = vpop.f32.mrf.mxu0
      %v934 = vadd.f32 0.0, %v933
      %v935 = vpop.f32.mrf.mxu0
      %v936 = vpop.f32.mrf.mxu0
      %v937 = vadd.f32 0.0, %v936
      %v938 = vpop.f32.mrf.mxu0
      %939 = vmatprep.mubr.bf16.mxu0 0
      %940 = vmatmul.mubr.bf16.gmra.mxu0 %v837
      %v941 = vpop.f32.mrf.mxu0
      %v942 = vadd.f32 0.0, %v941
      %v943 = vpop.f32.mrf.mxu0
      %v944 = vpop.f32.mrf.mxu0
      %v945 = vadd.f32 0.0, %v944
      %v946 = vpop.f32.mrf.mxu0
      %947 = vmatprep.mubr.bf16.mxu0 0
      %948 = vmatmul.mubr.bf16.gmra.mxu0 %v838
      %v949 = vpop.f32.mrf.mxu0
      %v950 = vadd.f32 0.0, %v949
      %v951 = vpop.f32.mrf.mxu0
      %v952 = vpop.f32.mrf.mxu0
      %v953 = vadd.f32 0.0, %v952
      %v954 = vpop.f32.mrf.mxu0
      %955 = vdwg.mxu0
      %v956 = vld [vmem:[#allocation2] sm:$0xff]
      %v957 = vld [vmem:[#allocation2 + $0x8] sm:$0xff]
      %v958 = vld [vmem:[#allocation2 + $0x10] sm:$0xff]
      %v959 = vld [vmem:[#allocation2 + $0x18] sm:$0xff]
      %v960 = vld [vmem:[#allocation2 + $0x20] sm:$0xff]
      %v961 = vld [vmem:[#allocation2 + $0x28] sm:$0xff]
      %v962 = vld [vmem:[#allocation2 + $0x30] sm:$0xff]
      %v963 = vld [vmem:[#allocation2 + $0x38] sm:$0xff]
      %v964 = vadd.f32 %v956, %v926
      %v965 = vadd.f32 %v957, %v929
      %v966 = vadd.f32 %v958, %v934
      %v967 = vadd.f32 %v959, %v937
      %v968 = vadd.f32 %v960, %v942
      %v969 = vadd.f32 %v961, %v945
      %v970 = vadd.f32 %v962, %v950
      %v971 = vadd.f32 %v963, %v953
      %972 = vst [vmem:[#allocation2] sm:$0xff] %v964
      %973 = vst [vmem:[#allocation2 + $0x8] sm:$0xff] %v965
      %974 = vst [vmem:[#allocation2 + $0x10] sm:$0xff] %v966
      %975 = vst [vmem:[#allocation2 + $0x18] sm:$0xff] %v967
      %976 = vst [vmem:[#allocation2 + $0x20] sm:$0xff] %v968
      %977 = vst [vmem:[#allocation2 + $0x28] sm:$0xff] %v969
      %978 = vst [vmem:[#allocation2 + $0x30] sm:$0xff] %v970
      %979 = vst [vmem:[#allocation2 + $0x38] sm:$0xff] %v971
      %v980 = vld [vmem:[%s308] sm:$0xf]
      %v981 = vld [vmem:[%s308 + $0x8] sm:$0xf]
      %v982 = vld [vmem:[%s308 + $0x10] sm:$0xf]
      %v983 = vld [vmem:[%s308 + $0x18] sm:$0xf]
      %v984 = vld [vmem:[%s308 + $0x20] sm:$0xf]
      %v985 = vld [vmem:[%s308 + $0x28] sm:$0xf]
      %v986 = vld [vmem:[%s308 + $0x30] sm:$0xf]
      %v987 = vld [vmem:[%s308 + $0x38] sm:$0xf]
      %s988 = scalar_lea.vmem %s4, 192
      %v989 = vld [vmem:[%s988] sm:$0xf]
      %v990 = vld [vmem:[%s988 + $0x4] sm:$0xf]
      %v991 = vld [vmem:[%s988 + $0x8] sm:$0xf]
      %v992 = vld [vmem:[%s988 + $0xc] sm:$0xf]
      %v993 = vld [vmem:[%s988 + $0x10] sm:$0xf]
      %v994 = vld [vmem:[%s988 + $0x14] sm:$0xf]
      %v995 = vld [vmem:[%s988 + $0x18] sm:$0xf]
      %v996 = vld [vmem:[%s988 + $0x1c] sm:$0xf]
      %v997 = vld [vmem:[%s988 + $0x20] sm:$0xf]
      %v998 = vld [vmem:[%s988 + $0x24] sm:$0xf]
      %v999 = vld [vmem:[%s988 + $0x28] sm:$0xf]
      %v1000 = vld [vmem:[%s988 + $0x2c] sm:$0xf]
      %v1001 = vld [vmem:[%s988 + $0x30] sm:$0xf]
      %v1002 = vld [vmem:[%s988 + $0x34] sm:$0xf]
      %v1003 = vld [vmem:[%s988 + $0x38] sm:$0xf]
      %v1004 = vld [vmem:[%s988 + $0x3c] sm:$0xf]
      %v1013 = vunpack.c.l.b16 %v980
      %v1014 = vunpack.c.l.b16 %v981
      %v1015 = vunpack.c.l.b16 %v982
      %v1016 = vunpack.c.l.b16 %v983
      %v1017 = vunpack.c.l.b16 %v984
      %v1018 = vunpack.c.l.b16 %v985
      %v1019 = vunpack.c.l.b16 %v986
      %v1020 = vunpack.c.l.b16 %v987
      %v1021 = vpack.c.b16 %v1014, %v1013
      %v1022 = vpack.c.b16 %v1016, %v1015
      %v1023 = vpack.c.b16 %v1018, %v1017
      %v1024 = vpack.c.b16 %v1020, %v1019
      %v1045 = vunpack.c.l.b16 %v989
      %v1046 = vunpack.c.l.b16 %v990
      %v1047 = vunpack.c.l.b16 %v991
      %v1048 = vunpack.c.l.b16 %v992
      %v1049 = vunpack.c.l.b16 %v993
      %v1050 = vunpack.c.l.b16 %v994
      %v1051 = vunpack.c.l.b16 %v995
      %v1052 = vunpack.c.l.b16 %v996
      %v1053 = vunpack.c.l.b16 %v997
      %v1054 = vunpack.c.l.b16 %v998
      %v1055 = vunpack.c.l.b16 %v999
      %v1056 = vunpack.c.l.b16 %v1000
      %v1057 = vunpack.c.l.b16 %v1001
      %v1058 = vunpack.c.l.b16 %v1002
      %v1059 = vunpack.c.l.b16 %v1003
      %v1060 = vunpack.c.l.b16 %v1004
      %v1061 = vpack.c.b16 %v1046, %v1045
      %v1062 = vpack.c.b16 %v1048, %v1047
      %v1063 = vpack.c.b16 %v1050, %v1049
      %v1064 = vpack.c.b16 %v1052, %v1051
      %v1065 = vpack.c.b16 %v1054, %v1053
      %v1066 = vpack.c.b16 %v1056, %v1055
      %v1067 = vpack.c.b16 %v1058, %v1057
      %v1068 = vpack.c.b16 %v1060, %v1059
      %1077 = vmatprep.subr.bf16.mxu0 0
      %1078 = vmatpush1.bf16.msra.mxu0 %v1068
      %1079 = vmatprep.subr.bf16.mxu0 0
      %1080 = vmatpush1.bf16.msra.mxu0 %v1067
      %1081 = vmatprep.subr.bf16.mxu0 0
      %1082 = vmatpush1.bf16.msra.mxu0 %v1066
      %1083 = vmatprep.subr.bf16.mxu0 0
      %1084 = vmatpush1.bf16.msra.mxu0 %v1065
      %1085 = vmatprep.subr.bf16.mxu0 0
      %1086 = vmatpush1.bf16.msra.mxu0 %v1064
      %1087 = vmatprep.subr.bf16.mxu0 0
      %1088 = vmatpush1.bf16.msra.mxu0 %v1063
      %1089 = vmatprep.subr.bf16.mxu0 0
      %1090 = vmatpush1.bf16.msra.mxu0 %v1062
      %1091 = vmatprep.subr.bf16.mxu0 0
      %1092 = vmatpush1.bf16.msra.mxu0 %v1061
      %1093 = vmatprep.subr.bf16.mxu0 0
      %1094 = vmatpush2.bf16.msra.mxu0 0
      %1095 = vmatprep.subr.bf16.mxu0 0
      %1096 = vmatpush2.bf16.msra.mxu0 0
      %1097 = vmatprep.subr.bf16.mxu0 0
      %1098 = vmatpush2.bf16.msra.mxu0 0
      %1099 = vmatprep.subr.bf16.mxu0 0
      %1100 = vmatpush2.bf16.msra.mxu0 0
      %1101 = vmatprep.subr.bf16.mxu0 0
      %1102 = vmatpush2.bf16.msra.mxu0 0
      %1103 = vmatprep.subr.bf16.mxu0 0
      %1104 = vmatpush2.bf16.msra.mxu0 0
      %1105 = vmatprep.subr.bf16.mxu0 0
      %1106 = vmatpush2.bf16.msra.mxu0 0
      %1107 = vmatprep.subr.bf16.mxu0 0
      %1108 = vmatpush2.bf16.msra.mxu0 0
      %1109 = vmatprep.mubr.bf16.mxu0 0
      %1110 = vmatmul.mubr.bf16.gmra.mxu0 %v1021
      %v1111 = vpop.f32.mrf.mxu0
      %v1112 = vadd.f32 0.0, %v1111
      %v1113 = vpop.f32.mrf.mxu0
      %v1114 = vpop.f32.mrf.mxu0
      %v1115 = vadd.f32 0.0, %v1114
      %v1116 = vpop.f32.mrf.mxu0
      %1117 = vmatprep.mubr.bf16.mxu0 0
      %1118 = vmatmul.mubr.bf16.gmra.mxu0 %v1022
      %v1119 = vpop.f32.mrf.mxu0
      %v1120 = vadd.f32 0.0, %v1119
      %v1121 = vpop.f32.mrf.mxu0
      %v1122 = vpop.f32.mrf.mxu0
      %v1123 = vadd.f32 0.0, %v1122
      %v1124 = vpop.f32.mrf.mxu0
      %1125 = vmatprep.mubr.bf16.mxu0 0
      %1126 = vmatmul.mubr.bf16.gmra.mxu0 %v1023
      %v1127 = vpop.f32.mrf.mxu0
      %v1128 = vadd.f32 0.0, %v1127
      %v1129 = vpop.f32.mrf.mxu0
      %v1130 = vpop.f32.mrf.mxu0
      %v1131 = vadd.f32 0.0, %v1130
      %v1132 = vpop.f32.mrf.mxu0
      %1133 = vmatprep.mubr.bf16.mxu0 0
      %1134 = vmatmul.mubr.bf16.gmra.mxu0 %v1024
      %v1135 = vpop.f32.mrf.mxu0
      %v1136 = vadd.f32 0.0, %v1135
      %v1137 = vpop.f32.mrf.mxu0
      %v1138 = vpop.f32.mrf.mxu0
      %v1139 = vadd.f32 0.0, %v1138
      %v1140 = vpop.f32.mrf.mxu0
      %1141 = vdwg.mxu0
      %v1142 = vld [vmem:[#allocation2] sm:$0xff]
      %v1143 = vld [vmem:[#allocation2 + $0x8] sm:$0xff]
      %v1144 = vld [vmem:[#allocation2 + $0x10] sm:$0xff]
      %v1145 = vld [vmem:[#allocation2 + $0x18] sm:$0xff]
      %v1146 = vld [vmem:[#allocation2 + $0x20] sm:$0xff]
      %v1147 = vld [vmem:[#allocation2 + $0x28] sm:$0xff]
      %v1148 = vld [vmem:[#allocation2 + $0x30] sm:$0xff]
      %v1149 = vld [vmem:[#allocation2 + $0x38] sm:$0xff]
      %v1150 = vadd.f32 %v1142, %v1112
      %v1151 = vadd.f32 %v1143, %v1115
      %v1152 = vadd.f32 %v1144, %v1120
      %v1153 = vadd.f32 %v1145, %v1123
      %v1154 = vadd.f32 %v1146, %v1128
      %v1155 = vadd.f32 %v1147, %v1131
      %v1156 = vadd.f32 %v1148, %v1136
      %v1157 = vadd.f32 %v1149, %v1139
      %1158 = vst [vmem:[#allocation2] sm:$0xff] %v1150
      %1159 = vst [vmem:[#allocation2 + $0x8] sm:$0xff] %v1151
      %1160 = vst [vmem:[#allocation2 + $0x10] sm:$0xff] %v1152
      %1161 = vst [vmem:[#allocation2 + $0x18] sm:$0xff] %v1153
      %1162 = vst [vmem:[#allocation2 + $0x20] sm:$0xff] %v1154
      %1163 = vst [vmem:[#allocation2 + $0x28] sm:$0xff] %v1155
      %1164 = vst [vmem:[#allocation2 + $0x30] sm:$0xff] %v1156
      %1165 = vst [vmem:[#allocation2 + $0x38] sm:$0xff] %v1157
      %v1166 = vld [vmem:[%s313] sm:$0xf]
      %v1167 = vld [vmem:[%s313 + $0x8] sm:$0xf]
      %v1168 = vld [vmem:[%s313 + $0x10] sm:$0xf]
      %v1169 = vld [vmem:[%s313 + $0x18] sm:$0xf]
      %v1170 = vld [vmem:[%s313 + $0x20] sm:$0xf]
      %v1171 = vld [vmem:[%s313 + $0x28] sm:$0xf]
      %v1172 = vld [vmem:[%s313 + $0x30] sm:$0xf]
      %v1173 = vld [vmem:[%s313 + $0x38] sm:$0xf]
      %s1174 = scalar_lea.vmem %s4, 256
      %v1175 = vld [vmem:[%s1174] sm:$0xf]
      %v1176 = vld [vmem:[%s1174 + $0x4] sm:$0xf]
      %v1177 = vld [vmem:[%s1174 + $0x8] sm:$0xf]
      %v1178 = vld [vmem:[%s1174 + $0xc] sm:$0xf]
      %v1179 = vld [vmem:[%s1174 + $0x10] sm:$0xf]
      %v1180 = vld [vmem:[%s1174 + $0x14] sm:$0xf]
      %v1181 = vld [vmem:[%s1174 + $0x18] sm:$0xf]
      %v1182 = vld [vmem:[%s1174 + $0x1c] sm:$0xf]
      %v1183 = vld [vmem:[%s1174 + $0x20] sm:$0xf]
      %v1184 = vld [vmem:[%s1174 + $0x24] sm:$0xf]
      %v1185 = vld [vmem:[%s1174 + $0x28] sm:$0xf]
      %v1186 = vld [vmem:[%s1174 + $0x2c] sm:$0xf]
      %v1187 = vld [vmem:[%s1174 + $0x30] sm:$0xf]
      %v1188 = vld [vmem:[%s1174 + $0x34] sm:$0xf]
      %v1189 = vld [vmem:[%s1174 + $0x38] sm:$0xf]
      %v1190 = vld [vmem:[%s1174 + $0x3c] sm:$0xf]
      %v1199 = vunpack.c.l.b16 %v1166
      %v1200 = vunpack.c.l.b16 %v1167
      %v1201 = vunpack.c.l.b16 %v1168
      %v1202 = vunpack.c.l.b16 %v1169
      %v1203 = vunpack.c.l.b16 %v1170
      %v1204 = vunpack.c.l.b16 %v1171
      %v1205 = vunpack.c.l.b16 %v1172
      %v1206 = vunpack.c.l.b16 %v1173
      %v1207 = vpack.c.b16 %v1200, %v1199
      %v1208 = vpack.c.b16 %v1202, %v1201
      %v1209 = vpack.c.b16 %v1204, %v1203
      %v1210 = vpack.c.b16 %v1206, %v1205
      %v1231 = vunpack.c.l.b16 %v1175
      %v1232 = vunpack.c.l.b16 %v1176
      %v1233 = vunpack.c.l.b16 %v1177
      %v1234 = vunpack.c.l.b16 %v1178
      %v1235 = vunpack.c.l.b16 %v1179
      %v1236 = vunpack.c.l.b16 %v1180
      %v1237 = vunpack.c.l.b16 %v1181
      %v1238 = vunpack.c.l.b16 %v1182
      %v1239 = vunpack.c.l.b16 %v1183
      %v1240 = vunpack.c.l.b16 %v1184
      %v1241 = vunpack.c.l.b16 %v1185
      %v1242 = vunpack.c.l.b16 %v1186
      %v1243 = vunpack.c.l.b16 %v1187
      %v1244 = vunpack.c.l.b16 %v1188
      %v1245 = vunpack.c.l.b16 %v1189
      %v1246 = vunpack.c.l.b16 %v1190
      %v1247 = vpack.c.b16 %v1232, %v1231
      %v1248 = vpack.c.b16 %v1234, %v1233
      %v1249 = vpack.c.b16 %v1236, %v1235
      %v1250 = vpack.c.b16 %v1238, %v1237
      %v1251 = vpack.c.b16 %v1240, %v1239
      %v1252 = vpack.c.b16 %v1242, %v1241
      %v1253 = vpack.c.b16 %v1244, %v1243
      %v1254 = vpack.c.b16 %v1246, %v1245
      %1263 = vmatprep.subr.bf16.mxu0 0
      %1264 = vmatpush1.bf16.msra.mxu0 %v1254
      %1265 = vmatprep.subr.bf16.mxu0 0
      %1266 = vmatpush1.bf16.msra.mxu0 %v1253
      %1267 = vmatprep.subr.bf16.mxu0 0
      %1268 = vmatpush1.bf16.msra.mxu0 %v1252
      %1269 = vmatprep.subr.bf16.mxu0 0
      %1270 = vmatpush1.bf16.msra.mxu0 %v1251
      %1271 = vmatprep.subr.bf16.mxu0 0
      %1272 = vmatpush1.bf16.msra.mxu0 %v1250
      %1273 = vmatprep.subr.bf16.mxu0 0
      %1274 = vmatpush1.bf16.msra.mxu0 %v1249
      %1275 = vmatprep.subr.bf16.mxu0 0
      %1276 = vmatpush1.bf16.msra.mxu0 %v1248
      %1277 = vmatprep.subr.bf16.mxu0 0
      %1278 = vmatpush1.bf16.msra.mxu0 %v1247
      %1279 = vmatprep.subr.bf16.mxu0 0
      %1280 = vmatpush2.bf16.msra.mxu0 0
      %1281 = vmatprep.subr.bf16.mxu0 0
      %1282 = vmatpush2.bf16.msra.mxu0 0
      %1283 = vmatprep.subr.bf16.mxu0 0
      %1284 = vmatpush2.bf16.msra.mxu0 0
      %1285 = vmatprep.subr.bf16.mxu0 0
      %1286 = vmatpush2.bf16.msra.mxu0 0
      %1287 = vmatprep.subr.bf16.mxu0 0
      %1288 = vmatpush2.bf16.msra.mxu0 0
      %1289 = vmatprep.subr.bf16.mxu0 0
      %1290 = vmatpush2.bf16.msra.mxu0 0
      %1291 = vmatprep.subr.bf16.mxu0 0
      %1292 = vmatpush2.bf16.msra.mxu0 0
      %1293 = vmatprep.subr.bf16.mxu0 0
      %1294 = vmatpush2.bf16.msra.mxu0 0
      %1295 = vmatprep.mubr.bf16.mxu0 0
      %1296 = vmatmul.mubr.bf16.gmra.mxu0 %v1207
      %v1297 = vpop.f32.mrf.mxu0
      %v1298 = vadd.f32 0.0, %v1297
      %v1299 = vpop.f32.mrf.mxu0
      %v1300 = vpop.f32.mrf.mxu0
      %v1301 = vadd.f32 0.0, %v1300
      %v1302 = vpop.f32.mrf.mxu0
      %1303 = vmatprep.mubr.bf16.mxu0 0
      %1304 = vmatmul.mubr.bf16.gmra.mxu0 %v1208
      %v1305 = vpop.f32.mrf.mxu0
      %v1306 = vadd.f32 0.0, %v1305
      %v1307 = vpop.f32.mrf.mxu0
      %v1308 = vpop.f32.mrf.mxu0
      %v1309 = vadd.f32 0.0, %v1308
      %v1310 = vpop.f32.mrf.mxu0
      %1311 = vmatprep.mubr.bf16.mxu0 0
      %1312 = vmatmul.mubr.bf16.gmra.mxu0 %v1209
      %v1313 = vpop.f32.mrf.mxu0
      %v1314 = vadd.f32 0.0, %v1313
      %v1315 = vpop.f32.mrf.mxu0
      %v1316 = vpop.f32.mrf.mxu0
      %v1317 = vadd.f32 0.0, %v1316
      %v1318 = vpop.f32.mrf.mxu0
      %1319 = vmatprep.mubr.bf16.mxu0 0
      %1320 = vmatmul.mubr.bf16.gmra.mxu0 %v1210
      %v1321 = vpop.f32.mrf.mxu0
      %v1322 = vadd.f32 0.0, %v1321
      %v1323 = vpop.f32.mrf.mxu0
      %v1324 = vpop.f32.mrf.mxu0
      %v1325 = vadd.f32 0.0, %v1324
      %v1326 = vpop.f32.mrf.mxu0
      %1327 = vdwg.mxu0
      %v1328 = vld [vmem:[#allocation2] sm:$0xff]
      %v1329 = vld [vmem:[#allocation2 + $0x8] sm:$0xff]
      %v1330 = vld [vmem:[#allocation2 + $0x10] sm:$0xff]
      %v1331 = vld [vmem:[#allocation2 + $0x18] sm:$0xff]
      %v1332 = vld [vmem:[#allocation2 + $0x20] sm:$0xff]
      %v1333 = vld [vmem:[#allocation2 + $0x28] sm:$0xff]
      %v1334 = vld [vmem:[#allocation2 + $0x30] sm:$0xff]
      %v1335 = vld [vmem:[#allocation2 + $0x38] sm:$0xff]
      %v1336 = vadd.f32 %v1328, %v1298
      %v1337 = vadd.f32 %v1329, %v1301
      %v1338 = vadd.f32 %v1330, %v1306
      %v1339 = vadd.f32 %v1331, %v1309
      %v1340 = vadd.f32 %v1332, %v1314
      %v1341 = vadd.f32 %v1333, %v1317
      %v1342 = vadd.f32 %v1334, %v1322
      %v1343 = vadd.f32 %v1335, %v1325
      %1344 = vst [vmem:[#allocation2] sm:$0xff] %v1336
      %1345 = vst [vmem:[#allocation2 + $0x8] sm:$0xff] %v1337
      %1346 = vst [vmem:[#allocation2 + $0x10] sm:$0xff] %v1338
      %1347 = vst [vmem:[#allocation2 + $0x18] sm:$0xff] %v1339
      %1348 = vst [vmem:[#allocation2 + $0x20] sm:$0xff] %v1340
      %1349 = vst [vmem:[#allocation2 + $0x28] sm:$0xff] %v1341
      %1350 = vst [vmem:[#allocation2 + $0x30] sm:$0xff] %v1342
      %1351 = vst [vmem:[#allocation2 + $0x38] sm:$0xff] %v1343
      %v1352 = vld [vmem:[%s308] sm:$0xf]
      %v1353 = vld [vmem:[%s308 + $0x4] sm:$0x1]
      %v1354 = vld [vmem:[%s308 + $0x8] sm:$0xf]
      %v1355 = vld [vmem:[%s308 + $0xc] sm:$0x1]
      %v1356 = vld [vmem:[%s308 + $0x10] sm:$0xf]
      %v1357 = vld [vmem:[%s308 + $0x14] sm:$0x1]
      %v1358 = vld [vmem:[%s308 + $0x18] sm:$0xf]
      %v1359 = vld [vmem:[%s308 + $0x1c] sm:$0x1]
      %v1360 = vld [vmem:[%s308 + $0x20] sm:$0xf]
      %v1361 = vld [vmem:[%s308 + $0x24] sm:$0x1]
      %v1362 = vld [vmem:[%s308 + $0x28] sm:$0xf]
      %v1363 = vld [vmem:[%s308 + $0x2c] sm:$0x1]
      %v1364 = vld [vmem:[%s308 + $0x30] sm:$0xf]
      %v1365 = vld [vmem:[%s308 + $0x34] sm:$0x1]
      %v1366 = vld [vmem:[%s308 + $0x38] sm:$0xf]
      %v1367 = vld [vmem:[%s308 + $0x3c] sm:$0x1]
      %v1369 = vshrl.u32 %v1352, 16
      %v1371 = vrot.slane %v1369, 4
      %v1372 = vshll.u32 %v1352, 16
      %v1374 = vrot.slane %v1372, 5
      %v1375 = vor.u32 %v1371, %v1374
      %v1376 = vrot.slane %v1375, 4
      %v1378 = vshll.u32 %v1353, 16
      %v1380 = vrot.slane %v1378, 5
      %v1381 = vsel %vm697, %v1376, %v1380
      %v1383 = vshrl.u32 %v1354, 16
      %v1385 = vrot.slane %v1383, 4
      %v1386 = vshll.u32 %v1354, 16
      %v1388 = vrot.slane %v1386, 5
      %v1389 = vor.u32 %v1385, %v1388
      %v1390 = vrot.slane %v1389, 4
      %v1392 = vshll.u32 %v1355, 16
      %v1394 = vrot.slane %v1392, 5
      %v1395 = vsel %vm697, %v1390, %v1394
      %v1397 = vshrl.u32 %v1356, 16
      %v1399 = vrot.slane %v1397, 4
      %v1400 = vshll.u32 %v1356, 16
      %v1402 = vrot.slane %v1400, 5
      %v1403 = vor.u32 %v1399, %v1402
      %v1404 = vrot.slane %v1403, 4
      %v1406 = vshll.u32 %v1357, 16
      %v1408 = vrot.slane %v1406, 5
      %v1409 = vsel %vm697, %v1404, %v1408
      %v1411 = vshrl.u32 %v1358, 16
      %v1413 = vrot.slane %v1411, 4
      %v1414 = vshll.u32 %v1358, 16
      %v1416 = vrot.slane %v1414, 5
      %v1417 = vor.u32 %v1413, %v1416
      %v1418 = vrot.slane %v1417, 4
      %v1420 = vshll.u32 %v1359, 16
      %v1422 = vrot.slane %v1420, 5
      %v1423 = vsel %vm697, %v1418, %v1422
      %v1425 = vshrl.u32 %v1360, 16
      %v1427 = vrot.slane %v1425, 4
      %v1428 = vshll.u32 %v1360, 16
      %v1430 = vrot.slane %v1428, 5
      %v1431 = vor.u32 %v1427, %v1430
      %v1432 = vrot.slane %v1431, 4
      %v1434 = vshll.u32 %v1361, 16
      %v1436 = vrot.slane %v1434, 5
      %v1437 = vsel %vm697, %v1432, %v1436
      %v1439 = vshrl.u32 %v1362, 16
      %v1441 = vrot.slane %v1439, 4
      %v1442 = vshll.u32 %v1362, 16
      %v1444 = vrot.slane %v1442, 5
      %v1445 = vor.u32 %v1441, %v1444
      %v1446 = vrot.slane %v1445, 4
      %v1448 = vshll.u32 %v1363, 16
      %v1450 = vrot.slane %v1448, 5
      %v1451 = vsel %vm697, %v1446, %v1450
      %v1453 = vshrl.u32 %v1364, 16
      %v1455 = vrot.slane %v1453, 4
      %v1456 = vshll.u32 %v1364, 16
      %v1458 = vrot.slane %v1456, 5
      %v1459 = vor.u32 %v1455, %v1458
      %v1460 = vrot.slane %v1459, 4
      %v1462 = vshll.u32 %v1365, 16
      %v1464 = vrot.slane %v1462, 5
      %v1465 = vsel %vm697, %v1460, %v1464
      %v1467 = vshrl.u32 %v1366, 16
      %v1469 = vrot.slane %v1467, 4
      %v1470 = vshll.u32 %v1366, 16
      %v1472 = vrot.slane %v1470, 5
      %v1473 = vor.u32 %v1469, %v1472
      %v1474 = vrot.slane %v1473, 4
      %v1476 = vshll.u32 %v1367, 16
      %v1478 = vrot.slane %v1476, 5
      %v1479 = vsel %vm697, %v1474, %v1478
      %s1480 = scalar_lea.vmem %s4, 320
      %v1481 = vld [vmem:[%s1480] sm:$0xf]
      %v1482 = vld [vmem:[%s1480 + $0x4] sm:$0xf]
      %v1483 = vld [vmem:[%s1480 + $0x8] sm:$0xf]
      %v1484 = vld [vmem:[%s1480 + $0xc] sm:$0xf]
      %v1485 = vld [vmem:[%s1480 + $0x10] sm:$0xf]
      %v1486 = vld [vmem:[%s1480 + $0x14] sm:$0xf]
      %v1487 = vld [vmem:[%s1480 + $0x18] sm:$0xf]
      %v1488 = vld [vmem:[%s1480 + $0x1c] sm:$0xf]
      %v1489 = vld [vmem:[%s1480 + $0x20] sm:$0xf]
      %v1490 = vld [vmem:[%s1480 + $0x24] sm:$0xf]
      %v1491 = vld [vmem:[%s1480 + $0x28] sm:$0xf]
      %v1492 = vld [vmem:[%s1480 + $0x2c] sm:$0xf]
      %v1493 = vld [vmem:[%s1480 + $0x30] sm:$0xf]
      %v1494 = vld [vmem:[%s1480 + $0x34] sm:$0xf]
      %v1495 = vld [vmem:[%s1480 + $0x38] sm:$0xf]
      %v1496 = vld [vmem:[%s1480 + $0x3c] sm:$0xf]
      %v1497 = vunpack.c.l.b16 %v1381
      %v1498 = vunpack.c.l.b16 %v1395
      %v1499 = vunpack.c.l.b16 %v1409
      %v1500 = vunpack.c.l.b16 %v1423
      %v1501 = vunpack.c.l.b16 %v1437
      %v1502 = vunpack.c.l.b16 %v1451
      %v1503 = vunpack.c.l.b16 %v1465
      %v1504 = vunpack.c.l.b16 %v1479
      %v1505 = vpack.c.b16 %v1498, %v1497
      %v1506 = vpack.c.b16 %v1500, %v1499
      %v1507 = vpack.c.b16 %v1502, %v1501
      %v1508 = vpack.c.b16 %v1504, %v1503
      %v1529 = vunpack.c.l.b16 %v1481
      %v1530 = vunpack.c.l.b16 %v1482
      %v1531 = vunpack.c.l.b16 %v1483
      %v1532 = vunpack.c.l.b16 %v1484
      %v1533 = vunpack.c.l.b16 %v1485
      %v1534 = vunpack.c.l.b16 %v1486
      %v1535 = vunpack.c.l.b16 %v1487
      %v1536 = vunpack.c.l.b16 %v1488
      %v1537 = vunpack.c.l.b16 %v1489
      %v1538 = vunpack.c.l.b16 %v1490
      %v1539 = vunpack.c.l.b16 %v1491
      %v1540 = vunpack.c.l.b16 %v1492
      %v1541 = vunpack.c.l.b16 %v1493
      %v1542 = vunpack.c.l.b16 %v1494
      %v1543 = vunpack.c.l.b16 %v1495
      %v1544 = vunpack.c.l.b16 %v1496
      %v1545 = vpack.c.b16 %v1530, %v1529
      %v1546 = vpack.c.b16 %v1532, %v1531
      %v1547 = vpack.c.b16 %v1534, %v1533
      %v1548 = vpack.c.b16 %v1536, %v1535
      %v1549 = vpack.c.b16 %v1538, %v1537
      %v1550 = vpack.c.b16 %v1540, %v1539
      %v1551 = vpack.c.b16 %v1542, %v1541
      %v1552 = vpack.c.b16 %v1544, %v1543
      %1561 = vmatprep.subr.bf16.mxu0 0
      %1562 = vmatpush1.bf16.msra.mxu0 %v1552
      %1563 = vmatprep.subr.bf16.mxu0 0
      %1564 = vmatpush1.bf16.msra.mxu0 %v1551
      %1565 = vmatprep.subr.bf16.mxu0 0
      %1566 = vmatpush1.bf16.msra.mxu0 %v1550
      %1567 = vmatprep.subr.bf16.mxu0 0
      %1568 = vmatpush1.bf16.msra.mxu0 %v1549
      %1569 = vmatprep.subr.bf16.mxu0 0
      %1570 = vmatpush1.bf16.msra.mxu0 %v1548
      %1571 = vmatprep.subr.bf16.mxu0 0
      %1572 = vmatpush1.bf16.msra.mxu0 %v1547
      %1573 = vmatprep.subr.bf16.mxu0 0
      %1574 = vmatpush1.bf16.msra.mxu0 %v1546
      %1575 = vmatprep.subr.bf16.mxu0 0
      %1576 = vmatpush1.bf16.msra.mxu0 %v1545
      %1577 = vmatprep.subr.bf16.mxu0 0
      %1578 = vmatpush2.bf16.msra.mxu0 0
      %1579 = vmatprep.subr.bf16.mxu0 0
      %1580 = vmatpush2.bf16.msra.mxu0 0
      %1581 = vmatprep.subr.bf16.mxu0 0
      %1582 = vmatpush2.bf16.msra.mxu0 0
      %1583 = vmatprep.subr.bf16.mxu0 0
      %1584 = vmatpush2.bf16.msra.mxu0 0
      %1585 = vmatprep.subr.bf16.mxu0 0
      %1586 = vmatpush2.bf16.msra.mxu0 0
      %1587 = vmatprep.subr.bf16.mxu0 0
      %1588 = vmatpush2.bf16.msra.mxu0 0
      %1589 = vmatprep.subr.bf16.mxu0 0
      %1590 = vmatpush2.bf16.msra.mxu0 0
      %1591 = vmatprep.subr.bf16.mxu0 0
      %1592 = vmatpush2.bf16.msra.mxu0 0
      %1593 = vmatprep.mubr.bf16.mxu0 0
      %1594 = vmatmul.mubr.bf16.gmra.mxu0 %v1505
      %v1595 = vpop.f32.mrf.mxu0
      %v1596 = vadd.f32 0.0, %v1595
      %v1597 = vpop.f32.mrf.mxu0
      %v1598 = vpop.f32.mrf.mxu0
      %v1599 = vadd.f32 0.0, %v1598
      %v1600 = vpop.f32.mrf.mxu0
      %1601 = vmatprep.mubr.bf16.mxu0 0
      %1602 = vmatmul.mubr.bf16.gmra.mxu0 %v1506
      %v1603 = vpop.f32.mrf.mxu0
      %v1604 = vadd.f32 0.0, %v1603
      %v1605 = vpop.f32.mrf.mxu0
      %v1606 = vpop.f32.mrf.mxu0
      %v1607 = vadd.f32 0.0, %v1606
      %v1608 = vpop.f32.mrf.mxu0
      %1609 = vmatprep.mubr.bf16.mxu0 0
      %1610 = vmatmul.mubr.bf16.gmra.mxu0 %v1507
      %v1611 = vpop.f32.mrf.mxu0
      %v1612 = vadd.f32 0.0, %v1611
      %v1613 = vpop.f32.mrf.mxu0
      %v1614 = vpop.f32.mrf.mxu0
      %v1615 = vadd.f32 0.0, %v1614
      %v1616 = vpop.f32.mrf.mxu0
      %1617 = vmatprep.mubr.bf16.mxu0 0
      %1618 = vmatmul.mubr.bf16.gmra.mxu0 %v1508
      %v1619 = vpop.f32.mrf.mxu0
      %v1620 = vadd.f32 0.0, %v1619
      %v1621 = vpop.f32.mrf.mxu0
      %v1622 = vpop.f32.mrf.mxu0
      %v1623 = vadd.f32 0.0, %v1622
      %v1624 = vpop.f32.mrf.mxu0
      %1625 = vdwg.mxu0
      %v1626 = vld [vmem:[#allocation2] sm:$0xff]
      %v1627 = vld [vmem:[#allocation2 + $0x8] sm:$0xff]
      %v1628 = vld [vmem:[#allocation2 + $0x10] sm:$0xff]
      %v1629 = vld [vmem:[#allocation2 + $0x18] sm:$0xff]
      %v1630 = vld [vmem:[#allocation2 + $0x20] sm:$0xff]
      %v1631 = vld [vmem:[#allocation2 + $0x28] sm:$0xff]
      %v1632 = vld [vmem:[#allocation2 + $0x30] sm:$0xff]
      %v1633 = vld [vmem:[#allocation2 + $0x38] sm:$0xff]
      %v1634 = vadd.f32 %v1626, %v1596
      %v1635 = vadd.f32 %v1627, %v1599
      %v1636 = vadd.f32 %v1628, %v1604
      %v1637 = vadd.f32 %v1629, %v1607
      %v1638 = vadd.f32 %v1630, %v1612
      %v1639 = vadd.f32 %v1631, %v1615
      %v1640 = vadd.f32 %v1632, %v1620
      %v1641 = vadd.f32 %v1633, %v1623
      %1642 = vst [vmem:[#allocation2] sm:$0xff] %v1634
      %1643 = vst [vmem:[#allocation2 + $0x8] sm:$0xff] %v1635
      %1644 = vst [vmem:[#allocation2 + $0x10] sm:$0xff] %v1636
      %1645 = vst [vmem:[#allocation2 + $0x18] sm:$0xff] %v1637
      %1646 = vst [vmem:[#allocation2 + $0x20] sm:$0xff] %v1638
      %1647 = vst [vmem:[#allocation2 + $0x28] sm:$0xff] %v1639
      %1648 = vst [vmem:[#allocation2 + $0x30] sm:$0xff] %v1640
      %1649 = vst [vmem:[#allocation2 + $0x38] sm:$0xff] %v1641
      %s1650 = scalar_lea.vmem %s298, 8
      %v1651 = vld [vmem:[%s1650] sm:$0xf]
      %v1652 = vld [vmem:[%s1650 + $0x8] sm:$0xf]
      %v1653 = vld [vmem:[%s1650 + $0x10] sm:$0xf]
      %v1654 = vld [vmem:[%s1650 + $0x18] sm:$0xf]
      %v1655 = vld [vmem:[%s1650 + $0x20] sm:$0xf]
      %v1656 = vld [vmem:[%s1650 + $0x28] sm:$0xf]
      %v1657 = vld [vmem:[%s1650 + $0x30] sm:$0xf]
      %v1658 = vld [vmem:[%s1650 + $0x38] sm:$0xf]
      %s1659 = scalar_lea.vmem %s4, 384
      %v1660 = vld [vmem:[%s1659] sm:$0xf]
      %v1661 = vld [vmem:[%s1659 + $0x4] sm:$0xf]
      %v1662 = vld [vmem:[%s1659 + $0x8] sm:$0xf]
      %v1663 = vld [vmem:[%s1659 + $0xc] sm:$0xf]
      %v1664 = vld [vmem:[%s1659 + $0x10] sm:$0xf]
      %v1665 = vld [vmem:[%s1659 + $0x14] sm:$0xf]
      %v1666 = vld [vmem:[%s1659 + $0x18] sm:$0xf]
      %v1667 = vld [vmem:[%s1659 + $0x1c] sm:$0xf]
      %v1668 = vld [vmem:[%s1659 + $0x20] sm:$0xf]
      %v1669 = vld [vmem:[%s1659 + $0x24] sm:$0xf]
      %v1670 = vld [vmem:[%s1659 + $0x28] sm:$0xf]
      %v1671 = vld [vmem:[%s1659 + $0x2c] sm:$0xf]
      %v1672 = vld [vmem:[%s1659 + $0x30] sm:$0xf]
      %v1673 = vld [vmem:[%s1659 + $0x34] sm:$0xf]
      %v1674 = vld [vmem:[%s1659 + $0x38] sm:$0xf]
      %v1675 = vld [vmem:[%s1659 + $0x3c] sm:$0xf]
      %v1684 = vunpack.c.l.b16 %v1651
      %v1685 = vunpack.c.l.b16 %v1652
      %v1686 = vunpack.c.l.b16 %v1653
      %v1687 = vunpack.c.l.b16 %v1654
      %v1688 = vunpack.c.l.b16 %v1655
      %v1689 = vunpack.c.l.b16 %v1656
      %v1690 = vunpack.c.l.b16 %v1657
      %v1691 = vunpack.c.l.b16 %v1658
      %v1692 = vpack.c.b16 %v1685, %v1684
      %v1693 = vpack.c.b16 %v1687, %v1686
      %v1694 = vpack.c.b16 %v1689, %v1688
      %v1695 = vpack.c.b16 %v1691, %v1690
      %v1716 = vunpack.c.l.b16 %v1660
      %v1717 = vunpack.c.l.b16 %v1661
      %v1718 = vunpack.c.l.b16 %v1662
      %v1719 = vunpack.c.l.b16 %v1663
      %v1720 = vunpack.c.l.b16 %v1664
      %v1721 = vunpack.c.l.b16 %v1665
      %v1722 = vunpack.c.l.b16 %v1666
      %v1723 = vunpack.c.l.b16 %v1667
      %v1724 = vunpack.c.l.b16 %v1668
      %v1725 = vunpack.c.l.b16 %v1669
      %v1726 = vunpack.c.l.b16 %v1670
      %v1727 = vunpack.c.l.b16 %v1671
      %v1728 = vunpack.c.l.b16 %v1672
      %v1729 = vunpack.c.l.b16 %v1673
      %v1730 = vunpack.c.l.b16 %v1674
      %v1731 = vunpack.c.l.b16 %v1675
      %v1732 = vpack.c.b16 %v1717, %v1716
      %v1733 = vpack.c.b16 %v1719, %v1718
      %v1734 = vpack.c.b16 %v1721, %v1720
      %v1735 = vpack.c.b16 %v1723, %v1722
      %v1736 = vpack.c.b16 %v1725, %v1724
      %v1737 = vpack.c.b16 %v1727, %v1726
      %v1738 = vpack.c.b16 %v1729, %v1728
      %v1739 = vpack.c.b16 %v1731, %v1730
      %1748 = vmatprep.subr.bf16.mxu0 0
      %1749 = vmatpush1.bf16.msra.mxu0 %v1739
      %1750 = vmatprep.subr.bf16.mxu0 0
      %1751 = vmatpush1.bf16.msra.mxu0 %v1738
      %1752 = vmatprep.subr.bf16.mxu0 0
      %1753 = vmatpush1.bf16.msra.mxu0 %v1737
      %1754 = vmatprep.subr.bf16.mxu0 0
      %1755 = vmatpush1.bf16.msra.mxu0 %v1736
      %1756 = vmatprep.subr.bf16.mxu0 0
      %1757 = vmatpush1.bf16.msra.mxu0 %v1735
      %1758 = vmatprep.subr.bf16.mxu0 0
      %1759 = vmatpush1.bf16.msra.mxu0 %v1734
      %1760 = vmatprep.subr.bf16.mxu0 0
      %1761 = vmatpush1.bf16.msra.mxu0 %v1733
      %1762 = vmatprep.subr.bf16.mxu0 0
      %1763 = vmatpush1.bf16.msra.mxu0 %v1732
      %1764 = vmatprep.subr.bf16.mxu0 0
      %1765 = vmatpush2.bf16.msra.mxu0 0
      %1766 = vmatprep.subr.bf16.mxu0 0
      %1767 = vmatpush2.bf16.msra.mxu0 0
      %1768 = vmatprep.subr.bf16.mxu0 0
      %1769 = vmatpush2.bf16.msra.mxu0 0
      %1770 = vmatprep.subr.bf16.mxu0 0
      %1771 = vmatpush2.bf16.msra.mxu0 0
      %1772 = vmatprep.subr.bf16.mxu0 0
      %1773 = vmatpush2.bf16.msra.mxu0 0
      %1774 = vmatprep.subr.bf16.mxu0 0
      %1775 = vmatpush2.bf16.msra.mxu0 0
      %1776 = vmatprep.subr.bf16.mxu0 0
      %1777 = vmatpush2.bf16.msra.mxu0 0
      %1778 = vmatprep.subr.bf16.mxu0 0
      %1779 = vmatpush2.bf16.msra.mxu0 0
      %1780 = vmatprep.mubr.bf16.mxu0 0
      %1781 = vmatmul.mubr.bf16.gmra.mxu0 %v1692
      %v1782 = vpop.f32.mrf.mxu0
      %v1783 = vadd.f32 0.0, %v1782
      %v1784 = vpop.f32.mrf.mxu0
      %v1785 = vpop.f32.mrf.mxu0
      %v1786 = vadd.f32 0.0, %v1785
      %v1787 = vpop.f32.mrf.mxu0
      %1788 = vmatprep.mubr.bf16.mxu0 0
      %1789 = vmatmul.mubr.bf16.gmra.mxu0 %v1693
      %v1790 = vpop.f32.mrf.mxu0
      %v1791 = vadd.f32 0.0, %v1790
      %v1792 = vpop.f32.mrf.mxu0
      %v1793 = vpop.f32.mrf.mxu0
      %v1794 = vadd.f32 0.0, %v1793
      %v1795 = vpop.f32.mrf.mxu0
      %1796 = vmatprep.mubr.bf16.mxu0 0
      %1797 = vmatmul.mubr.bf16.gmra.mxu0 %v1694
      %v1798 = vpop.f32.mrf.mxu0
      %v1799 = vadd.f32 0.0, %v1798
      %v1800 = vpop.f32.mrf.mxu0
      %v1801 = vpop.f32.mrf.mxu0
      %v1802 = vadd.f32 0.0, %v1801
      %v1803 = vpop.f32.mrf.mxu0
      %1804 = vmatprep.mubr.bf16.mxu0 0
      %1805 = vmatmul.mubr.bf16.gmra.mxu0 %v1695
      %v1806 = vpop.f32.mrf.mxu0
      %v1807 = vadd.f32 0.0, %v1806
      %v1808 = vpop.f32.mrf.mxu0
      %v1809 = vpop.f32.mrf.mxu0
      %v1810 = vadd.f32 0.0, %v1809
      %v1811 = vpop.f32.mrf.mxu0
      %1812 = vdwg.mxu0
      %v1813 = vld [vmem:[#allocation2] sm:$0xff]
      %v1814 = vld [vmem:[#allocation2 + $0x8] sm:$0xff]
      %v1815 = vld [vmem:[#allocation2 + $0x10] sm:$0xff]
      %v1816 = vld [vmem:[#allocation2 + $0x18] sm:$0xff]
      %v1817 = vld [vmem:[#allocation2 + $0x20] sm:$0xff]
      %v1818 = vld [vmem:[#allocation2 + $0x28] sm:$0xff]
      %v1819 = vld [vmem:[#allocation2 + $0x30] sm:$0xff]
      %v1820 = vld [vmem:[#allocation2 + $0x38] sm:$0xff]
      %v1821 = vadd.f32 %v1813, %v1783
      %v1822 = vadd.f32 %v1814, %v1786
      %v1823 = vadd.f32 %v1815, %v1791
      %v1824 = vadd.f32 %v1816, %v1794
      %v1825 = vadd.f32 %v1817, %v1799
      %v1826 = vadd.f32 %v1818, %v1802
      %v1827 = vadd.f32 %v1819, %v1807
      %v1828 = vadd.f32 %v1820, %v1810
      %1829 = vst [vmem:[#allocation2] sm:$0xff] %v1821
      %1830 = vst [vmem:[#allocation2 + $0x8] sm:$0xff] %v1822
      %1831 = vst [vmem:[#allocation2 + $0x10] sm:$0xff] %v1823
      %1832 = vst [vmem:[#allocation2 + $0x18] sm:$0xff] %v1824
      %1833 = vst [vmem:[#allocation2 + $0x20] sm:$0xff] %v1825
      %1834 = vst [vmem:[#allocation2 + $0x28] sm:$0xff] %v1826
      %1835 = vst [vmem:[#allocation2 + $0x30] sm:$0xff] %v1827
      %1836 = vst [vmem:[#allocation2 + $0x38] sm:$0xff] %v1828
      %s1837 = scalar_lea.vmem %s303, 8
      %v1838 = vld [vmem:[%s1837] sm:$0xf]
      %v1839 = vld [vmem:[%s1837 + $0x8] sm:$0xf]
      %v1840 = vld [vmem:[%s1837 + $0x10] sm:$0xf]
      %v1841 = vld [vmem:[%s1837 + $0x18] sm:$0xf]
      %v1842 = vld [vmem:[%s1837 + $0x20] sm:$0xf]
      %v1843 = vld [vmem:[%s1837 + $0x28] sm:$0xf]
      %v1844 = vld [vmem:[%s1837 + $0x30] sm:$0xf]
      %v1845 = vld [vmem:[%s1837 + $0x38] sm:$0xf]
      %s1846 = scalar_lea.vmem %s4, 448
      %v1847 = vld [vmem:[%s1846] sm:$0xf]
      %v1848 = vld [vmem:[%s1846 + $0x4] sm:$0xf]
      %v1849 = vld [vmem:[%s1846 + $0x8] sm:$0xf]
      %v1850 = vld [vmem:[%s1846 + $0xc] sm:$0xf]
      %v1851 = vld [vmem:[%s1846 + $0x10] sm:$0xf]
      %v1852 = vld [vmem:[%s1846 + $0x14] sm:$0xf]
      %v1853 = vld [vmem:[%s1846 + $0x18] sm:$0xf]
      %v1854 = vld [vmem:[%s1846 + $0x1c] sm:$0xf]
      %v1855 = vld [vmem:[%s1846 + $0x20] sm:$0xf]
      %v1856 = vld [vmem:[%s1846 + $0x24] sm:$0xf]
      %v1857 = vld [vmem:[%s1846 + $0x28] sm:$0xf]
      %v1858 = vld [vmem:[%s1846 + $0x2c] sm:$0xf]
      %v1859 = vld [vmem:[%s1846 + $0x30] sm:$0xf]
      %v1860 = vld [vmem:[%s1846 + $0x34] sm:$0xf]
      %v1861 = vld [vmem:[%s1846 + $0x38] sm:$0xf]
      %v1862 = vld [vmem:[%s1846 + $0x3c] sm:$0xf]
      %v1871 = vunpack.c.l.b16 %v1838
      %v1872 = vunpack.c.l.b16 %v1839
      %v1873 = vunpack.c.l.b16 %v1840
      %v1874 = vunpack.c.l.b16 %v1841
      %v1875 = vunpack.c.l.b16 %v1842
      %v1876 = vunpack.c.l.b16 %v1843
      %v1877 = vunpack.c.l.b16 %v1844
      %v1878 = vunpack.c.l.b16 %v1845
      %v1879 = vpack.c.b16 %v1872, %v1871
      %v1880 = vpack.c.b16 %v1874, %v1873
      %v1881 = vpack.c.b16 %v1876, %v1875
      %v1882 = vpack.c.b16 %v1878, %v1877
      %v1903 = vunpack.c.l.b16 %v1847
      %v1904 = vunpack.c.l.b16 %v1848
      %v1905 = vunpack.c.l.b16 %v1849
      %v1906 = vunpack.c.l.b16 %v1850
      %v1907 = vunpack.c.l.b16 %v1851
      %v1908 = vunpack.c.l.b16 %v1852
      %v1909 = vunpack.c.l.b16 %v1853
      %v1910 = vunpack.c.l.b16 %v1854
      %v1911 = vunpack.c.l.b16 %v1855
      %v1912 = vunpack.c.l.b16 %v1856
      %v1913 = vunpack.c.l.b16 %v1857
      %v1914 = vunpack.c.l.b16 %v1858
      %v1915 = vunpack.c.l.b16 %v1859
      %v1916 = vunpack.c.l.b16 %v1860
      %v1917 = vunpack.c.l.b16 %v1861
      %v1918 = vunpack.c.l.b16 %v1862
      %v1919 = vpack.c.b16 %v1904, %v1903
      %v1920 = vpack.c.b16 %v1906, %v1905
      %v1921 = vpack.c.b16 %v1908, %v1907
      %v1922 = vpack.c.b16 %v1910, %v1909
      %v1923 = vpack.c.b16 %v1912, %v1911
      %v1924 = vpack.c.b16 %v1914, %v1913
      %v1925 = vpack.c.b16 %v1916, %v1915
      %v1926 = vpack.c.b16 %v1918, %v1917
      %1935 = vmatprep.subr.bf16.mxu0 0
      %1936 = vmatpush1.bf16.msra.mxu0 %v1926
      %1937 = vmatprep.subr.bf16.mxu0 0
      %1938 = vmatpush1.bf16.msra.mxu0 %v1925
      %1939 = vmatprep.subr.bf16.mxu0 0
      %1940 = vmatpush1.bf16.msra.mxu0 %v1924
      %1941 = vmatprep.subr.bf16.mxu0 0
      %1942 = vmatpush1.bf16.msra.mxu0 %v1923
      %1943 = vmatprep.subr.bf16.mxu0 0
      %1944 = vmatpush1.bf16.msra.mxu0 %v1922
      %1945 = vmatprep.subr.bf16.mxu0 0
      %1946 = vmatpush1.bf16.msra.mxu0 %v1921
      %1947 = vmatprep.subr.bf16.mxu0 0
      %1948 = vmatpush1.bf16.msra.mxu0 %v1920
      %1949 = vmatprep.subr.bf16.mxu0 0
      %1950 = vmatpush1.bf16.msra.mxu0 %v1919
      %1951 = vmatprep.subr.bf16.mxu0 0
      %1952 = vmatpush2.bf16.msra.mxu0 0
      %1953 = vmatprep.subr.bf16.mxu0 0
      %1954 = vmatpush2.bf16.msra.mxu0 0
      %1955 = vmatprep.subr.bf16.mxu0 0
      %1956 = vmatpush2.bf16.msra.mxu0 0
      %1957 = vmatprep.subr.bf16.mxu0 0
      %1958 = vmatpush2.bf16.msra.mxu0 0
      %1959 = vmatprep.subr.bf16.mxu0 0
      %1960 = vmatpush2.bf16.msra.mxu0 0
      %1961 = vmatprep.subr.bf16.mxu0 0
      %1962 = vmatpush2.bf16.msra.mxu0 0
      %1963 = vmatprep.subr.bf16.mxu0 0
      %1964 = vmatpush2.bf16.msra.mxu0 0
      %1965 = vmatprep.subr.bf16.mxu0 0
      %1966 = vmatpush2.bf16.msra.mxu0 0
      %1967 = vmatprep.mubr.bf16.mxu0 0
      %1968 = vmatmul.mubr.bf16.gmra.mxu0 %v1879
      %v1969 = vpop.f32.mrf.mxu0
      %v1970 = vadd.f32 0.0, %v1969
      %v1971 = vpop.f32.mrf.mxu0
      %v1972 = vpop.f32.mrf.mxu0
      %v1973 = vadd.f32 0.0, %v1972
      %v1974 = vpop.f32.mrf.mxu0
      %1975 = vmatprep.mubr.bf16.mxu0 0
      %1976 = vmatmul.mubr.bf16.gmra.mxu0 %v1880
      %v1977 = vpop.f32.mrf.mxu0
      %v1978 = vadd.f32 0.0, %v1977
      %v1979 = vpop.f32.mrf.mxu0
      %v1980 = vpop.f32.mrf.mxu0
      %v1981 = vadd.f32 0.0, %v1980
      %v1982 = vpop.f32.mrf.mxu0
      %1983 = vmatprep.mubr.bf16.mxu0 0
      %1984 = vmatmul.mubr.bf16.gmra.mxu0 %v1881
      %v1985 = vpop.f32.mrf.mxu0
      %v1986 = vadd.f32 0.0, %v1985
      %v1987 = vpop.f32.mrf.mxu0
      %v1988 = vpop.f32.mrf.mxu0
      %v1989 = vadd.f32 0.0, %v1988
      %v1990 = vpop.f32.mrf.mxu0
      %1991 = vmatprep.mubr.bf16.mxu0 0
      %1992 = vmatmul.mubr.bf16.gmra.mxu0 %v1882
      %v1993 = vpop.f32.mrf.mxu0
      %v1994 = vadd.f32 0.0, %v1993
      %v1995 = vpop.f32.mrf.mxu0
      %v1996 = vpop.f32.mrf.mxu0
      %v1997 = vadd.f32 0.0, %v1996
      %v1998 = vpop.f32.mrf.mxu0
      %1999 = vdwg.mxu0
      %v2000 = vld [vmem:[#allocation2] sm:$0xff]
      %v2001 = vld [vmem:[#allocation2 + $0x8] sm:$0xff]
      %v2002 = vld [vmem:[#allocation2 + $0x10] sm:$0xff]
      %v2003 = vld [vmem:[#allocation2 + $0x18] sm:$0xff]
      %v2004 = vld [vmem:[#allocation2 + $0x20] sm:$0xff]
      %v2005 = vld [vmem:[#allocation2 + $0x28] sm:$0xff]
      %v2006 = vld [vmem:[#allocation2 + $0x30] sm:$0xff]
      %v2007 = vld [vmem:[#allocation2 + $0x38] sm:$0xff]
      %v2008 = vadd.f32 %v2000, %v1970
      %v2009 = vadd.f32 %v2001, %v1973
      %v2010 = vadd.f32 %v2002, %v1978
      %v2011 = vadd.f32 %v2003, %v1981
      %v2012 = vadd.f32 %v2004, %v1986
      %v2013 = vadd.f32 %v2005, %v1989
      %v2014 = vadd.f32 %v2006, %v1994
      %v2015 = vadd.f32 %v2007, %v1997
      %2016 = vst [vmem:[#allocation2] sm:$0xff] %v2008
      %2017 = vst [vmem:[#allocation2 + $0x8] sm:$0xff] %v2009
      %2018 = vst [vmem:[#allocation2 + $0x10] sm:$0xff] %v2010
      %2019 = vst [vmem:[#allocation2 + $0x18] sm:$0xff] %v2011
      %2020 = vst [vmem:[#allocation2 + $0x20] sm:$0xff] %v2012
      %2021 = vst [vmem:[#allocation2 + $0x28] sm:$0xff] %v2013
      %2022 = vst [vmem:[#allocation2 + $0x30] sm:$0xff] %v2014
      %2023 = vst [vmem:[#allocation2 + $0x38] sm:$0xff] %v2015
      %v2024 = vld [vmem:[%s1650] sm:$0xf]
      %v2025 = vld [vmem:[%s1650 + $0x4] sm:$0x1]
      %v2026 = vld [vmem:[%s1650 + $0x8] sm:$0xf]
      %v2027 = vld [vmem:[%s1650 + $0xc] sm:$0x1]
      %v2028 = vld [vmem:[%s1650 + $0x10] sm:$0xf]
      %v2029 = vld [vmem:[%s1650 + $0x14] sm:$0x1]
      %v2030 = vld [vmem:[%s1650 + $0x18] sm:$0xf]
      %v2031 = vld [vmem:[%s1650 + $0x1c] sm:$0x1]
      %v2032 = vld [vmem:[%s1650 + $0x20] sm:$0xf]
      %v2033 = vld [vmem:[%s1650 + $0x24] sm:$0x1]
      %v2034 = vld [vmem:[%s1650 + $0x28] sm:$0xf]
      %v2035 = vld [vmem:[%s1650 + $0x2c] sm:$0x1]
      %v2036 = vld [vmem:[%s1650 + $0x30] sm:$0xf]
      %v2037 = vld [vmem:[%s1650 + $0x34] sm:$0x1]
      %v2038 = vld [vmem:[%s1650 + $0x38] sm:$0xf]
      %v2039 = vld [vmem:[%s1650 + $0x3c] sm:$0x1]
      %v2041 = vshrl.u32 %v2024, 16
      %v2043 = vrot.slane %v2041, 4
      %v2044 = vshll.u32 %v2024, 16
      %v2046 = vrot.slane %v2044, 5
      %v2047 = vor.u32 %v2043, %v2046
      %v2048 = vrot.slane %v2047, 4
      %v2050 = vshll.u32 %v2025, 16
      %v2052 = vrot.slane %v2050, 5
      %v2053 = vsel %vm697, %v2048, %v2052
      %v2055 = vshrl.u32 %v2026, 16
      %v2057 = vrot.slane %v2055, 4
      %v2058 = vshll.u32 %v2026, 16
      %v2060 = vrot.slane %v2058, 5
      %v2061 = vor.u32 %v2057, %v2060
      %v2062 = vrot.slane %v2061, 4
      %v2064 = vshll.u32 %v2027, 16
      %v2066 = vrot.slane %v2064, 5
      %v2067 = vsel %vm697, %v2062, %v2066
      %v2069 = vshrl.u32 %v2028, 16
      %v2071 = vrot.slane %v2069, 4
      %v2072 = vshll.u32 %v2028, 16
      %v2074 = vrot.slane %v2072, 5
      %v2075 = vor.u32 %v2071, %v2074
      %v2076 = vrot.slane %v2075, 4
      %v2078 = vshll.u32 %v2029, 16
      %v2080 = vrot.slane %v2078, 5
      %v2081 = vsel %vm697, %v2076, %v2080
      %v2083 = vshrl.u32 %v2030, 16
      %v2085 = vrot.slane %v2083, 4
      %v2086 = vshll.u32 %v2030, 16
      %v2088 = vrot.slane %v2086, 5
      %v2089 = vor.u32 %v2085, %v2088
      %v2090 = vrot.slane %v2089, 4
      %v2092 = vshll.u32 %v2031, 16
      %v2094 = vrot.slane %v2092, 5
      %v2095 = vsel %vm697, %v2090, %v2094
      %v2097 = vshrl.u32 %v2032, 16
      %v2099 = vrot.slane %v2097, 4
      %v2100 = vshll.u32 %v2032, 16
      %v2102 = vrot.slane %v2100, 5
      %v2103 = vor.u32 %v2099, %v2102
      %v2104 = vrot.slane %v2103, 4
      %v2106 = vshll.u32 %v2033, 16
      %v2108 = vrot.slane %v2106, 5
      %v2109 = vsel %vm697, %v2104, %v2108
      %v2111 = vshrl.u32 %v2034, 16
      %v2113 = vrot.slane %v2111, 4
      %v2114 = vshll.u32 %v2034, 16
      %v2116 = vrot.slane %v2114, 5
      %v2117 = vor.u32 %v2113, %v2116
      %v2118 = vrot.slane %v2117, 4
      %v2120 = vshll.u32 %v2035, 16
      %v2122 = vrot.slane %v2120, 5
      %v2123 = vsel %vm697, %v2118, %v2122
      %v2125 = vshrl.u32 %v2036, 16
      %v2127 = vrot.slane %v2125, 4
      %v2128 = vshll.u32 %v2036, 16
      %v2130 = vrot.slane %v2128, 5
      %v2131 = vor.u32 %v2127, %v2130
      %v2132 = vrot.slane %v2131, 4
      %v2134 = vshll.u32 %v2037, 16
      %v2136 = vrot.slane %v2134, 5
      %v2137 = vsel %vm697, %v2132, %v2136
      %v2139 = vshrl.u32 %v2038, 16
      %v2141 = vrot.slane %v2139, 4
      %v2142 = vshll.u32 %v2038, 16
      %v2144 = vrot.slane %v2142, 5
      %v2145 = vor.u32 %v2141, %v2144
      %v2146 = vrot.slane %v2145, 4
      %v2148 = vshll.u32 %v2039, 16
      %v2150 = vrot.slane %v2148, 5
      %v2151 = vsel %vm697, %v2146, %v2150
      %s2152 = scalar_lea.vmem %s4, 512
      %v2153 = vld [vmem:[%s2152] sm:$0xf]
      %v2154 = vld [vmem:[%s2152 + $0x4] sm:$0xf]
      %v2155 = vld [vmem:[%s2152 + $0x8] sm:$0xf]
      %v2156 = vld [vmem:[%s2152 + $0xc] sm:$0xf]
      %v2157 = vld [vmem:[%s2152 + $0x10] sm:$0xf]
      %v2158 = vld [vmem:[%s2152 + $0x14] sm:$0xf]
      %v2159 = vld [vmem:[%s2152 + $0x18] sm:$0xf]
      %v2160 = vld [vmem:[%s2152 + $0x1c] sm:$0xf]
      %v2161 = vld [vmem:[%s2152 + $0x20] sm:$0xf]
      %v2162 = vld [vmem:[%s2152 + $0x24] sm:$0xf]
      %v2163 = vld [vmem:[%s2152 + $0x28] sm:$0xf]
      %v2164 = vld [vmem:[%s2152 + $0x2c] sm:$0xf]
      %v2165 = vld [vmem:[%s2152 + $0x30] sm:$0xf]
      %v2166 = vld [vmem:[%s2152 + $0x34] sm:$0xf]
      %v2167 = vld [vmem:[%s2152 + $0x38] sm:$0xf]
      %v2168 = vld [vmem:[%s2152 + $0x3c] sm:$0xf]
      %v2169 = vunpack.c.l.b16 %v2053
      %v2170 = vunpack.c.l.b16 %v2067
      %v2171 = vunpack.c.l.b16 %v2081
      %v2172 = vunpack.c.l.b16 %v2095
      %v2173 = vunpack.c.l.b16 %v2109
      %v2174 = vunpack.c.l.b16 %v2123
      %v2175 = vunpack.c.l.b16 %v2137
      %v2176 = vunpack.c.l.b16 %v2151
      %v2177 = vpack.c.b16 %v2170, %v2169
      %v2178 = vpack.c.b16 %v2172, %v2171
      %v2179 = vpack.c.b16 %v2174, %v2173
      %v2180 = vpack.c.b16 %v2176, %v2175
      %v2201 = vunpack.c.l.b16 %v2153
      %v2202 = vunpack.c.l.b16 %v2154
      %v2203 = vunpack.c.l.b16 %v2155
      %v2204 = vunpack.c.l.b16 %v2156
      %v2205 = vunpack.c.l.b16 %v2157
      %v2206 = vunpack.c.l.b16 %v2158
      %v2207 = vunpack.c.l.b16 %v2159
      %v2208 = vunpack.c.l.b16 %v2160
      %v2209 = vunpack.c.l.b16 %v2161
      %v2210 = vunpack.c.l.b16 %v2162
      %v2211 = vunpack.c.l.b16 %v2163
      %v2212 = vunpack.c.l.b16 %v2164
      %v2213 = vunpack.c.l.b16 %v2165
      %v2214 = vunpack.c.l.b16 %v2166
      %v2215 = vunpack.c.l.b16 %v2167
      %v2216 = vunpack.c.l.b16 %v2168
      %v2217 = vpack.c.b16 %v2202, %v2201
      %v2218 = vpack.c.b16 %v2204, %v2203
      %v2219 = vpack.c.b16 %v2206, %v2205
      %v2220 = vpack.c.b16 %v2208, %v2207
      %v2221 = vpack.c.b16 %v2210, %v2209
      %v2222 = vpack.c.b16 %v2212, %v2211
      %v2223 = vpack.c.b16 %v2214, %v2213
      %v2224 = vpack.c.b16 %v2216, %v2215
      %2233 = vmatprep.subr.bf16.mxu0 0
      %2234 = vmatpush1.bf16.msra.mxu0 %v2224
      %2235 = vmatprep.subr.bf16.mxu0 0
      %2236 = vmatpush1.bf16.msra.mxu0 %v2223
      %2237 = vmatprep.subr.bf16.mxu0 0
      %2238 = vmatpush1.bf16.msra.mxu0 %v2222
      %2239 = vmatprep.subr.bf16.mxu0 0
      %2240 = vmatpush1.bf16.msra.mxu0 %v2221
      %2241 = vmatprep.subr.bf16.mxu0 0
      %2242 = vmatpush1.bf16.msra.mxu0 %v2220
      %2243 = vmatprep.subr.bf16.mxu0 0
      %2244 = vmatpush1.bf16.msra.mxu0 %v2219
      %2245 = vmatprep.subr.bf16.mxu0 0
      %2246 = vmatpush1.bf16.msra.mxu0 %v2218
      %2247 = vmatprep.subr.bf16.mxu0 0
      %2248 = vmatpush1.bf16.msra.mxu0 %v2217
      %2249 = vmatprep.subr.bf16.mxu0 0
      %2250 = vmatpush2.bf16.msra.mxu0 0
      %2251 = vmatprep.subr.bf16.mxu0 0
      %2252 = vmatpush2.bf16.msra.mxu0 0
      %2253 = vmatprep.subr.bf16.mxu0 0
      %2254 = vmatpush2.bf16.msra.mxu0 0
      %2255 = vmatprep.subr.bf16.mxu0 0
      %2256 = vmatpush2.bf16.msra.mxu0 0
      %2257 = vmatprep.subr.bf16.mxu0 0
      %2258 = vmatpush2.bf16.msra.mxu0 0
      %2259 = vmatprep.subr.bf16.mxu0 0
      %2260 = vmatpush2.bf16.msra.mxu0 0
      %2261 = vmatprep.subr.bf16.mxu0 0
      %2262 = vmatpush2.bf16.msra.mxu0 0
      %2263 = vmatprep.subr.bf16.mxu0 0
      %2264 = vmatpush2.bf16.msra.mxu0 0
      %2265 = vmatprep.mubr.bf16.mxu0 0
      %2266 = vmatmul.mubr.bf16.gmra.mxu0 %v2177
      %v2267 = vpop.f32.mrf.mxu0
      %v2268 = vadd.f32 0.0, %v2267
      %v2269 = vpop.f32.mrf.mxu0
      %v2270 = vpop.f32.mrf.mxu0
      %v2271 = vadd.f32 0.0, %v2270
      %v2272 = vpop.f32.mrf.mxu0
      %2273 = vmatprep.mubr.bf16.mxu0 0
      %2274 = vmatmul.mubr.bf16.gmra.mxu0 %v2178
      %v2275 = vpop.f32.mrf.mxu0
      %v2276 = vadd.f32 0.0, %v2275
      %v2277 = vpop.f32.mrf.mxu0
      %v2278 = vpop.f32.mrf.mxu0
      %v2279 = vadd.f32 0.0, %v2278
      %v2280 = vpop.f32.mrf.mxu0
      %2281 = vmatprep.mubr.bf16.mxu0 0
      %2282 = vmatmul.mubr.bf16.gmra.mxu0 %v2179
      %v2283 = vpop.f32.mrf.mxu0
      %v2284 = vadd.f32 0.0, %v2283
      %v2285 = vpop.f32.mrf.mxu0
      %v2286 = vpop.f32.mrf.mxu0
      %v2287 = vadd.f32 0.0, %v2286
      %v2288 = vpop.f32.mrf.mxu0
      %2289 = vmatprep.mubr.bf16.mxu0 0
      %2290 = vmatmul.mubr.bf16.gmra.mxu0 %v2180
      %v2291 = vpop.f32.mrf.mxu0
      %v2292 = vadd.f32 0.0, %v2291
      %v2293 = vpop.f32.mrf.mxu0
      %v2294 = vpop.f32.mrf.mxu0
      %v2295 = vadd.f32 0.0, %v2294
      %v2296 = vpop.f32.mrf.mxu0
      %2297 = vdwg.mxu0
      %v2298 = vld [vmem:[#allocation2] sm:$0xff]
      %v2299 = vld [vmem:[#allocation2 + $0x8] sm:$0xff]
      %v2300 = vld [vmem:[#allocation2 + $0x10] sm:$0xff]
      %v2301 = vld [vmem:[#allocation2 + $0x18] sm:$0xff]
      %v2302 = vld [vmem:[#allocation2 + $0x20] sm:$0xff]
      %v2303 = vld [vmem:[#allocation2 + $0x28] sm:$0xff]
      %v2304 = vld [vmem:[#allocation2 + $0x30] sm:$0xff]
      %v2305 = vld [vmem:[#allocation2 + $0x38] sm:$0xff]
      %v2306 = vadd.f32 %v2298, %v2268
      %v2307 = vadd.f32 %v2299, %v2271
      %v2308 = vadd.f32 %v2300, %v2276
      %v2309 = vadd.f32 %v2301, %v2279
      %v2310 = vadd.f32 %v2302, %v2284
      %v2311 = vadd.f32 %v2303, %v2287
      %v2312 = vadd.f32 %v2304, %v2292
      %v2313 = vadd.f32 %v2305, %v2295
      %2314 = vst [vmem:[#allocation2] sm:$0xff] %v2306
      %2315 = vst [vmem:[#allocation2 + $0x8] sm:$0xff] %v2307
      %2316 = vst [vmem:[#allocation2 + $0x10] sm:$0xff] %v2308
      %2317 = vst [vmem:[#allocation2 + $0x18] sm:$0xff] %v2309
      %2318 = vst [vmem:[#allocation2 + $0x20] sm:$0xff] %v2310
      %2319 = vst [vmem:[#allocation2 + $0x28] sm:$0xff] %v2311
      %2320 = vst [vmem:[#allocation2 + $0x30] sm:$0xff] %v2312
      %2321 = vst [vmem:[#allocation2 + $0x38] sm:$0xff] %v2313
      %v2322 = vld [vmem:[#allocation2] sm:$0xff]
      %v2323 = vld [vmem:[#allocation2 + $0x8] sm:$0xff]
      %v2324 = vld [vmem:[#allocation2 + $0x10] sm:$0xff]
      %v2325 = vld [vmem:[#allocation2 + $0x18] sm:$0xff]
      %v2326 = vld [vmem:[#allocation2 + $0x20] sm:$0xff]
      %v2327 = vld [vmem:[#allocation2 + $0x28] sm:$0xff]
      %v2328 = vld [vmem:[#allocation2 + $0x30] sm:$0xff]
      %v2329 = vld [vmem:[#allocation2 + $0x38] sm:$0xff]
      %2330 = vst [vmem:[%s318] sm:$0xff] %v2322
      %2331 = vst [vmem:[%s318 + $0x8] sm:$0xff] %v2323
      %2332 = vst [vmem:[%s318 + $0x10] sm:$0xff] %v2324
      %2333 = vst [vmem:[%s318 + $0x18] sm:$0xff] %v2325
      %2334 = vst [vmem:[%s318 + $0x20] sm:$0xff] %v2326
      %2335 = vst [vmem:[%s318 + $0x28] sm:$0xff] %v2327
      %2336 = vst [vmem:[%s318 + $0x30] sm:$0xff] %v2328
      %2337 = vst [vmem:[%s318 + $0x38] sm:$0xff] %v2329
      %v2338 = vadd.f32 %v2322, %v2323
      %v2339 = vadd.f32 %v2338, %v2324
      %v2340 = vadd.f32 %v2339, %v2325
      %v2341 = vadd.f32 %v2340, %v2326
      %v2342 = vadd.f32 %v2341, %v2327
      %v2343 = vadd.f32 %v2342, %v2328
      %v2344 = vadd.f32 %v2343, %v2329
      %v2345 = vrot.slane %v2344, 4
      %v2346 = vadd.f32 %v2344, %v2345
      %v2347 = vrot.slane %v2346, 2
      %v2348 = vadd.f32 %v2346, %v2347
      %v2349 = vrot.slane %v2348, 1
      %v2350 = vadd.f32 %v2348, %v2349
      %2351 = vst [vmem:[%s322] sm:$0x1] %v2350
      %v2352 = vmul.f32 %v2322, %v2322
      %v2353 = vmul.f32 %v2323, %v2323
      %v2354 = vmul.f32 %v2324, %v2324
      %v2355 = vmul.f32 %v2325, %v2325
      %v2356 = vmul.f32 %v2326, %v2326
      %v2357 = vmul.f32 %v2327, %v2327
      %v2358 = vmul.f32 %v2328, %v2328
      %v2359 = vmul.f32 %v2329, %v2329
      %v2360 = vadd.f32 %v2352, %v2353
      %v2361 = vadd.f32 %v2360, %v2354
      %v2362 = vadd.f32 %v2361, %v2355
      %v2363 = vadd.f32 %v2362, %v2356
      %v2364 = vadd.f32 %v2363, %v2357
      %v2365 = vadd.f32 %v2364, %v2358
      %v2366 = vadd.f32 %v2365, %v2359
      %v2367 = vrot.slane %v2366, 4
      %v2368 = vadd.f32 %v2366, %v2367
      %v2369 = vrot.slane %v2368, 2
      %v2370 = vadd.f32 %v2368, %v2369
      %v2371 = vrot.slane %v2370, 1
      %v2372 = vadd.f32 %v2370, %v2371
      %2373 = vst [vmem:[%s322 + $0x1] sm:$0x1] %v2372
      %p2374 = scmp.lt.s32.totalorder %s18, 1
      %s2375 = scalar_select %p2374, %s18, 1
      %s2376 = smul.addr %s2375, 8
      %s2377 = smul.addr %s2376, 8
      %s2378 = scalar_lea.vmem %s5, %s2377
      %p2379 = scmp.lt.s32.totalorder %s18, 1
      %s2380 = scalar_select %p2379, %s18, 1
      %s2381 = smul.addr %s2380, 2
      %s2382 = scalar_lea.vmem %s6, %s2381
      // Predicated region
      $region41: #{res_block_forward.3} parent=39 // pred_check
        %p2383 = pneg %p161
      $region42: #{res_block_forward.3} parent=39 // pred_check_branch
        %2385 = sbr.rel (%p2383) target = $region44
      $region43: #{res_block_forward.3} parent=39 // pred_region
        _
      $region44: #{res_block_forward.3} parent=39 // pred_fallthru
        _
      // Predicated region
      $region45: #{res_block_forward.3} parent=39 // pred_check
        %p2386 = pneg %p187
      $region46: #{res_block_forward.3} parent=39 // pred_check_branch
        %2388 = sbr.rel (%p2386) target = $region48
      $region47: #{res_block_forward.3} parent=39 // pred_region
        _
      $region48: #{res_block_forward.3} parent=39 // pred_fallthru
        _
    $region40: #{res_block_forward.3} parent=5 // pred_fallthru
      _
    %p2389 = scmp.le.s32.totalorder 2, %s13
    // Predicated region
    $region49: #{res_block_forward.3} parent=5 // pred_check
      %p2390 = pneg %p2389
    $region50: #{res_block_forward.3} parent=5 // pred_check_branch
      %2392 = sbr.rel (%p2390) target = $region52
    $region51: #{res_block_forward.3} parent=5 // pred_region
      %s2393 = ssub.s32 %s13, 2
      // Predicated region
      $region53: #{res_block_forward.3} parent=51 // pred_check
        %p2394 = pneg %p167
      $region54: #{res_block_forward.3} parent=51 // pred_check_branch
        %2396 = sbr.rel (%p2394) target = $region56
      $region55: #{res_block_forward.3} parent=51 // pred_region
        %p2397 = scmp.lt.s32.totalorder %s19, 1
        %s2398 = scalar_select %p2397, %s19, 1
        %s2399 = smul.addr %s2398, 8
        %s2400 = smul.addr %s2399, 8
        %s2401 = scalar_lea.vmem %s5, %s2400
      $region56: #{res_block_forward.3} parent=51 // pred_fallthru
        _
      // Predicated region
      $region57: #{res_block_forward.3} parent=51 // pred_check
        %p2402 = pneg %p193
      $region58: #{res_block_forward.3} parent=51 // pred_check_branch
        %2404 = sbr.rel (%p2402) target = $region60
      $region59: #{res_block_forward.3} parent=51 // pred_region
        %p2405 = scmp.lt.s32.totalorder %s19, 1
        %s2406 = scalar_select %p2405, %s19, 1
        %s2407 = smul.addr %s2406, 2
        %s2408 = scalar_lea.vmem %s6, %s2407
      $region60: #{res_block_forward.3} parent=51 // pred_fallthru
        _
    $region52: #{res_block_forward.3} parent=5 // pred_fallthru
      _
  $region6: #{res_block_forward.3} parent=0 // loop_footer
    %s17 = sadd.s32 1, %s13
  $region7: #{res_block_forward.3} parent=0 // loop_footer_branch
    %12 = sbr.rel target = $region3
  $region8: #{res_block_forward.3} parent=0 // loop_exit
    _

// kernel: res_block_forward.4
$region0: #{res_block_forward.4}
  #allocation0 [shape = 'u32[]', space=smem, size = 0x4, offset = 0x4, fixed_abs, tag = 'smem constant byte address 0x4 - core index']
  #allocation1 [shape = 'u32[144,128]{1,0:T(1,128)}', space=vmem, size = 0x12000, scoped, tag = 'internal scratch']
  #allocation2 [shape = 'bf16[10,10,128]{2,1,0:T(8,128)(2,1)}', space=vmem, size = 0xa000, scoped, tag = 'scratch operand']
  #allocation3 [shape = 'f32[64,128]{1,0:T(8,128)}', space=vmem, size = 0x8000, scoped, tag = 'scratch operand']
  %s0 = inlined_call_operand.vmem [shape: f32[2,64,128], index: 0, kind: input, shape index: {}]
  %s1 = inlined_call_operand.vmem [shape: f32[8,128], index: 1, kind: input, shape index: {}]
  %s2 = inlined_call_operand.vmem [shape: bf16[9,128,128], index: 2, kind: input, shape index: {}]
  %s3 = inlined_call_operand.vmem [shape: f32[2,64,128], index: 3, kind: output, shape index: {0}]
  %s4 = inlined_call_operand.vmem [shape: f32[2,2,128], index: 4, kind: output, shape index: {1}]
  %5 = xla_tuple %s3, %s4
  %s6 = sld [smem:[#allocation0]]
  $region53: #{res_block_forward.4} parent=0
    _
  %s8 = ssub.s32 1, %s6
  %s9 = scalar_select 0, %s8, %s6
  loop: start=0, step=1, limit=4
  $region2: #{res_block_forward.4} parent=0 // loop_pre_header
    _
  $region3: #{res_block_forward.4} parent=0 // loop_header
    %s11 = sphi 0, %s15
    %p12 = scmp.ge.s32.totalorder %s11, 4
    %s21 = sphi 0, %s23
    %s24 = sphi 0, %s21
    %s25 = sphi 0, %s24
    %s41 = sphi 0, %s25
    %s45 = sphi 0, %s45
    %s47 = sphi 0, %s45
    %s48 = sphi 0, %s47
    %s62 = sphi 0, %s48
    %s66 = sphi 0, %s66
    %s68 = sphi 0, %s66
    %s69 = sphi 0, %s68
    %s83 = sphi 0, %s69
    %s89 = sphi 0, %s91
    %s92 = sphi 0, %s89
    %s93 = sphi 0, %s92
    %s109 = sphi 0, %s93
    %s115 = sphi 0, %s117
    %s118 = sphi 0, %s115
    %s119 = sphi 0, %s118
    %s135 = sphi 0, %s119
  $region4: #{res_block_forward.4} parent=0 // loop_header_branch
    %14 = sbr.rel (%p12) target = $region8
  $region5: #{res_block_forward.4} parent=0 // loop_body
    %s16 = ssub.s32 %s11, 1
    %s17 = ssub.s32 %s11, 2
    %s18 = sadd.s32 %s11, 1
    %s19 = ssub.s32 %s11, %s18
    %p20 = scmp.eq.s32.totalorder %s19, 0
    %s22 = sadd.s32 %s21, 1
    %s23 = scalar_select %p20, %s21, %s22
    %p26 = pneg %p20
    %p27 = scmp.eq.s32.totalorder %s11, 1
    %p28 = por %p26, %p27
    %p29 = scmp.ne.s32.totalorder %s21, %s24
    %p30 = scmp.eq.s32.totalorder %s11, 0
    %p31 = por %p29, %p30
    %p32 = scmp.ne.s32.totalorder %s21, %s24
    %p33 = scmp.eq.s32.totalorder %s16, 1
    %p34 = por %p32, %p33
    %p35 = scmp.ne.s32.totalorder %s24, %s25
    %p36 = scmp.eq.s32.totalorder %s16, 0
    %p37 = por %p35, %p36
    %p38 = scmp.ne.s32.totalorder %s24, %s25
    %p39 = scmp.eq.s32.totalorder %s17, 1
    %p40 = por %p38, %p39
    %p42 = scmp.ne.s32.totalorder %s25, %s41
    %p43 = scmp.eq.s32.totalorder %s17, 0
    %p44 = por %p42, %p43
    %s46 = sadd.s32 %s45, 1
    %p49 = scmp.eq.s32.totalorder %s11, 1
    %p50 = scmp.ne.s32.totalorder %s45, %s47
    %p51 = scmp.eq.s32.totalorder %s11, 0
    %p52 = por %p50, %p51
    %p53 = scmp.ne.s32.totalorder %s45, %s47
    %p54 = scmp.eq.s32.totalorder %s16, 1
    %p55 = por %p53, %p54
    %p56 = scmp.ne.s32.totalorder %s47, %s48
    %p57 = scmp.eq.s32.totalorder %s16, 0
    %p58 = por %p56, %p57
    %p59 = scmp.ne.s32.totalorder %s47, %s48
    %p60 = scmp.eq.s32.totalorder %s17, 1
    %p61 = por %p59, %p60
    %p63 = scmp.ne.s32.totalorder %s48, %s62
    %p64 = scmp.eq.s32.totalorder %s17, 0
    %p65 = por %p63, %p64
    %s67 = sadd.s32 %s66, 1
    %p70 = scmp.eq.s32.totalorder %s11, 1
    %p71 = scmp.ne.s32.totalorder %s66, %s68
    %p72 = scmp.eq.s32.totalorder %s11, 0
    %p73 = por %p71, %p72
    %p74 = scmp.ne.s32.totalorder %s66, %s68
    %p75 = scmp.eq.s32.totalorder %s16, 1
    %p76 = por %p74, %p75
    %p77 = scmp.ne.s32.totalorder %s68, %s69
    %p78 = scmp.eq.s32.totalorder %s16, 0
    %p79 = por %p77, %p78
    %p80 = scmp.ne.s32.totalorder %s68, %s69
    %p81 = scmp.eq.s32.totalorder %s17, 1
    %p82 = por %p80, %p81
    %p84 = scmp.ne.s32.totalorder %s69, %s83
    %p85 = scmp.eq.s32.totalorder %s17, 0
    %p86 = por %p84, %p85
    %s87 = ssub.s32 %s11, %s18
    %p88 = scmp.eq.s32.totalorder %s87, 0
    %s90 = sadd.s32 %s89, 1
    %s91 = scalar_select %p88, %s89, %s90
    %p94 = pneg %p88
    %p95 = scmp.eq.s32.totalorder %s11, 1
    %p96 = por %p94, %p95
    %p97 = scmp.ne.s32.totalorder %s89, %s92
    %p98 = scmp.eq.s32.totalorder %s11, 0
    %p99 = por %p97, %p98
    %p100 = scmp.ne.s32.totalorder %s89, %s92
    %p101 = scmp.eq.s32.totalorder %s16, 1
    %p102 = por %p100, %p101
    %p103 = scmp.ne.s32.totalorder %s92, %s93
    %p104 = scmp.eq.s32.totalorder %s16, 0
    %p105 = por %p103, %p104
    %p106 = scmp.ne.s32.totalorder %s92, %s93
    %p107 = scmp.eq.s32.totalorder %s17, 1
    %p108 = por %p106, %p107
    %p110 = scmp.ne.s32.totalorder %s93, %s109
    %p111 = scmp.eq.s32.totalorder %s17, 0
    %p112 = por %p110, %p111
    %s113 = ssub.s32 %s11, %s18
    %p114 = scmp.eq.s32.totalorder %s113, 0
    %s116 = sadd.s32 %s115, 1
    %s117 = scalar_select %p114, %s115, %s116
    %p120 = pneg %p114
    %p121 = scmp.eq.s32.totalorder %s11, 1
    %p122 = por %p120, %p121
    %p123 = scmp.ne.s32.totalorder %s115, %s118
    %p124 = scmp.eq.s32.totalorder %s11, 0
    %p125 = por %p123, %p124
    %p126 = scmp.ne.s32.totalorder %s115, %s118
    %p127 = scmp.eq.s32.totalorder %s16, 1
    %p128 = por %p126, %p127
    %p129 = scmp.ne.s32.totalorder %s118, %s119
    %p130 = scmp.eq.s32.totalorder %s16, 0
    %p131 = por %p129, %p130
    %p132 = scmp.ne.s32.totalorder %s118, %s119
    %p133 = scmp.eq.s32.totalorder %s17, 1
    %p134 = por %p132, %p133
    %p136 = scmp.ne.s32.totalorder %s119, %s135
    %p137 = scmp.eq.s32.totalorder %s17, 0
    %p138 = por %p136, %p137
    %p139 = scmp.le.s32.totalorder 1, %s11
    %p140 = scmp.lt.s32.totalorder %s11, 3
    %p141 = pnand %p139, %p140
    %p142 = pneg %p141
    // Predicated region
    $region9: #{res_block_forward.4} parent=5 // pred_check
      _
    $region10: #{res_block_forward.4} parent=5 // pred_check_branch
      %144 = sbr.rel (%p141) target = $region12
    $region11: #{res_block_forward.4} parent=5 // pred_region
      %s145 = ssub.s32 %s11, 1
      // Predicated region
      $region13: #{res_block_forward.4} parent=11 // pred_check
        %p146 = pneg %p58
      $region14: #{res_block_forward.4} parent=11 // pred_check_branch
        %148 = sbr.rel (%p146) target = $region16
      $region15: #{res_block_forward.4} parent=11 // pred_region
        _
      $region16: #{res_block_forward.4} parent=11 // pred_fallthru
        _
      // Predicated region
      $region17: #{res_block_forward.4} parent=11 // pred_check
        %p149 = pneg %p79
      $region18: #{res_block_forward.4} parent=11 // pred_check_branch
        %151 = sbr.rel (%p149) target = $region20
      $region19: #{res_block_forward.4} parent=11 // pred_region
        _
      $region20: #{res_block_forward.4} parent=11 // pred_fallthru
        _
    $region12: #{res_block_forward.4} parent=5 // pred_fallthru
      _
    %p152 = scmp.lt.s32.totalorder %s11, 2
    // Predicated region
    $region21: #{res_block_forward.4} parent=5 // pred_check
      %p153 = pneg %p152
    $region22: #{res_block_forward.4} parent=5 // pred_check_branch
      %155 = sbr.rel (%p153) target = $region24
    $region23: #{res_block_forward.4} parent=5 // pred_region
      // Predicated region
      $region25: #{res_block_forward.4} parent=23 // pred_check
        %p156 = pneg %p31
      $region26: #{res_block_forward.4} parent=23 // pred_check_branch
        %158 = sbr.rel (%p156) target = $region28
      $region27: #{res_block_forward.4} parent=23 // pred_region
        %p159 = scmp.lt.s32.totalorder %s11, 1
        %s160 = scalar_select %p159, %s11, 1
        %s161 = smul.addr %s160, 8
        %s162 = smul.addr %s161, 8
        %s163 = scalar_lea.vmem %s0, %s162
      $region28: #{res_block_forward.4} parent=23 // pred_fallthru
        _
    $region24: #{res_block_forward.4} parent=5 // pred_fallthru
      _
    %p164 = scmp.le.s32.totalorder 1, %s11
    %p165 = scmp.lt.s32.totalorder %s11, 3
    %p166 = pnand %p164, %p165
    %p167 = pneg %p166
    // Predicated region
    $region29: #{res_block_forward.4} parent=5 // pred_check
      _
    $region30: #{res_block_forward.4} parent=5 // pred_check_branch
      %169 = sbr.rel (%p166) target = $region32
    $region31: #{res_block_forward.4} parent=5 // pred_region
      %s170 = ssub.s32 %s11, 1
      %p171 = scmp.lt.s32.totalorder %s16, 1
      %s172 = scalar_select %p171, %s16, 1
      %s173 = smul.addr %s172, 8
      %s174 = smul.addr %s173, 8
      %s175 = scalar_lea.vmem %s0, %s174
      %p176 = pneg %p37
      %p177 = pneg %p34
      %p178 = pneg %p58
      %p179 = pneg %p55
      %p180 = pneg %p79
      %p181 = pneg %p76
      %p182 = pneg %p105
      %p183 = pneg %p102
      %p184 = scmp.lt.s32.totalorder %s16, 1
      %s185 = scalar_select %p184, %s16, 1
      %s186 = smul.addr %s185, 8
      %s187 = smul.addr %s186, 8
      %s188 = scalar_lea.vmem %s3, %s187
      %p189 = pneg %p131
      %p190 = pneg %p128
      %p191 = scmp.lt.s32.totalorder %s16, 1
      %s192 = scalar_select %p191, %s16, 1
      %s193 = smul.addr %s192, 2
      %s194 = scalar_lea.vmem %s4, %s193
      %p195 = scmp.lt.s32.totalorder %s16, 1
      %s196 = scalar_select %p195, %s16, 1
      %s197 = smul.addr %s196, 8
      %s198 = smul.addr %s197, 8
      %s199 = scalar_lea.vmem %s0, %s198
      %p200 = scmp.lt.s32.totalorder %s16, 1
      %s201 = scalar_select %p200, %s16, 1
      %s202 = smul.addr %s201, 8
      %s203 = smul.addr %s202, 8
      %s204 = scalar_lea.vmem %s3, %s203
      %p205 = scmp.lt.s32.totalorder %s16, 1
      %s206 = scalar_select %p205, %s16, 1
      %s207 = smul.addr %s206, 2
      %s208 = scalar_lea.vmem %s4, %s207
      %v210 = vld [vmem:[%s199] sm:$0xff]
      %v211 = vld [vmem:[%s199 + $0x8] sm:$0xff]
      %v212 = vld [vmem:[%s199 + $0x10] sm:$0xff]
      %v213 = vld [vmem:[%s199 + $0x18] sm:$0xff]
      %v214 = vld [vmem:[%s199 + $0x20] sm:$0xff]
      %v215 = vld [vmem:[%s199 + $0x28] sm:$0xff]
      %v216 = vld [vmem:[%s199 + $0x30] sm:$0xff]
      %v217 = vld [vmem:[%s199 + $0x38] sm:$0xff]
      %v218 = vld [vmem:[%s1] sm:$0x1]
      %v219 = vlaneseq
      %v220 = vshrl.u32 %v219, 7
      %v221 = vsub.s32 0, %v220
      %v222 = vrot.slane %v218, %v221
      %v223 = vmul.f32 %v210, %v222
      %v224 = vmul.f32 %v211, %v222
      %v225 = vmul.f32 %v212, %v222
      %v226 = vmul.f32 %v213, %v222
      %v227 = vmul.f32 %v214, %v222
      %v228 = vmul.f32 %v215, %v222
      %v229 = vmul.f32 %v216, %v222
      %v230 = vmul.f32 %v217, %v222
      %v231 = vld [vmem:[%s1 + $0x1] sm:$0x1]
      %v232 = vlaneseq
      %v233 = vshrl.u32 %v232, 7
      %v234 = vsub.s32 0, %v233
      %v235 = vrot.slane %v231, %v234
      %v236 = vadd.f32 %v223, %v235
      %v237 = vadd.f32 %v224, %v235
      %v238 = vadd.f32 %v225, %v235
      %v239 = vadd.f32 %v226, %v235
      %v240 = vadd.f32 %v227, %v235
      %v241 = vadd.f32 %v228, %v235
      %v242 = vadd.f32 %v229, %v235
      %v243 = vadd.f32 %v230, %v235
      %v244 = vmax.f32 %v236, 0.0
      %v245 = vmax.f32 %v237, 0.0
      %v246 = vmax.f32 %v238, 0.0
      %v247 = vmax.f32 %v239, 0.0
      %v248 = vmax.f32 %v240, 0.0
      %v249 = vmax.f32 %v241, 0.0
      %v250 = vmax.f32 %v242, 0.0
      %v251 = vmax.f32 %v243, 0.0
      %252 = vst [vmem:[#allocation2] sm:$0xf] 0
      %253 = vst [vmem:[#allocation2 + $0x4] sm:$0x1] 0
      %s254 = scalar_lea.vmem [#allocation2], 72
      %255 = vst [vmem:[%s254] sm:$0xf] 0
      %256 = vst [vmem:[%s254 + $0x4] sm:$0x1] 0
      %vm257 = vcmask 1040384
      %vm258 = vsmask.f32 256
      %vm259 = vmand %vm257, %vm258
      %v260 = vld [vmem:[#allocation2] sm:$0x1]
      %v261 = vsel %vm259, 0, %v260
      %262 = vst [vmem:[#allocation2] sm:$0x1] %v261
      %v263 = vld [vmem:[#allocation2 + $0x8] sm:$0x1]
      %v264 = vsel %vm259, 0, %v263
      %265 = vst [vmem:[#allocation2 + $0x8] sm:$0x1] %v264
      %v266 = vld [vmem:[#allocation2 + $0x10] sm:$0x1]
      %v267 = vsel %vm259, 0, %v266
      %268 = vst [vmem:[#allocation2 + $0x10] sm:$0x1] %v267
      %v269 = vld [vmem:[#allocation2 + $0x18] sm:$0x1]
      %v270 = vsel %vm259, 0, %v269
      %271 = vst [vmem:[#allocation2 + $0x18] sm:$0x1] %v270
      %v272 = vld [vmem:[#allocation2 + $0x20] sm:$0x1]
      %v273 = vsel %vm259, 0, %v272
      %274 = vst [vmem:[#allocation2 + $0x20] sm:$0x1] %v273
      %v275 = vld [vmem:[#allocation2 + $0x28] sm:$0x1]
      %v276 = vsel %vm259, 0, %v275
      %277 = vst [vmem:[#allocation2 + $0x28] sm:$0x1] %v276
      %v278 = vld [vmem:[#allocation2 + $0x30] sm:$0x1]
      %v279 = vsel %vm259, 0, %v278
      %280 = vst [vmem:[#allocation2 + $0x30] sm:$0x1] %v279
      %v281 = vld [vmem:[#allocation2 + $0x38] sm:$0x1]
      %v282 = vsel %vm259, 0, %v281
      %283 = vst [vmem:[#allocation2 + $0x38] sm:$0x1] %v282
      %v284 = vld [vmem:[#allocation2 + $0x40] sm:$0x1]
      %v285 = vsel %vm259, 0, %v284
      %286 = vst [vmem:[#allocation2 + $0x40] sm:$0x1] %v285
      %v287 = vld [vmem:[#allocation2 + $0x48] sm:$0x1]
      %v288 = vsel %vm259, 0, %v287
      %289 = vst [vmem:[#allocation2 + $0x48] sm:$0x1] %v288
      %vm290 = vsmask.f32 7938
      %vm291 = vmand %vm257, %vm290
      %v292 = vld [vmem:[#allocation2 + $0x4] sm:$0x1]
      %v293 = vsel %vm291, 0, %v292
      %294 = vst [vmem:[#allocation2 + $0x4] sm:$0x1] %v293
      %v295 = vld [vmem:[#allocation2 + $0xc] sm:$0x1]
      %v296 = vsel %vm291, 0, %v295
      %297 = vst [vmem:[#allocation2 + $0xc] sm:$0x1] %v296
      %v298 = vld [vmem:[#allocation2 + $0x14] sm:$0x1]
      %v299 = vsel %vm291, 0, %v298
      %300 = vst [vmem:[#allocation2 + $0x14] sm:$0x1] %v299
      %v301 = vld [vmem:[#allocation2 + $0x1c] sm:$0x1]
      %v302 = vsel %vm291, 0, %v301
      %303 = vst [vmem:[#allocation2 + $0x1c] sm:$0x1] %v302
      %v304 = vld [vmem:[#allocation2 + $0x24] sm:$0x1]
      %v305 = vsel %vm291, 0, %v304
      %306 = vst [vmem:[#allocation2 + $0x24] sm:$0x1] %v305
      %v307 = vld [vmem:[#allocation2 + $0x2c] sm:$0x1]
      %v308 = vsel %vm291, 0, %v307
      %309 = vst [vmem:[#allocation2 + $0x2c] sm:$0x1] %v308
      %v310 = vld [vmem:[#allocation2 + $0x34] sm:$0x1]
      %v311 = vsel %vm291, 0, %v310
      %312 = vst [vmem:[#allocation2 + $0x34] sm:$0x1] %v311
      %v313 = vld [vmem:[#allocation2 + $0x3c] sm:$0x1]
      %v314 = vsel %vm291, 0, %v313
      %315 = vst [vmem:[#allocation2 + $0x3c] sm:$0x1] %v314
      %v316 = vld [vmem:[#allocation2 + $0x44] sm:$0x1]
      %v317 = vsel %vm291, 0, %v316
      %318 = vst [vmem:[#allocation2 + $0x44] sm:$0x1] %v317
      %v319 = vld [vmem:[#allocation2 + $0x4c] sm:$0x1]
      %v320 = vsel %vm291, 0, %v319
      %321 = vst [vmem:[#allocation2 + $0x4c] sm:$0x1] %v320
      %v322 = vpack.c.bf16 %v244, %v244
      %v323 = vpack.c.bf16 %v245, %v245
      %v324 = vpack.c.bf16 %v246, %v246
      %v325 = vpack.c.bf16 %v247, %v247
      %v326 = vpack.c.bf16 %v248, %v248
      %v327 = vpack.c.bf16 %v249, %v249
      %v328 = vpack.c.bf16 %v250, %v250
      %v329 = vpack.c.bf16 %v251, %v251
      %v338 = vunpack.c.l.b16 %v322
      %v339 = vunpack.c.l.b16 %v323
      %v340 = vunpack.c.l.b16 %v324
      %v341 = vunpack.c.l.b16 %v325
      %v342 = vunpack.c.l.b16 %v326
      %v343 = vunpack.c.l.b16 %v327
      %v344 = vunpack.c.l.b16 %v328
      %v345 = vunpack.c.l.b16 %v329
      %v346 = vpack.c.b16 %v338, %v338
      %v347 = vpack.c.b16 %v339, %v339
      %v348 = vpack.c.b16 %v340, %v340
      %v349 = vpack.c.b16 %v341, %v341
      %v350 = vpack.c.b16 %v342, %v342
      %v351 = vpack.c.b16 %v343, %v343
      %v352 = vpack.c.b16 %v344, %v344
      %v353 = vpack.c.b16 %v345, %v345
      %v355 = vshrl.u32 %v346, 16
      %v357 = vrot.slane %v355, 7
      %v358 = vshll.u32 %v346, 16
      %v360 = vor.u32 %v357, %v358
      %v361 = vrot.slane %v357, 4
      %v363 = vshrl.u32 %v347, 16
      %v365 = vrot.slane %v363, 7
      %v366 = vshll.u32 %v347, 16
      %v368 = vor.u32 %v365, %v366
      %v369 = vrot.slane %v365, 4
      %v371 = vshrl.u32 %v348, 16
      %v373 = vrot.slane %v371, 7
      %v374 = vshll.u32 %v348, 16
      %v376 = vor.u32 %v373, %v374
      %v377 = vrot.slane %v373, 4
      %v379 = vshrl.u32 %v349, 16
      %v381 = vrot.slane %v379, 7
      %v382 = vshll.u32 %v349, 16
      %v384 = vor.u32 %v381, %v382
      %v385 = vrot.slane %v381, 4
      %v387 = vshrl.u32 %v350, 16
      %v389 = vrot.slane %v387, 7
      %v390 = vshll.u32 %v350, 16
      %v392 = vor.u32 %v389, %v390
      %v393 = vrot.slane %v389, 4
      %v395 = vshrl.u32 %v351, 16
      %v397 = vrot.slane %v395, 7
      %v398 = vshll.u32 %v351, 16
      %v400 = vor.u32 %v397, %v398
      %v401 = vrot.slane %v397, 4
      %v403 = vshrl.u32 %v352, 16
      %v405 = vrot.slane %v403, 7
      %v406 = vshll.u32 %v352, 16
      %v408 = vor.u32 %v405, %v406
      %v409 = vrot.slane %v405, 4
      %v411 = vshrl.u32 %v353, 16
      %v413 = vrot.slane %v411, 7
      %v414 = vshll.u32 %v353, 16
      %v416 = vor.u32 %v413, %v414
      %v417 = vrot.slane %v413, 4
      %s434 = scalar_lea.vmem [#allocation2], 8
      %vm435 = vcmask 1043456
      %vm436 = vmand %vm435, %vm290
      %v437 = vld [vmem:[%s434] sm:$0xf]
      %v438 = vsel %vm436, %v360, %v437
      %439 = vst [vmem:[%s434] sm:$0xf] %v438
      %v440 = vld [vmem:[%s434 + $0x4] sm:$0x1]
      %v441 = vsel %vm259, %v361, %v440
      %442 = vst [vmem:[%s434 + $0x4] sm:$0x1] %v441
      %v443 = vld [vmem:[%s434 + $0x8] sm:$0xf]
      %v444 = vsel %vm436, %v368, %v443
      %445 = vst [vmem:[%s434 + $0x8] sm:$0xf] %v444
      %v446 = vld [vmem:[%s434 + $0xc] sm:$0x1]
      %v447 = vsel %vm259, %v369, %v446
      %448 = vst [vmem:[%s434 + $0xc] sm:$0x1] %v447
      %v449 = vld [vmem:[%s434 + $0x10] sm:$0xf]
      %v450 = vsel %vm436, %v376, %v449
      %451 = vst [vmem:[%s434 + $0x10] sm:$0xf] %v450
      %v452 = vld [vmem:[%s434 + $0x14] sm:$0x1]
      %v453 = vsel %vm259, %v377, %v452
      %454 = vst [vmem:[%s434 + $0x14] sm:$0x1] %v453
      %v455 = vld [vmem:[%s434 + $0x18] sm:$0xf]
      %v456 = vsel %vm436, %v384, %v455
      %457 = vst [vmem:[%s434 + $0x18] sm:$0xf] %v456
      %v458 = vld [vmem:[%s434 + $0x1c] sm:$0x1]
      %v459 = vsel %vm259, %v385, %v458
      %460 = vst [vmem:[%s434 + $0x1c] sm:$0x1] %v459
      %v461 = vld [vmem:[%s434 + $0x20] sm:$0xf]
      %v462 = vsel %vm436, %v392, %v461
      %463 = vst [vmem:[%s434 + $0x20] sm:$0xf] %v462
      %v464 = vld [vmem:[%s434 + $0x24] sm:$0x1]
      %v465 = vsel %vm259, %v393, %v464
      %466 = vst [vmem:[%s434 + $0x24] sm:$0x1] %v465
      %v467 = vld [vmem:[%s434 + $0x28] sm:$0xf]
      %v468 = vsel %vm436, %v400, %v467
      %469 = vst [vmem:[%s434 + $0x28] sm:$0xf] %v468
      %v470 = vld [vmem:[%s434 + $0x2c] sm:$0x1]
      %v471 = vsel %vm259, %v401, %v470
      %472 = vst [vmem:[%s434 + $0x2c] sm:$0x1] %v471
      %v473 = vld [vmem:[%s434 + $0x30] sm:$0xf]
      %v474 = vsel %vm436, %v408, %v473
      %475 = vst [vmem:[%s434 + $0x30] sm:$0xf] %v474
      %v476 = vld [vmem:[%s434 + $0x34] sm:$0x1]
      %v477 = vsel %vm259, %v409, %v476
      %478 = vst [vmem:[%s434 + $0x34] sm:$0x1] %v477
      %v479 = vld [vmem:[%s434 + $0x38] sm:$0xf]
      %v480 = vsel %vm436, %v416, %v479
      %481 = vst [vmem:[%s434 + $0x38] sm:$0xf] %v480
      %v482 = vld [vmem:[%s434 + $0x3c] sm:$0x1]
      %v483 = vsel %vm259, %v417, %v482
      %484 = vst [vmem:[%s434 + $0x3c] sm:$0x1] %v483
      %v485 = vld [vmem:[#allocation2] sm:$0xf]
      %v486 = vld [vmem:[#allocation2 + $0x8] sm:$0xf]
      %v487 = vld [vmem:[#allocation2 + $0x10] sm:$0xf]
      %v488 = vld [vmem:[#allocation2 + $0x18] sm:$0xf]
      %v489 = vld [vmem:[#allocation2 + $0x20] sm:$0xf]
      %v490 = vld [vmem:[#allocation2 + $0x28] sm:$0xf]
      %v491 = vld [vmem:[#allocation2 + $0x30] sm:$0xf]
      %v492 = vld [vmem:[#allocation2 + $0x38] sm:$0xf]
      %v493 = vld [vmem:[%s2] sm:$0xf]
      %v494 = vld [vmem:[%s2 + $0x4] sm:$0xf]
      %v495 = vld [vmem:[%s2 + $0x8] sm:$0xf]
      %v496 = vld [vmem:[%s2 + $0xc] sm:$0xf]
      %v497 = vld [vmem:[%s2 + $0x10] sm:$0xf]
      %v498 = vld [vmem:[%s2 + $0x14] sm:$0xf]
      %v499 = vld [vmem:[%s2 + $0x18] sm:$0xf]
      %v500 = vld [vmem:[%s2 + $0x1c] sm:$0xf]
      %v501 = vld [vmem:[%s2 + $0x20] sm:$0xf]
      %v502 = vld [vmem:[%s2 + $0x24] sm:$0xf]
      %v503 = vld [vmem:[%s2 + $0x28] sm:$0xf]
      %v504 = vld [vmem:[%s2 + $0x2c] sm:$0xf]
      %v505 = vld [vmem:[%s2 + $0x30] sm:$0xf]
      %v506 = vld [vmem:[%s2 + $0x34] sm:$0xf]
      %v507 = vld [vmem:[%s2 + $0x38] sm:$0xf]
      %v508 = vld [vmem:[%s2 + $0x3c] sm:$0xf]
      %v517 = vunpack.c.l.b16 %v485
      %v518 = vunpack.c.l.b16 %v486
      %v519 = vunpack.c.l.b16 %v487
      %v520 = vunpack.c.l.b16 %v488
      %v521 = vunpack.c.l.b16 %v489
      %v522 = vunpack.c.l.b16 %v490
      %v523 = vunpack.c.l.b16 %v491
      %v524 = vunpack.c.l.b16 %v492
      %v525 = vpack.c.b16 %v518, %v517
      %v526 = vpack.c.b16 %v520, %v519
      %v527 = vpack.c.b16 %v522, %v521
      %v528 = vpack.c.b16 %v524, %v523
      %v549 = vunpack.c.l.b16 %v493
      %v550 = vunpack.c.l.b16 %v494
      %v551 = vunpack.c.l.b16 %v495
      %v552 = vunpack.c.l.b16 %v496
      %v553 = vunpack.c.l.b16 %v497
      %v554 = vunpack.c.l.b16 %v498
      %v555 = vunpack.c.l.b16 %v499
      %v556 = vunpack.c.l.b16 %v500
      %v557 = vunpack.c.l.b16 %v501
      %v558 = vunpack.c.l.b16 %v502
      %v559 = vunpack.c.l.b16 %v503
      %v560 = vunpack.c.l.b16 %v504
      %v561 = vunpack.c.l.b16 %v505
      %v562 = vunpack.c.l.b16 %v506
      %v563 = vunpack.c.l.b16 %v507
      %v564 = vunpack.c.l.b16 %v508
      %v565 = vpack.c.b16 %v550, %v549
      %v566 = vpack.c.b16 %v552, %v551
      %v567 = vpack.c.b16 %v554, %v553
      %v568 = vpack.c.b16 %v556, %v555
      %v569 = vpack.c.b16 %v558, %v557
      %v570 = vpack.c.b16 %v560, %v559
      %v571 = vpack.c.b16 %v562, %v561
      %v572 = vpack.c.b16 %v564, %v563
      %581 = vmatprep.subr.bf16.mxu0 0
      %582 = vmatpush1.bf16.msra.mxu0 %v572
      %583 = vmatprep.subr.bf16.mxu0 0
      %584 = vmatpush1.bf16.msra.mxu0 %v571
      %585 = vmatprep.subr.bf16.mxu0 0
      %586 = vmatpush1.bf16.msra.mxu0 %v570
      %587 = vmatprep.subr.bf16.mxu0 0
      %588 = vmatpush1.bf16.msra.mxu0 %v569
      %589 = vmatprep.subr.bf16.mxu0 0
      %590 = vmatpush1.bf16.msra.mxu0 %v568
      %591 = vmatprep.subr.bf16.mxu0 0
      %592 = vmatpush1.bf16.msra.mxu0 %v567
      %593 = vmatprep.subr.bf16.mxu0 0
      %594 = vmatpush1.bf16.msra.mxu0 %v566
      %595 = vmatprep.subr.bf16.mxu0 0
      %596 = vmatpush1.bf16.msra.mxu0 %v565
      %597 = vmatprep.subr.bf16.mxu0 0
      %598 = vmatpush2.bf16.msra.mxu0 0
      %599 = vmatprep.subr.bf16.mxu0 0
      %600 = vmatpush2.bf16.msra.mxu0 0
      %601 = vmatprep.subr.bf16.mxu0 0
      %602 = vmatpush2.bf16.msra.mxu0 0
      %603 = vmatprep.subr.bf16.mxu0 0
      %604 = vmatpush2.bf16.msra.mxu0 0
      %605 = vmatprep.subr.bf16.mxu0 0
      %606 = vmatpush2.bf16.msra.mxu0 0
      %607 = vmatprep.subr.bf16.mxu0 0
      %608 = vmatpush2.bf16.msra.mxu0 0
      %609 = vmatprep.subr.bf16.mxu0 0
      %610 = vmatpush2.bf16.msra.mxu0 0
      %611 = vmatprep.subr.bf16.mxu0 0
      %612 = vmatpush2.bf16.msra.mxu0 0
      %613 = vmatprep.mubr.bf16.mxu0 0
      %614 = vmatmul.mubr.bf16.gmra.mxu0 %v525
      %v615 = vpop.f32.mrf.mxu0
      %v616 = vadd.f32 0.0, %v615
      %v617 = vpop.f32.mrf.mxu0
      %v618 = vpop.f32.mrf.mxu0
      %v619 = vadd.f32 0.0, %v618
      %v620 = vpop.f32.mrf.mxu0
      %621 = vmatprep.mubr.bf16.mxu0 0
      %622 = vmatmul.mubr.bf16.gmra.mxu0 %v526
      %v623 = vpop.f32.mrf.mxu0
      %v624 = vadd.f32 0.0, %v623
      %v625 = vpop.f32.mrf.mxu0
      %v626 = vpop.f32.mrf.mxu0
      %v627 = vadd.f32 0.0, %v626
      %v628 = vpop.f32.mrf.mxu0
      %629 = vmatprep.mubr.bf16.mxu0 0
      %630 = vmatmul.mubr.bf16.gmra.mxu0 %v527
      %v631 = vpop.f32.mrf.mxu0
      %v632 = vadd.f32 0.0, %v631
      %v633 = vpop.f32.mrf.mxu0
      %v634 = vpop.f32.mrf.mxu0
      %v635 = vadd.f32 0.0, %v634
      %v636 = vpop.f32.mrf.mxu0
      %637 = vmatprep.mubr.bf16.mxu0 0
      %638 = vmatmul.mubr.bf16.gmra.mxu0 %v528
      %v639 = vpop.f32.mrf.mxu0
      %v640 = vadd.f32 0.0, %v639
      %v641 = vpop.f32.mrf.mxu0
      %v642 = vpop.f32.mrf.mxu0
      %v643 = vadd.f32 0.0, %v642
      %v644 = vpop.f32.mrf.mxu0
      %645 = vdwg.mxu0
      %646 = vst [vmem:[#allocation3] sm:$0xff] %v616
      %647 = vst [vmem:[#allocation3 + $0x8] sm:$0xff] %v619
      %648 = vst [vmem:[#allocation3 + $0x10] sm:$0xff] %v624
      %649 = vst [vmem:[#allocation3 + $0x18] sm:$0xff] %v627
      %650 = vst [vmem:[#allocation3 + $0x20] sm:$0xff] %v632
      %651 = vst [vmem:[#allocation3 + $0x28] sm:$0xff] %v635
      %652 = vst [vmem:[#allocation3 + $0x30] sm:$0xff] %v640
      %653 = vst [vmem:[#allocation3 + $0x38] sm:$0xff] %v643
      %v654 = vld [vmem:[#allocation2] sm:$0xf]
      %v655 = vld [vmem:[#allocation2 + $0x4] sm:$0x1]
      %v656 = vld [vmem:[#allocation2 + $0x8] sm:$0xf]
      %v657 = vld [vmem:[#allocation2 + $0xc] sm:$0x1]
      %v658 = vld [vmem:[#allocation2 + $0x10] sm:$0xf]
      %v659 = vld [vmem:[#allocation2 + $0x14] sm:$0x1]
      %v660 = vld [vmem:[#allocation2 + $0x18] sm:$0xf]
      %v661 = vld [vmem:[#allocation2 + $0x1c] sm:$0x1]
      %v662 = vld [vmem:[#allocation2 + $0x20] sm:$0xf]
      %v663 = vld [vmem:[#allocation2 + $0x24] sm:$0x1]
      %v664 = vld [vmem:[#allocation2 + $0x28] sm:$0xf]
      %v665 = vld [vmem:[#allocation2 + $0x2c] sm:$0x1]
      %v666 = vld [vmem:[#allocation2 + $0x30] sm:$0xf]
      %v667 = vld [vmem:[#allocation2 + $0x34] sm:$0x1]
      %v668 = vld [vmem:[#allocation2 + $0x38] sm:$0xf]
      %v669 = vld [vmem:[#allocation2 + $0x3c] sm:$0x1]
      %vm670 = vsmask.f32 3328
      %vm671 = vsmask.f32 7440
      %vm672 = vmor %vm670, %vm671
      %v674 = vshrl.u32 %v654, 16
      %v676 = vrot.slane %v674, 4
      %v677 = vshll.u32 %v654, 16
      %v679 = vrot.slane %v677, 5
      %v680 = vor.u32 %v676, %v679
      %v681 = vrot.slane %v680, 4
      %v683 = vshll.u32 %v655, 16
      %v685 = vrot.slane %v683, 5
      %v686 = vsel %vm672, %v681, %v685
      %v688 = vshrl.u32 %v656, 16
      %v690 = vrot.slane %v688, 4
      %v691 = vshll.u32 %v656, 16
      %v693 = vrot.slane %v691, 5
      %v694 = vor.u32 %v690, %v693
      %v695 = vrot.slane %v694, 4
      %v697 = vshll.u32 %v657, 16
      %v699 = vrot.slane %v697, 5
      %v700 = vsel %vm672, %v695, %v699
      %v702 = vshrl.u32 %v658, 16
      %v704 = vrot.slane %v702, 4
      %v705 = vshll.u32 %v658, 16
      %v707 = vrot.slane %v705, 5
      %v708 = vor.u32 %v704, %v707
      %v709 = vrot.slane %v708, 4
      %v711 = vshll.u32 %v659, 16
      %v713 = vrot.slane %v711, 5
      %v714 = vsel %vm672, %v709, %v713
      %v716 = vshrl.u32 %v660, 16
      %v718 = vrot.slane %v716, 4
      %v719 = vshll.u32 %v660, 16
      %v721 = vrot.slane %v719, 5
      %v722 = vor.u32 %v718, %v721
      %v723 = vrot.slane %v722, 4
      %v725 = vshll.u32 %v661, 16
      %v727 = vrot.slane %v725, 5
      %v728 = vsel %vm672, %v723, %v727
      %v730 = vshrl.u32 %v662, 16
      %v732 = vrot.slane %v730, 4
      %v733 = vshll.u32 %v662, 16
      %v735 = vrot.slane %v733, 5
      %v736 = vor.u32 %v732, %v735
      %v737 = vrot.slane %v736, 4
      %v739 = vshll.u32 %v663, 16
      %v741 = vrot.slane %v739, 5
      %v742 = vsel %vm672, %v737, %v741
      %v744 = vshrl.u32 %v664, 16
      %v746 = vrot.slane %v744, 4
      %v747 = vshll.u32 %v664, 16
      %v749 = vrot.slane %v747, 5
      %v750 = vor.u32 %v746, %v749
      %v751 = vrot.slane %v750, 4
      %v753 = vshll.u32 %v665, 16
      %v755 = vrot.slane %v753, 5
      %v756 = vsel %vm672, %v751, %v755
      %v758 = vshrl.u32 %v666, 16
      %v760 = vrot.slane %v758, 4
      %v761 = vshll.u32 %v666, 16
      %v763 = vrot.slane %v761, 5
      %v764 = vor.u32 %v760, %v763
      %v765 = vrot.slane %v764, 4
      %v767 = vshll.u32 %v667, 16
      %v769 = vrot.slane %v767, 5
      %v770 = vsel %vm672, %v765, %v769
      %v772 = vshrl.u32 %v668, 16
      %v774 = vrot.slane %v772, 4
      %v775 = vshll.u32 %v668, 16
      %v777 = vrot.slane %v775, 5
      %v778 = vor.u32 %v774, %v777
      %v779 = vrot.slane %v778, 4
      %v781 = vshll.u32 %v669, 16
      %v783 = vrot.slane %v781, 5
      %v784 = vsel %vm672, %v779, %v783
      %s785 = scalar_lea.vmem %s2, 64
      %v786 = vld [vmem:[%s785] sm:$0xf]
      %v787 = vld [vmem:[%s785 + $0x4] sm:$0xf]
      %v788 = vld [vmem:[%s785 + $0x8] sm:$0xf]
      %v789 = vld [vmem:[%s785 + $0xc] sm:$0xf]
      %v790 = vld [vmem:[%s785 + $0x10] sm:$0xf]
      %v791 = vld [vmem:[%s785 + $0x14] sm:$0xf]
      %v792 = vld [vmem:[%s785 + $0x18] sm:$0xf]
      %v793 = vld [vmem:[%s785 + $0x1c] sm:$0xf]
      %v794 = vld [vmem:[%s785 + $0x20] sm:$0xf]
      %v795 = vld [vmem:[%s785 + $0x24] sm:$0xf]
      %v796 = vld [vmem:[%s785 + $0x28] sm:$0xf]
      %v797 = vld [vmem:[%s785 + $0x2c] sm:$0xf]
      %v798 = vld [vmem:[%s785 + $0x30] sm:$0xf]
      %v799 = vld [vmem:[%s785 + $0x34] sm:$0xf]
      %v800 = vld [vmem:[%s785 + $0x38] sm:$0xf]
      %v801 = vld [vmem:[%s785 + $0x3c] sm:$0xf]
      %v802 = vunpack.c.l.b16 %v686
      %v803 = vunpack.c.l.b16 %v700
      %v804 = vunpack.c.l.b16 %v714
      %v805 = vunpack.c.l.b16 %v728
      %v806 = vunpack.c.l.b16 %v742
      %v807 = vunpack.c.l.b16 %v756
      %v808 = vunpack.c.l.b16 %v770
      %v809 = vunpack.c.l.b16 %v784
      %v810 = vpack.c.b16 %v803, %v802
      %v811 = vpack.c.b16 %v805, %v804
      %v812 = vpack.c.b16 %v807, %v806
      %v813 = vpack.c.b16 %v809, %v808
      %v834 = vunpack.c.l.b16 %v786
      %v835 = vunpack.c.l.b16 %v787
      %v836 = vunpack.c.l.b16 %v788
      %v837 = vunpack.c.l.b16 %v789
      %v838 = vunpack.c.l.b16 %v790
      %v839 = vunpack.c.l.b16 %v791
      %v840 = vunpack.c.l.b16 %v792
      %v841 = vunpack.c.l.b16 %v793
      %v842 = vunpack.c.l.b16 %v794
      %v843 = vunpack.c.l.b16 %v795
      %v844 = vunpack.c.l.b16 %v796
      %v845 = vunpack.c.l.b16 %v797
      %v846 = vunpack.c.l.b16 %v798
      %v847 = vunpack.c.l.b16 %v799
      %v848 = vunpack.c.l.b16 %v800
      %v849 = vunpack.c.l.b16 %v801
      %v850 = vpack.c.b16 %v835, %v834
      %v851 = vpack.c.b16 %v837, %v836
      %v852 = vpack.c.b16 %v839, %v838
      %v853 = vpack.c.b16 %v841, %v840
      %v854 = vpack.c.b16 %v843, %v842
      %v855 = vpack.c.b16 %v845, %v844
      %v856 = vpack.c.b16 %v847, %v846
      %v857 = vpack.c.b16 %v849, %v848
      %866 = vmatprep.subr.bf16.mxu0 0
      %867 = vmatpush1.bf16.msra.mxu0 %v857
      %868 = vmatprep.subr.bf16.mxu0 0
      %869 = vmatpush1.bf16.msra.mxu0 %v856
      %870 = vmatprep.subr.bf16.mxu0 0
      %871 = vmatpush1.bf16.msra.mxu0 %v855
      %872 = vmatprep.subr.bf16.mxu0 0
      %873 = vmatpush1.bf16.msra.mxu0 %v854
      %874 = vmatprep.subr.bf16.mxu0 0
      %875 = vmatpush1.bf16.msra.mxu0 %v853
      %876 = vmatprep.subr.bf16.mxu0 0
      %877 = vmatpush1.bf16.msra.mxu0 %v852
      %878 = vmatprep.subr.bf16.mxu0 0
      %879 = vmatpush1.bf16.msra.mxu0 %v851
      %880 = vmatprep.subr.bf16.mxu0 0
      %881 = vmatpush1.bf16.msra.mxu0 %v850
      %882 = vmatprep.subr.bf16.mxu0 0
      %883 = vmatpush2.bf16.msra.mxu0 0
      %884 = vmatprep.subr.bf16.mxu0 0
      %885 = vmatpush2.bf16.msra.mxu0 0
      %886 = vmatprep.subr.bf16.mxu0 0
      %887 = vmatpush2.bf16.msra.mxu0 0
      %888 = vmatprep.subr.bf16.mxu0 0
      %889 = vmatpush2.bf16.msra.mxu0 0
      %890 = vmatprep.subr.bf16.mxu0 0
      %891 = vmatpush2.bf16.msra.mxu0 0
      %892 = vmatprep.subr.bf16.mxu0 0
      %893 = vmatpush2.bf16.msra.mxu0 0
      %894 = vmatprep.subr.bf16.mxu0 0
      %895 = vmatpush2.bf16.msra.mxu0 0
      %896 = vmatprep.subr.bf16.mxu0 0
      %897 = vmatpush2.bf16.msra.mxu0 0
      %898 = vmatprep.mubr.bf16.mxu0 0
      %899 = vmatmul.mubr.bf16.gmra.mxu0 %v810
      %v900 = vpop.f32.mrf.mxu0
      %v901 = vadd.f32 0.0, %v900
      %v902 = vpop.f32.mrf.mxu0
      %v903 = vpop.f32.mrf.mxu0
      %v904 = vadd.f32 0.0, %v903
      %v905 = vpop.f32.mrf.mxu0
      %906 = vmatprep.mubr.bf16.mxu0 0
      %907 = vmatmul.mubr.bf16.gmra.mxu0 %v811
      %v908 = vpop.f32.mrf.mxu0
      %v909 = vadd.f32 0.0, %v908
      %v910 = vpop.f32.mrf.mxu0
      %v911 = vpop.f32.mrf.mxu0
      %v912 = vadd.f32 0.0, %v911
      %v913 = vpop.f32.mrf.mxu0
      %914 = vmatprep.mubr.bf16.mxu0 0
      %915 = vmatmul.mubr.bf16.gmra.mxu0 %v812
      %v916 = vpop.f32.mrf.mxu0
      %v917 = vadd.f32 0.0, %v916
      %v918 = vpop.f32.mrf.mxu0
      %v919 = vpop.f32.mrf.mxu0
      %v920 = vadd.f32 0.0, %v919
      %v921 = vpop.f32.mrf.mxu0
      %922 = vmatprep.mubr.bf16.mxu0 0
      %923 = vmatmul.mubr.bf16.gmra.mxu0 %v813
      %v924 = vpop.f32.mrf.mxu0
      %v925 = vadd.f32 0.0, %v924
      %v926 = vpop.f32.mrf.mxu0
      %v927 = vpop.f32.mrf.mxu0
      %v928 = vadd.f32 0.0, %v927
      %v929 = vpop.f32.mrf.mxu0
      %930 = vdwg.mxu0
      %v931 = vld [vmem:[#allocation3] sm:$0xff]
      %v932 = vld [vmem:[#allocation3 + $0x8] sm:$0xff]
      %v933 = vld [vmem:[#allocation3 + $0x10] sm:$0xff]
      %v934 = vld [vmem:[#allocation3 + $0x18] sm:$0xff]
      %v935 = vld [vmem:[#allocation3 + $0x20] sm:$0xff]
      %v936 = vld [vmem:[#allocation3 + $0x28] sm:$0xff]
      %v937 = vld [vmem:[#allocation3 + $0x30] sm:$0xff]
      %v938 = vld [vmem:[#allocation3 + $0x38] sm:$0xff]
      %v939 = vadd.f32 %v931, %v901
      %v940 = vadd.f32 %v932, %v904
      %v941 = vadd.f32 %v933, %v909
      %v942 = vadd.f32 %v934, %v912
      %v943 = vadd.f32 %v935, %v917
      %v944 = vadd.f32 %v936, %v920
      %v945 = vadd.f32 %v937, %v925
      %v946 = vadd.f32 %v938, %v928
      %947 = vst [vmem:[#allocation3] sm:$0xff] %v939
      %948 = vst [vmem:[#allocation3 + $0x8] sm:$0xff] %v940
      %949 = vst [vmem:[#allocation3 + $0x10] sm:$0xff] %v941
      %950 = vst [vmem:[#allocation3 + $0x18] sm:$0xff] %v942
      %951 = vst [vmem:[#allocation3 + $0x20] sm:$0xff] %v943
      %952 = vst [vmem:[#allocation3 + $0x28] sm:$0xff] %v944
      %953 = vst [vmem:[#allocation3 + $0x30] sm:$0xff] %v945
      %954 = vst [vmem:[#allocation3 + $0x38] sm:$0xff] %v946
      %v955 = vld [vmem:[#allocation2] sm:$0xe]
      %v956 = vld [vmem:[#allocation2 + $0x4] sm:$0x1]
      %v957 = vld [vmem:[#allocation2 + $0x8] sm:$0xe]
      %v958 = vld [vmem:[#allocation2 + $0xc] sm:$0x1]
      %v959 = vld [vmem:[#allocation2 + $0x10] sm:$0xe]
      %v960 = vld [vmem:[#allocation2 + $0x14] sm:$0x1]
      %v961 = vld [vmem:[#allocation2 + $0x18] sm:$0xe]
      %v962 = vld [vmem:[#allocation2 + $0x1c] sm:$0x1]
      %v963 = vld [vmem:[#allocation2 + $0x20] sm:$0xe]
      %v964 = vld [vmem:[#allocation2 + $0x24] sm:$0x1]
      %v965 = vld [vmem:[#allocation2 + $0x28] sm:$0xe]
      %v966 = vld [vmem:[#allocation2 + $0x2c] sm:$0x1]
      %v967 = vld [vmem:[#allocation2 + $0x30] sm:$0xe]
      %v968 = vld [vmem:[#allocation2 + $0x34] sm:$0x1]
      %v969 = vld [vmem:[#allocation2 + $0x38] sm:$0xe]
      %v970 = vld [vmem:[#allocation2 + $0x3c] sm:$0x1]
      %vm987 = vcmask 1042432
      %vm988 = vcmask 1046532
      %vm989 = vmor %vm987, %vm988
      %v990 = vrot.slane %v955, 5
      %v991 = vrot.slane %v990, 4
      %v992 = vrot.slane %v956, 5
      %v993 = vsel %vm989, %v991, %v992
      %v994 = vrot.slane %v957, 5
      %v995 = vrot.slane %v994, 4
      %v996 = vrot.slane %v958, 5
      %v997 = vsel %vm989, %v995, %v996
      %v998 = vrot.slane %v959, 5
      %v999 = vrot.slane %v998, 4
      %v1000 = vrot.slane %v960, 5
      %v1001 = vsel %vm989, %v999, %v1000
      %v1002 = vrot.slane %v961, 5
      %v1003 = vrot.slane %v1002, 4
      %v1004 = vrot.slane %v962, 5
      %v1005 = vsel %vm989, %v1003, %v1004
      %v1006 = vrot.slane %v963, 5
      %v1007 = vrot.slane %v1006, 4
      %v1008 = vrot.slane %v964, 5
      %v1009 = vsel %vm989, %v1007, %v1008
      %v1010 = vrot.slane %v965, 5
      %v1011 = vrot.slane %v1010, 4
      %v1012 = vrot.slane %v966, 5
      %v1013 = vsel %vm989, %v1011, %v1012
      %v1014 = vrot.slane %v967, 5
      %v1015 = vrot.slane %v1014, 4
      %v1016 = vrot.slane %v968, 5
      %v1017 = vsel %vm989, %v1015, %v1016
      %v1018 = vrot.slane %v969, 5
      %v1019 = vrot.slane %v1018, 4
      %v1020 = vrot.slane %v970, 5
      %v1021 = vsel %vm989, %v1019, %v1020
      %s1022 = scalar_lea.vmem %s2, 128
      %v1023 = vld [vmem:[%s1022] sm:$0xf]
      %v1024 = vld [vmem:[%s1022 + $0x4] sm:$0xf]
      %v1025 = vld [vmem:[%s1022 + $0x8] sm:$0xf]
      %v1026 = vld [vmem:[%s1022 + $0xc] sm:$0xf]
      %v1027 = vld [vmem:[%s1022 + $0x10] sm:$0xf]
      %v1028 = vld [vmem:[%s1022 + $0x14] sm:$0xf]
      %v1029 = vld [vmem:[%s1022 + $0x18] sm:$0xf]
      %v1030 = vld [vmem:[%s1022 + $0x1c] sm:$0xf]
      %v1031 = vld [vmem:[%s1022 + $0x20] sm:$0xf]
      %v1032 = vld [vmem:[%s1022 + $0x24] sm:$0xf]
      %v1033 = vld [vmem:[%s1022 + $0x28] sm:$0xf]
      %v1034 = vld [vmem:[%s1022 + $0x2c] sm:$0xf]
      %v1035 = vld [vmem:[%s1022 + $0x30] sm:$0xf]
      %v1036 = vld [vmem:[%s1022 + $0x34] sm:$0xf]
      %v1037 = vld [vmem:[%s1022 + $0x38] sm:$0xf]
      %v1038 = vld [vmem:[%s1022 + $0x3c] sm:$0xf]
      %v1039 = vunpack.c.l.b16 %v993
      %v1040 = vunpack.c.l.b16 %v997
      %v1041 = vunpack.c.l.b16 %v1001
      %v1042 = vunpack.c.l.b16 %v1005
      %v1043 = vunpack.c.l.b16 %v1009
      %v1044 = vunpack.c.l.b16 %v1013
      %v1045 = vunpack.c.l.b16 %v1017
      %v1046 = vunpack.c.l.b16 %v1021
      %v1047 = vpack.c.b16 %v1040, %v1039
      %v1048 = vpack.c.b16 %v1042, %v1041
      %v1049 = vpack.c.b16 %v1044, %v1043
      %v1050 = vpack.c.b16 %v1046, %v1045
      %v1071 = vunpack.c.l.b16 %v1023
      %v1072 = vunpack.c.l.b16 %v1024
      %v1073 = vunpack.c.l.b16 %v1025
      %v1074 = vunpack.c.l.b16 %v1026
      %v1075 = vunpack.c.l.b16 %v1027
      %v1076 = vunpack.c.l.b16 %v1028
      %v1077 = vunpack.c.l.b16 %v1029
      %v1078 = vunpack.c.l.b16 %v1030
      %v1079 = vunpack.c.l.b16 %v1031
      %v1080 = vunpack.c.l.b16 %v1032
      %v1081 = vunpack.c.l.b16 %v1033
      %v1082 = vunpack.c.l.b16 %v1034
      %v1083 = vunpack.c.l.b16 %v1035
      %v1084 = vunpack.c.l.b16 %v1036
      %v1085 = vunpack.c.l.b16 %v1037
      %v1086 = vunpack.c.l.b16 %v1038
      %v1087 = vpack.c.b16 %v1072, %v1071
      %v1088 = vpack.c.b16 %v1074, %v1073
      %v1089 = vpack.c.b16 %v1076, %v1075
      %v1090 = vpack.c.b16 %v1078, %v1077
      %v1091 = vpack.c.b16 %v1080, %v1079
      %v1092 = vpack.c.b16 %v1082, %v1081
      %v1093 = vpack.c.b16 %v1084, %v1083
      %v1094 = vpack.c.b16 %v1086, %v1085
      %1103 = vmatprep.subr.bf16.mxu0 0
      %1104 = vmatpush1.bf16.msra.mxu0 %v1094
      %1105 = vmatprep.subr.bf16.mxu0 0
      %1106 = vmatpush1.bf16.msra.mxu0 %v1093
      %1107 = vmatprep.subr.bf16.mxu0 0
      %1108 = vmatpush1.bf16.msra.mxu0 %v1092
      %1109 = vmatprep.subr.bf16.mxu0 0
      %1110 = vmatpush1.bf16.msra.mxu0 %v1091
      %1111 = vmatprep.subr.bf16.mxu0 0
      %1112 = vmatpush1.bf16.msra.mxu0 %v1090
      %1113 = vmatprep.subr.bf16.mxu0 0
      %1114 = vmatpush1.bf16.msra.mxu0 %v1089
      %1115 = vmatprep.subr.bf16.mxu0 0
      %1116 = vmatpush1.bf16.msra.mxu0 %v1088
      %1117 = vmatprep.subr.bf16.mxu0 0
      %1118 = vmatpush1.bf16.msra.mxu0 %v1087
      %1119 = vmatprep.subr.bf16.mxu0 0
      %1120 = vmatpush2.bf16.msra.mxu0 0
      %1121 = vmatprep.subr.bf16.mxu0 0
      %1122 = vmatpush2.bf16.msra.mxu0 0
      %1123 = vmatprep.subr.bf16.mxu0 0
      %1124 = vmatpush2.bf16.msra.mxu0 0
      %1125 = vmatprep.subr.bf16.mxu0 0
      %1126 = vmatpush2.bf16.msra.mxu0 0
      %1127 = vmatprep.subr.bf16.mxu0 0
      %1128 = vmatpush2.bf16.msra.mxu0 0
      %1129 = vmatprep.subr.bf16.mxu0 0
      %1130 = vmatpush2.bf16.msra.mxu0 0
      %1131 = vmatprep.subr.bf16.mxu0 0
      %1132 = vmatpush2.bf16.msra.mxu0 0
      %1133 = vmatprep.subr.bf16.mxu0 0
      %1134 = vmatpush2.bf16.msra.mxu0 0
      %1135 = vmatprep.mubr.bf16.mxu0 0
      %1136 = vmatmul.mubr.bf16.gmra.mxu0 %v1047
      %v1137 = vpop.f32.mrf.mxu0
      %v1138 = vadd.f32 0.0, %v1137
      %v1139 = vpop.f32.mrf.mxu0
      %v1140 = vpop.f32.mrf.mxu0
      %v1141 = vadd.f32 0.0, %v1140
      %v1142 = vpop.f32.mrf.mxu0
      %1143 = vmatprep.mubr.bf16.mxu0 0
      %1144 = vmatmul.mubr.bf16.gmra.mxu0 %v1048
      %v1145 = vpop.f32.mrf.mxu0
      %v1146 = vadd.f32 0.0, %v1145
      %v1147 = vpop.f32.mrf.mxu0
      %v1148 = vpop.f32.mrf.mxu0
      %v1149 = vadd.f32 0.0, %v1148
      %v1150 = vpop.f32.mrf.mxu0
      %1151 = vmatprep.mubr.bf16.mxu0 0
      %1152 = vmatmul.mubr.bf16.gmra.mxu0 %v1049
      %v1153 = vpop.f32.mrf.mxu0
      %v1154 = vadd.f32 0.0, %v1153
      %v1155 = vpop.f32.mrf.mxu0
      %v1156 = vpop.f32.mrf.mxu0
      %v1157 = vadd.f32 0.0, %v1156
      %v1158 = vpop.f32.mrf.mxu0
      %1159 = vmatprep.mubr.bf16.mxu0 0
      %1160 = vmatmul.mubr.bf16.gmra.mxu0 %v1050
      %v1161 = vpop.f32.mrf.mxu0
      %v1162 = vadd.f32 0.0, %v1161
      %v1163 = vpop.f32.mrf.mxu0
      %v1164 = vpop.f32.mrf.mxu0
      %v1165 = vadd.f32 0.0, %v1164
      %v1166 = vpop.f32.mrf.mxu0
      %1167 = vdwg.mxu0
      %v1168 = vld [vmem:[#allocation3] sm:$0xff]
      %v1169 = vld [vmem:[#allocation3 + $0x8] sm:$0xff]
      %v1170 = vld [vmem:[#allocation3 + $0x10] sm:$0xff]
      %v1171 = vld [vmem:[#allocation3 + $0x18] sm:$0xff]
      %v1172 = vld [vmem:[#allocation3 + $0x20] sm:$0xff]
      %v1173 = vld [vmem:[#allocation3 + $0x28] sm:$0xff]
      %v1174 = vld [vmem:[#allocation3 + $0x30] sm:$0xff]
      %v1175 = vld [vmem:[#allocation3 + $0x38] sm:$0xff]
      %v1176 = vadd.f32 %v1168, %v1138
      %v1177 = vadd.f32 %v1169, %v1141
      %v1178 = vadd.f32 %v1170, %v1146
      %v1179 = vadd.f32 %v1171, %v1149
      %v1180 = vadd.f32 %v1172, %v1154
      %v1181 = vadd.f32 %v1173, %v1157
      %v1182 = vadd.f32 %v1174, %v1162
      %v1183 = vadd.f32 %v1175, %v1165
      %1184 = vst [vmem:[#allocation3] sm:$0xff] %v1176
      %1185 = vst [vmem:[#allocation3 + $0x8] sm:$0xff] %v1177
      %1186 = vst [vmem:[#allocation3 + $0x10] sm:$0xff] %v1178
      %1187 = vst [vmem:[#allocation3 + $0x18] sm:$0xff] %v1179
      %1188 = vst [vmem:[#allocation3 + $0x20] sm:$0xff] %v1180
      %1189 = vst [vmem:[#allocation3 + $0x28] sm:$0xff] %v1181
      %1190 = vst [vmem:[#allocation3 + $0x30] sm:$0xff] %v1182
      %1191 = vst [vmem:[#allocation3 + $0x38] sm:$0xff] %v1183
      %v1192 = vld [vmem:[%s434] sm:$0xf]
      %v1193 = vld [vmem:[%s434 + $0x8] sm:$0xf]
      %v1194 = vld [vmem:[%s434 + $0x10] sm:$0xf]
      %v1195 = vld [vmem:[%s434 + $0x18] sm:$0xf]
      %v1196 = vld [vmem:[%s434 + $0x20] sm:$0xf]
      %v1197 = vld [vmem:[%s434 + $0x28] sm:$0xf]
      %v1198 = vld [vmem:[%s434 + $0x30] sm:$0xf]
      %v1199 = vld [vmem:[%s434 + $0x38] sm:$0xf]
      %s1200 = scalar_lea.vmem %s2, 192
      %v1201 = vld [vmem:[%s1200] sm:$0xf]
      %v1202 = vld [vmem:[%s1200 + $0x4] sm:$0xf]
      %v1203 = vld [vmem:[%s1200 + $0x8] sm:$0xf]
      %v1204 = vld [vmem:[%s1200 + $0xc] sm:$0xf]
      %v1205 = vld [vmem:[%s1200 + $0x10] sm:$0xf]
      %v1206 = vld [vmem:[%s1200 + $0x14] sm:$0xf]
      %v1207 = vld [vmem:[%s1200 + $0x18] sm:$0xf]
      %v1208 = vld [vmem:[%s1200 + $0x1c] sm:$0xf]
      %v1209 = vld [vmem:[%s1200 + $0x20] sm:$0xf]
      %v1210 = vld [vmem:[%s1200 + $0x24] sm:$0xf]
      %v1211 = vld [vmem:[%s1200 + $0x28] sm:$0xf]
      %v1212 = vld [vmem:[%s1200 + $0x2c] sm:$0xf]
      %v1213 = vld [vmem:[%s1200 + $0x30] sm:$0xf]
      %v1214 = vld [vmem:[%s1200 + $0x34] sm:$0xf]
      %v1215 = vld [vmem:[%s1200 + $0x38] sm:$0xf]
      %v1216 = vld [vmem:[%s1200 + $0x3c] sm:$0xf]
      %v1225 = vunpack.c.l.b16 %v1192
      %v1226 = vunpack.c.l.b16 %v1193
      %v1227 = vunpack.c.l.b16 %v1194
      %v1228 = vunpack.c.l.b16 %v1195
      %v1229 = vunpack.c.l.b16 %v1196
      %v1230 = vunpack.c.l.b16 %v1197
      %v1231 = vunpack.c.l.b16 %v1198
      %v1232 = vunpack.c.l.b16 %v1199
      %v1233 = vpack.c.b16 %v1226, %v1225
      %v1234 = vpack.c.b16 %v1228, %v1227
      %v1235 = vpack.c.b16 %v1230, %v1229
      %v1236 = vpack.c.b16 %v1232, %v1231
      %v1257 = vunpack.c.l.b16 %v1201
      %v1258 = vunpack.c.l.b16 %v1202
      %v1259 = vunpack.c.l.b16 %v1203
      %v1260 = vunpack.c.l.b16 %v1204
      %v1261 = vunpack.c.l.b16 %v1205
      %v1262 = vunpack.c.l.b16 %v1206
      %v1263 = vunpack.c.l.b16 %v1207
      %v1264 = vunpack.c.l.b16 %v1208
      %v1265 = vunpack.c.l.b16 %v1209
      %v1266 = vunpack.c.l.b16 %v1210
      %v1267 = vunpack.c.l.b16 %v1211
      %v1268 = vunpack.c.l.b16 %v1212
      %v1269 = vunpack.c.l.b16 %v1213
      %v1270 = vunpack.c.l.b16 %v1214
      %v1271 = vunpack.c.l.b16 %v1215
      %v1272 = vunpack.c.l.b16 %v1216
      %v1273 = vpack.c.b16 %v1258, %v1257
      %v1274 = vpack.c.b16 %v1260, %v1259
      %v1275 = vpack.c.b16 %v1262, %v1261
      %v1276 = vpack.c.b16 %v1264, %v1263
      %v1277 = vpack.c.b16 %v1266, %v1265
      %v1278 = vpack.c.b16 %v1268, %v1267
      %v1279 = vpack.c.b16 %v1270, %v1269
      %v1280 = vpack.c.b16 %v1272, %v1271
      %1289 = vmatprep.subr.bf16.mxu0 0
      %1290 = vmatpush1.bf16.msra.mxu0 %v1280
      %1291 = vmatprep.subr.bf16.mxu0 0
      %1292 = vmatpush1.bf16.msra.mxu0 %v1279
      %1293 = vmatprep.subr.bf16.mxu0 0
      %1294 = vmatpush1.bf16.msra.mxu0 %v1278
      %1295 = vmatprep.subr.bf16.mxu0 0
      %1296 = vmatpush1.bf16.msra.mxu0 %v1277
      %1297 = vmatprep.subr.bf16.mxu0 0
      %1298 = vmatpush1.bf16.msra.mxu0 %v1276
      %1299 = vmatprep.subr.bf16.mxu0 0
      %1300 = vmatpush1.bf16.msra.mxu0 %v1275
      %1301 = vmatprep.subr.bf16.mxu0 0
      %1302 = vmatpush1.bf16.msra.mxu0 %v1274
      %1303 = vmatprep.subr.bf16.mxu0 0
      %1304 = vmatpush1.bf16.msra.mxu0 %v1273
      %1305 = vmatprep.subr.bf16.mxu0 0
      %1306 = vmatpush2.bf16.msra.mxu0 0
      %1307 = vmatprep.subr.bf16.mxu0 0
      %1308 = vmatpush2.bf16.msra.mxu0 0
      %1309 = vmatprep.subr.bf16.mxu0 0
      %1310 = vmatpush2.bf16.msra.mxu0 0
      %1311 = vmatprep.subr.bf16.mxu0 0
      %1312 = vmatpush2.bf16.msra.mxu0 0
      %1313 = vmatprep.subr.bf16.mxu0 0
      %1314 = vmatpush2.bf16.msra.mxu0 0
      %1315 = vmatprep.subr.bf16.mxu0 0
      %1316 = vmatpush2.bf16.msra.mxu0 0
      %1317 = vmatprep.subr.bf16.mxu0 0
      %1318 = vmatpush2.bf16.msra.mxu0 0
      %1319 = vmatprep.subr.bf16.mxu0 0
      %1320 = vmatpush2.bf16.msra.mxu0 0
      %1321 = vmatprep.mubr.bf16.mxu0 0
      %1322 = vmatmul.mubr.bf16.gmra.mxu0 %v1233
      %v1323 = vpop.f32.mrf.mxu0
      %v1324 = vadd.f32 0.0, %v1323
      %v1325 = vpop.f32.mrf.mxu0
      %v1326 = vpop.f32.mrf.mxu0
      %v1327 = vadd.f32 0.0, %v1326
      %v1328 = vpop.f32.mrf.mxu0
      %1329 = vmatprep.mubr.bf16.mxu0 0
      %1330 = vmatmul.mubr.bf16.gmra.mxu0 %v1234
      %v1331 = vpop.f32.mrf.mxu0
      %v1332 = vadd.f32 0.0, %v1331
      %v1333 = vpop.f32.mrf.mxu0
      %v1334 = vpop.f32.mrf.mxu0
      %v1335 = vadd.f32 0.0, %v1334
      %v1336 = vpop.f32.mrf.mxu0
      %1337 = vmatprep.mubr.bf16.mxu0 0
      %1338 = vmatmul.mubr.bf16.gmra.mxu0 %v1235
      %v1339 = vpop.f32.mrf.mxu0
      %v1340 = vadd.f32 0.0, %v1339
      %v1341 = vpop.f32.mrf.mxu0
      %v1342 = vpop.f32.mrf.mxu0
      %v1343 = vadd.f32 0.0, %v1342
      %v1344 = vpop.f32.mrf.mxu0
      %1345 = vmatprep.mubr.bf16.mxu0 0
      %1346 = vmatmul.mubr.bf16.gmra.mxu0 %v1236
      %v1347 = vpop.f32.mrf.mxu0
      %v1348 = vadd.f32 0.0, %v1347
      %v1349 = vpop.f32.mrf.mxu0
      %v1350 = vpop.f32.mrf.mxu0
      %v1351 = vadd.f32 0.0, %v1350
      %v1352 = vpop.f32.mrf.mxu0
      %1353 = vdwg.mxu0
      %v1354 = vld [vmem:[#allocation3] sm:$0xff]
      %v1355 = vld [vmem:[#allocation3 + $0x8] sm:$0xff]
      %v1356 = vld [vmem:[#allocation3 + $0x10] sm:$0xff]
      %v1357 = vld [vmem:[#allocation3 + $0x18] sm:$0xff]
      %v1358 = vld [vmem:[#allocation3 + $0x20] sm:$0xff]
      %v1359 = vld [vmem:[#allocation3 + $0x28] sm:$0xff]
      %v1360 = vld [vmem:[#allocation3 + $0x30] sm:$0xff]
      %v1361 = vld [vmem:[#allocation3 + $0x38] sm:$0xff]
      %v1362 = vadd.f32 %v1354, %v1324
      %v1363 = vadd.f32 %v1355, %v1327
      %v1364 = vadd.f32 %v1356, %v1332
      %v1365 = vadd.f32 %v1357, %v1335
      %v1366 = vadd.f32 %v1358, %v1340
      %v1367 = vadd.f32 %v1359, %v1343
      %v1368 = vadd.f32 %v1360, %v1348
      %v1369 = vadd.f32 %v1361, %v1351
      %1370 = vst [vmem:[#allocation3] sm:$0xff] %v1362
      %1371 = vst [vmem:[#allocation3 + $0x8] sm:$0xff] %v1363
      %1372 = vst [vmem:[#allocation3 + $0x10] sm:$0xff] %v1364
      %1373 = vst [vmem:[#allocation3 + $0x18] sm:$0xff] %v1365
      %1374 = vst [vmem:[#allocation3 + $0x20] sm:$0xff] %v1366
      %1375 = vst [vmem:[#allocation3 + $0x28] sm:$0xff] %v1367
      %1376 = vst [vmem:[#allocation3 + $0x30] sm:$0xff] %v1368
      %1377 = vst [vmem:[#allocation3 + $0x38] sm:$0xff] %v1369
      %v1378 = vld [vmem:[%s434] sm:$0xf]
      %v1379 = vld [vmem:[%s434 + $0x4] sm:$0x1]
      %v1380 = vld [vmem:[%s434 + $0x8] sm:$0xf]
      %v1381 = vld [vmem:[%s434 + $0xc] sm:$0x1]
      %v1382 = vld [vmem:[%s434 + $0x10] sm:$0xf]
      %v1383 = vld [vmem:[%s434 + $0x14] sm:$0x1]
      %v1384 = vld [vmem:[%s434 + $0x18] sm:$0xf]
      %v1385 = vld [vmem:[%s434 + $0x1c] sm:$0x1]
      %v1386 = vld [vmem:[%s434 + $0x20] sm:$0xf]
      %v1387 = vld [vmem:[%s434 + $0x24] sm:$0x1]
      %v1388 = vld [vmem:[%s434 + $0x28] sm:$0xf]
      %v1389 = vld [vmem:[%s434 + $0x2c] sm:$0x1]
      %v1390 = vld [vmem:[%s434 + $0x30] sm:$0xf]
      %v1391 = vld [vmem:[%s434 + $0x34] sm:$0x1]
      %v1392 = vld [vmem:[%s434 + $0x38] sm:$0xf]
      %v1393 = vld [vmem:[%s434 + $0x3c] sm:$0x1]
      %v1395 = vshrl.u32 %v1378, 16
      %v1397 = vrot.slane %v1395, 4
      %v1398 = vshll.u32 %v1378, 16
      %v1400 = vrot.slane %v1398, 5
      %v1401 = vor.u32 %v1397, %v1400
      %v1402 = vrot.slane %v1401, 4
      %v1404 = vshll.u32 %v1379, 16
      %v1406 = vrot.slane %v1404, 5
      %v1407 = vsel %vm672, %v1402, %v1406
      %v1409 = vshrl.u32 %v1380, 16
      %v1411 = vrot.slane %v1409, 4
      %v1412 = vshll.u32 %v1380, 16
      %v1414 = vrot.slane %v1412, 5
      %v1415 = vor.u32 %v1411, %v1414
      %v1416 = vrot.slane %v1415, 4
      %v1418 = vshll.u32 %v1381, 16
      %v1420 = vrot.slane %v1418, 5
      %v1421 = vsel %vm672, %v1416, %v1420
      %v1423 = vshrl.u32 %v1382, 16
      %v1425 = vrot.slane %v1423, 4
      %v1426 = vshll.u32 %v1382, 16
      %v1428 = vrot.slane %v1426, 5
      %v1429 = vor.u32 %v1425, %v1428
      %v1430 = vrot.slane %v1429, 4
      %v1432 = vshll.u32 %v1383, 16
      %v1434 = vrot.slane %v1432, 5
      %v1435 = vsel %vm672, %v1430, %v1434
      %v1437 = vshrl.u32 %v1384, 16
      %v1439 = vrot.slane %v1437, 4
      %v1440 = vshll.u32 %v1384, 16
      %v1442 = vrot.slane %v1440, 5
      %v1443 = vor.u32 %v1439, %v1442
      %v1444 = vrot.slane %v1443, 4
      %v1446 = vshll.u32 %v1385, 16
      %v1448 = vrot.slane %v1446, 5
      %v1449 = vsel %vm672, %v1444, %v1448
      %v1451 = vshrl.u32 %v1386, 16
      %v1453 = vrot.slane %v1451, 4
      %v1454 = vshll.u32 %v1386, 16
      %v1456 = vrot.slane %v1454, 5
      %v1457 = vor.u32 %v1453, %v1456
      %v1458 = vrot.slane %v1457, 4
      %v1460 = vshll.u32 %v1387, 16
      %v1462 = vrot.slane %v1460, 5
      %v1463 = vsel %vm672, %v1458, %v1462
      %v1465 = vshrl.u32 %v1388, 16
      %v1467 = vrot.slane %v1465, 4
      %v1468 = vshll.u32 %v1388, 16
      %v1470 = vrot.slane %v1468, 5
      %v1471 = vor.u32 %v1467, %v1470
      %v1472 = vrot.slane %v1471, 4
      %v1474 = vshll.u32 %v1389, 16
      %v1476 = vrot.slane %v1474, 5
      %v1477 = vsel %vm672, %v1472, %v1476
      %v1479 = vshrl.u32 %v1390, 16
      %v1481 = vrot.slane %v1479, 4
      %v1482 = vshll.u32 %v1390, 16
      %v1484 = vrot.slane %v1482, 5
      %v1485 = vor.u32 %v1481, %v1484
      %v1486 = vrot.slane %v1485, 4
      %v1488 = vshll.u32 %v1391, 16
      %v1490 = vrot.slane %v1488, 5
      %v1491 = vsel %vm672, %v1486, %v1490
      %v1493 = vshrl.u32 %v1392, 16
      %v1495 = vrot.slane %v1493, 4
      %v1496 = vshll.u32 %v1392, 16
      %v1498 = vrot.slane %v1496, 5
      %v1499 = vor.u32 %v1495, %v1498
      %v1500 = vrot.slane %v1499, 4
      %v1502 = vshll.u32 %v1393, 16
      %v1504 = vrot.slane %v1502, 5
      %v1505 = vsel %vm672, %v1500, %v1504
      %s1506 = scalar_lea.vmem %s2, 256
      %v1507 = vld [vmem:[%s1506] sm:$0xf]
      %v1508 = vld [vmem:[%s1506 + $0x4] sm:$0xf]
      %v1509 = vld [vmem:[%s1506 + $0x8] sm:$0xf]
      %v1510 = vld [vmem:[%s1506 + $0xc] sm:$0xf]
      %v1511 = vld [vmem:[%s1506 + $0x10] sm:$0xf]
      %v1512 = vld [vmem:[%s1506 + $0x14] sm:$0xf]
      %v1513 = vld [vmem:[%s1506 + $0x18] sm:$0xf]
      %v1514 = vld [vmem:[%s1506 + $0x1c] sm:$0xf]
      %v1515 = vld [vmem:[%s1506 + $0x20] sm:$0xf]
      %v1516 = vld [vmem:[%s1506 + $0x24] sm:$0xf]
      %v1517 = vld [vmem:[%s1506 + $0x28] sm:$0xf]
      %v1518 = vld [vmem:[%s1506 + $0x2c] sm:$0xf]
      %v1519 = vld [vmem:[%s1506 + $0x30] sm:$0xf]
      %v1520 = vld [vmem:[%s1506 + $0x34] sm:$0xf]
      %v1521 = vld [vmem:[%s1506 + $0x38] sm:$0xf]
      %v1522 = vld [vmem:[%s1506 + $0x3c] sm:$0xf]
      %v1523 = vunpack.c.l.b16 %v1407
      %v1524 = vunpack.c.l.b16 %v1421
      %v1525 = vunpack.c.l.b16 %v1435
      %v1526 = vunpack.c.l.b16 %v1449
      %v1527 = vunpack.c.l.b16 %v1463
      %v1528 = vunpack.c.l.b16 %v1477
      %v1529 = vunpack.c.l.b16 %v1491
      %v1530 = vunpack.c.l.b16 %v1505
      %v1531 = vpack.c.b16 %v1524, %v1523
      %v1532 = vpack.c.b16 %v1526, %v1525
      %v1533 = vpack.c.b16 %v1528, %v1527
      %v1534 = vpack.c.b16 %v1530, %v1529
      %v1555 = vunpack.c.l.b16 %v1507
      %v1556 = vunpack.c.l.b16 %v1508
      %v1557 = vunpack.c.l.b16 %v1509
      %v1558 = vunpack.c.l.b16 %v1510
      %v1559 = vunpack.c.l.b16 %v1511
      %v1560 = vunpack.c.l.b16 %v1512
      %v1561 = vunpack.c.l.b16 %v1513
      %v1562 = vunpack.c.l.b16 %v1514
      %v1563 = vunpack.c.l.b16 %v1515
      %v1564 = vunpack.c.l.b16 %v1516
      %v1565 = vunpack.c.l.b16 %v1517
      %v1566 = vunpack.c.l.b16 %v1518
      %v1567 = vunpack.c.l.b16 %v1519
      %v1568 = vunpack.c.l.b16 %v1520
      %v1569 = vunpack.c.l.b16 %v1521
      %v1570 = vunpack.c.l.b16 %v1522
      %v1571 = vpack.c.b16 %v1556, %v1555
      %v1572 = vpack.c.b16 %v1558, %v1557
      %v1573 = vpack.c.b16 %v1560, %v1559
      %v1574 = vpack.c.b16 %v1562, %v1561
      %v1575 = vpack.c.b16 %v1564, %v1563
      %v1576 = vpack.c.b16 %v1566, %v1565
      %v1577 = vpack.c.b16 %v1568, %v1567
      %v1578 = vpack.c.b16 %v1570, %v1569
      %1587 = vmatprep.subr.bf16.mxu0 0
      %1588 = vmatpush1.bf16.msra.mxu0 %v1578
      %1589 = vmatprep.subr.bf16.mxu0 0
      %1590 = vmatpush1.bf16.msra.mxu0 %v1577
      %1591 = vmatprep.subr.bf16.mxu0 0
      %1592 = vmatpush1.bf16.msra.mxu0 %v1576
      %1593 = vmatprep.subr.bf16.mxu0 0
      %1594 = vmatpush1.bf16.msra.mxu0 %v1575
      %1595 = vmatprep.subr.bf16.mxu0 0
      %1596 = vmatpush1.bf16.msra.mxu0 %v1574
      %1597 = vmatprep.subr.bf16.mxu0 0
      %1598 = vmatpush1.bf16.msra.mxu0 %v1573
      %1599 = vmatprep.subr.bf16.mxu0 0
      %1600 = vmatpush1.bf16.msra.mxu0 %v1572
      %1601 = vmatprep.subr.bf16.mxu0 0
      %1602 = vmatpush1.bf16.msra.mxu0 %v1571
      %1603 = vmatprep.subr.bf16.mxu0 0
      %1604 = vmatpush2.bf16.msra.mxu0 0
      %1605 = vmatprep.subr.bf16.mxu0 0
      %1606 = vmatpush2.bf16.msra.mxu0 0
      %1607 = vmatprep.subr.bf16.mxu0 0
      %1608 = vmatpush2.bf16.msra.mxu0 0
      %1609 = vmatprep.subr.bf16.mxu0 0
      %1610 = vmatpush2.bf16.msra.mxu0 0
      %1611 = vmatprep.subr.bf16.mxu0 0
      %1612 = vmatpush2.bf16.msra.mxu0 0
      %1613 = vmatprep.subr.bf16.mxu0 0
      %1614 = vmatpush2.bf16.msra.mxu0 0
      %1615 = vmatprep.subr.bf16.mxu0 0
      %1616 = vmatpush2.bf16.msra.mxu0 0
      %1617 = vmatprep.subr.bf16.mxu0 0
      %1618 = vmatpush2.bf16.msra.mxu0 0
      %1619 = vmatprep.mubr.bf16.mxu0 0
      %1620 = vmatmul.mubr.bf16.gmra.mxu0 %v1531
      %v1621 = vpop.f32.mrf.mxu0
      %v1622 = vadd.f32 0.0, %v1621
      %v1623 = vpop.f32.mrf.mxu0
      %v1624 = vpop.f32.mrf.mxu0
      %v1625 = vadd.f32 0.0, %v1624
      %v1626 = vpop.f32.mrf.mxu0
      %1627 = vmatprep.mubr.bf16.mxu0 0
      %1628 = vmatmul.mubr.bf16.gmra.mxu0 %v1532
      %v1629 = vpop.f32.mrf.mxu0
      %v1630 = vadd.f32 0.0, %v1629
      %v1631 = vpop.f32.mrf.mxu0
      %v1632 = vpop.f32.mrf.mxu0
      %v1633 = vadd.f32 0.0, %v1632
      %v1634 = vpop.f32.mrf.mxu0
      %1635 = vmatprep.mubr.bf16.mxu0 0
      %1636 = vmatmul.mubr.bf16.gmra.mxu0 %v1533
      %v1637 = vpop.f32.mrf.mxu0
      %v1638 = vadd.f32 0.0, %v1637
      %v1639 = vpop.f32.mrf.mxu0
      %v1640 = vpop.f32.mrf.mxu0
      %v1641 = vadd.f32 0.0, %v1640
      %v1642 = vpop.f32.mrf.mxu0
      %1643 = vmatprep.mubr.bf16.mxu0 0
      %1644 = vmatmul.mubr.bf16.gmra.mxu0 %v1534
      %v1645 = vpop.f32.mrf.mxu0
      %v1646 = vadd.f32 0.0, %v1645
      %v1647 = vpop.f32.mrf.mxu0
      %v1648 = vpop.f32.mrf.mxu0
      %v1649 = vadd.f32 0.0, %v1648
      %v1650 = vpop.f32.mrf.mxu0
      %1651 = vdwg.mxu0
      %v1652 = vld [vmem:[#allocation3] sm:$0xff]
      %v1653 = vld [vmem:[#allocation3 + $0x8] sm:$0xff]
      %v1654 = vld [vmem:[#allocation3 + $0x10] sm:$0xff]
      %v1655 = vld [vmem:[#allocation3 + $0x18] sm:$0xff]
      %v1656 = vld [vmem:[#allocation3 + $0x20] sm:$0xff]
      %v1657 = vld [vmem:[#allocation3 + $0x28] sm:$0xff]
      %v1658 = vld [vmem:[#allocation3 + $0x30] sm:$0xff]
      %v1659 = vld [vmem:[#allocation3 + $0x38] sm:$0xff]
      %v1660 = vadd.f32 %v1652, %v1622
      %v1661 = vadd.f32 %v1653, %v1625
      %v1662 = vadd.f32 %v1654, %v1630
      %v1663 = vadd.f32 %v1655, %v1633
      %v1664 = vadd.f32 %v1656, %v1638
      %v1665 = vadd.f32 %v1657, %v1641
      %v1666 = vadd.f32 %v1658, %v1646
      %v1667 = vadd.f32 %v1659, %v1649
      %1668 = vst [vmem:[#allocation3] sm:$0xff] %v1660
      %1669 = vst [vmem:[#allocation3 + $0x8] sm:$0xff] %v1661
      %1670 = vst [vmem:[#allocation3 + $0x10] sm:$0xff] %v1662
      %1671 = vst [vmem:[#allocation3 + $0x18] sm:$0xff] %v1663
      %1672 = vst [vmem:[#allocation3 + $0x20] sm:$0xff] %v1664
      %1673 = vst [vmem:[#allocation3 + $0x28] sm:$0xff] %v1665
      %1674 = vst [vmem:[#allocation3 + $0x30] sm:$0xff] %v1666
      %1675 = vst [vmem:[#allocation3 + $0x38] sm:$0xff] %v1667
      %v1676 = vld [vmem:[%s434] sm:$0xe]
      %v1677 = vld [vmem:[%s434 + $0x4] sm:$0x1]
      %v1678 = vld [vmem:[%s434 + $0x8] sm:$0xe]
      %v1679 = vld [vmem:[%s434 + $0xc] sm:$0x1]
      %v1680 = vld [vmem:[%s434 + $0x10] sm:$0xe]
      %v1681 = vld [vmem:[%s434 + $0x14] sm:$0x1]
      %v1682 = vld [vmem:[%s434 + $0x18] sm:$0xe]
      %v1683 = vld [vmem:[%s434 + $0x1c] sm:$0x1]
      %v1684 = vld [vmem:[%s434 + $0x20] sm:$0xe]
      %v1685 = vld [vmem:[%s434 + $0x24] sm:$0x1]
      %v1686 = vld [vmem:[%s434 + $0x28] sm:$0xe]
      %v1687 = vld [vmem:[%s434 + $0x2c] sm:$0x1]
      %v1688 = vld [vmem:[%s434 + $0x30] sm:$0xe]
      %v1689 = vld [vmem:[%s434 + $0x34] sm:$0x1]
      %v1690 = vld [vmem:[%s434 + $0x38] sm:$0xe]
      %v1691 = vld [vmem:[%s434 + $0x3c] sm:$0x1]
      %v1708 = vrot.slane %v1676, 5
      %v1709 = vrot.slane %v1708, 4
      %v1710 = vrot.slane %v1677, 5
      %v1711 = vsel %vm989, %v1709, %v1710
      %v1712 = vrot.slane %v1678, 5
      %v1713 = vrot.slane %v1712, 4
      %v1714 = vrot.slane %v1679, 5
      %v1715 = vsel %vm989, %v1713, %v1714
      %v1716 = vrot.slane %v1680, 5
      %v1717 = vrot.slane %v1716, 4
      %v1718 = vrot.slane %v1681, 5
      %v1719 = vsel %vm989, %v1717, %v1718
      %v1720 = vrot.slane %v1682, 5
      %v1721 = vrot.slane %v1720, 4
      %v1722 = vrot.slane %v1683, 5
      %v1723 = vsel %vm989, %v1721, %v1722
      %v1724 = vrot.slane %v1684, 5
      %v1725 = vrot.slane %v1724, 4
      %v1726 = vrot.slane %v1685, 5
      %v1727 = vsel %vm989, %v1725, %v1726
      %v1728 = vrot.slane %v1686, 5
      %v1729 = vrot.slane %v1728, 4
      %v1730 = vrot.slane %v1687, 5
      %v1731 = vsel %vm989, %v1729, %v1730
      %v1732 = vrot.slane %v1688, 5
      %v1733 = vrot.slane %v1732, 4
      %v1734 = vrot.slane %v1689, 5
      %v1735 = vsel %vm989, %v1733, %v1734
      %v1736 = vrot.slane %v1690, 5
      %v1737 = vrot.slane %v1736, 4
      %v1738 = vrot.slane %v1691, 5
      %v1739 = vsel %vm989, %v1737, %v1738
      %s1740 = scalar_lea.vmem %s2, 320
      %v1741 = vld [vmem:[%s1740] sm:$0xf]
      %v1742 = vld [vmem:[%s1740 + $0x4] sm:$0xf]
      %v1743 = vld [vmem:[%s1740 + $0x8] sm:$0xf]
      %v1744 = vld [vmem:[%s1740 + $0xc] sm:$0xf]
      %v1745 = vld [vmem:[%s1740 + $0x10] sm:$0xf]
      %v1746 = vld [vmem:[%s1740 + $0x14] sm:$0xf]
      %v1747 = vld [vmem:[%s1740 + $0x18] sm:$0xf]
      %v1748 = vld [vmem:[%s1740 + $0x1c] sm:$0xf]
      %v1749 = vld [vmem:[%s1740 + $0x20] sm:$0xf]
      %v1750 = vld [vmem:[%s1740 + $0x24] sm:$0xf]
      %v1751 = vld [vmem:[%s1740 + $0x28] sm:$0xf]
      %v1752 = vld [vmem:[%s1740 + $0x2c] sm:$0xf]
      %v1753 = vld [vmem:[%s1740 + $0x30] sm:$0xf]
      %v1754 = vld [vmem:[%s1740 + $0x34] sm:$0xf]
      %v1755 = vld [vmem:[%s1740 + $0x38] sm:$0xf]
      %v1756 = vld [vmem:[%s1740 + $0x3c] sm:$0xf]
      %v1757 = vunpack.c.l.b16 %v1711
      %v1758 = vunpack.c.l.b16 %v1715
      %v1759 = vunpack.c.l.b16 %v1719
      %v1760 = vunpack.c.l.b16 %v1723
      %v1761 = vunpack.c.l.b16 %v1727
      %v1762 = vunpack.c.l.b16 %v1731
      %v1763 = vunpack.c.l.b16 %v1735
      %v1764 = vunpack.c.l.b16 %v1739
      %v1765 = vpack.c.b16 %v1758, %v1757
      %v1766 = vpack.c.b16 %v1760, %v1759
      %v1767 = vpack.c.b16 %v1762, %v1761
      %v1768 = vpack.c.b16 %v1764, %v1763
      %v1789 = vunpack.c.l.b16 %v1741
      %v1790 = vunpack.c.l.b16 %v1742
      %v1791 = vunpack.c.l.b16 %v1743
      %v1792 = vunpack.c.l.b16 %v1744
      %v1793 = vunpack.c.l.b16 %v1745
      %v1794 = vunpack.c.l.b16 %v1746
      %v1795 = vunpack.c.l.b16 %v1747
      %v1796 = vunpack.c.l.b16 %v1748
      %v1797 = vunpack.c.l.b16 %v1749
      %v1798 = vunpack.c.l.b16 %v1750
      %v1799 = vunpack.c.l.b16 %v1751
      %v1800 = vunpack.c.l.b16 %v1752
      %v1801 = vunpack.c.l.b16 %v1753
      %v1802 = vunpack.c.l.b16 %v1754
      %v1803 = vunpack.c.l.b16 %v1755
      %v1804 = vunpack.c.l.b16 %v1756
      %v1805 = vpack.c.b16 %v1790, %v1789
      %v1806 = vpack.c.b16 %v1792, %v1791
      %v1807 = vpack.c.b16 %v1794, %v1793
      %v1808 = vpack.c.b16 %v1796, %v1795
      %v1809 = vpack.c.b16 %v1798, %v1797
      %v1810 = vpack.c.b16 %v1800, %v1799
      %v1811 = vpack.c.b16 %v1802, %v1801
      %v1812 = vpack.c.b16 %v1804, %v1803
      %1821 = vmatprep.subr.bf16.mxu0 0
      %1822 = vmatpush1.bf16.msra.mxu0 %v1812
      %1823 = vmatprep.subr.bf16.mxu0 0
      %1824 = vmatpush1.bf16.msra.mxu0 %v1811
      %1825 = vmatprep.subr.bf16.mxu0 0
      %1826 = vmatpush1.bf16.msra.mxu0 %v1810
      %1827 = vmatprep.subr.bf16.mxu0 0
      %1828 = vmatpush1.bf16.msra.mxu0 %v1809
      %1829 = vmatprep.subr.bf16.mxu0 0
      %1830 = vmatpush1.bf16.msra.mxu0 %v1808
      %1831 = vmatprep.subr.bf16.mxu0 0
      %1832 = vmatpush1.bf16.msra.mxu0 %v1807
      %1833 = vmatprep.subr.bf16.mxu0 0
      %1834 = vmatpush1.bf16.msra.mxu0 %v1806
      %1835 = vmatprep.subr.bf16.mxu0 0
      %1836 = vmatpush1.bf16.msra.mxu0 %v1805
      %1837 = vmatprep.subr.bf16.mxu0 0
      %1838 = vmatpush2.bf16.msra.mxu0 0
      %1839 = vmatprep.subr.bf16.mxu0 0
      %1840 = vmatpush2.bf16.msra.mxu0 0
      %1841 = vmatprep.subr.bf16.mxu0 0
      %1842 = vmatpush2.bf16.msra.mxu0 0
      %1843 = vmatprep.subr.bf16.mxu0 0
      %1844 = vmatpush2.bf16.msra.mxu0 0
      %1845 = vmatprep.subr.bf16.mxu0 0
      %1846 = vmatpush2.bf16.msra.mxu0 0
      %1847 = vmatprep.subr.bf16.mxu0 0
      %1848 = vmatpush2.bf16.msra.mxu0 0
      %1849 = vmatprep.subr.bf16.mxu0 0
      %1850 = vmatpush2.bf16.msra.mxu0 0
      %1851 = vmatprep.subr.bf16.mxu0 0
      %1852 = vmatpush2.bf16.msra.mxu0 0
      %1853 = vmatprep.mubr.bf16.mxu0 0
      %1854 = vmatmul.mubr.bf16.gmra.mxu0 %v1765
      %v1855 = vpop.f32.mrf.mxu0
      %v1856 = vadd.f32 0.0, %v1855
      %v1857 = vpop.f32.mrf.mxu0
      %v1858 = vpop.f32.mrf.mxu0
      %v1859 = vadd.f32 0.0, %v1858
      %v1860 = vpop.f32.mrf.mxu0
      %1861 = vmatprep.mubr.bf16.mxu0 0
      %1862 = vmatmul.mubr.bf16.gmra.mxu0 %v1766
      %v1863 = vpop.f32.mrf.mxu0
      %v1864 = vadd.f32 0.0, %v1863
      %v1865 = vpop.f32.mrf.mxu0
      %v1866 = vpop.f32.mrf.mxu0
      %v1867 = vadd.f32 0.0, %v1866
      %v1868 = vpop.f32.mrf.mxu0
      %1869 = vmatprep.mubr.bf16.mxu0 0
      %1870 = vmatmul.mubr.bf16.gmra.mxu0 %v1767
      %v1871 = vpop.f32.mrf.mxu0
      %v1872 = vadd.f32 0.0, %v1871
      %v1873 = vpop.f32.mrf.mxu0
      %v1874 = vpop.f32.mrf.mxu0
      %v1875 = vadd.f32 0.0, %v1874
      %v1876 = vpop.f32.mrf.mxu0
      %1877 = vmatprep.mubr.bf16.mxu0 0
      %1878 = vmatmul.mubr.bf16.gmra.mxu0 %v1768
      %v1879 = vpop.f32.mrf.mxu0
      %v1880 = vadd.f32 0.0, %v1879
      %v1881 = vpop.f32.mrf.mxu0
      %v1882 = vpop.f32.mrf.mxu0
      %v1883 = vadd.f32 0.0, %v1882
      %v1884 = vpop.f32.mrf.mxu0
      %1885 = vdwg.mxu0
      %v1886 = vld [vmem:[#allocation3] sm:$0xff]
      %v1887 = vld [vmem:[#allocation3 + $0x8] sm:$0xff]
      %v1888 = vld [vmem:[#allocation3 + $0x10] sm:$0xff]
      %v1889 = vld [vmem:[#allocation3 + $0x18] sm:$0xff]
      %v1890 = vld [vmem:[#allocation3 + $0x20] sm:$0xff]
      %v1891 = vld [vmem:[#allocation3 + $0x28] sm:$0xff]
      %v1892 = vld [vmem:[#allocation3 + $0x30] sm:$0xff]
      %v1893 = vld [vmem:[#allocation3 + $0x38] sm:$0xff]
      %v1894 = vadd.f32 %v1886, %v1856
      %v1895 = vadd.f32 %v1887, %v1859
      %v1896 = vadd.f32 %v1888, %v1864
      %v1897 = vadd.f32 %v1889, %v1867
      %v1898 = vadd.f32 %v1890, %v1872
      %v1899 = vadd.f32 %v1891, %v1875
      %v1900 = vadd.f32 %v1892, %v1880
      %v1901 = vadd.f32 %v1893, %v1883
      %1902 = vst [vmem:[#allocation3] sm:$0xff] %v1894
      %1903 = vst [vmem:[#allocation3 + $0x8] sm:$0xff] %v1895
      %1904 = vst [vmem:[#allocation3 + $0x10] sm:$0xff] %v1896
      %1905 = vst [vmem:[#allocation3 + $0x18] sm:$0xff] %v1897
      %1906 = vst [vmem:[#allocation3 + $0x20] sm:$0xff] %v1898
      %1907 = vst [vmem:[#allocation3 + $0x28] sm:$0xff] %v1899
      %1908 = vst [vmem:[#allocation3 + $0x30] sm:$0xff] %v1900
      %1909 = vst [vmem:[#allocation3 + $0x38] sm:$0xff] %v1901
      %s1910 = scalar_lea.vmem [#allocation2], 16
      %v1911 = vld [vmem:[%s1910] sm:$0xf]
      %v1912 = vld [vmem:[%s1910 + $0x8] sm:$0xf]
      %v1913 = vld [vmem:[%s1910 + $0x10] sm:$0xf]
      %v1914 = vld [vmem:[%s1910 + $0x18] sm:$0xf]
      %v1915 = vld [vmem:[%s1910 + $0x20] sm:$0xf]
      %v1916 = vld [vmem:[%s1910 + $0x28] sm:$0xf]
      %v1917 = vld [vmem:[%s1910 + $0x30] sm:$0xf]
      %v1918 = vld [vmem:[%s1910 + $0x38] sm:$0xf]
      %s1919 = scalar_lea.vmem %s2, 384
      %v1920 = vld [vmem:[%s1919] sm:$0xf]
      %v1921 = vld [vmem:[%s1919 + $0x4] sm:$0xf]
      %v1922 = vld [vmem:[%s1919 + $0x8] sm:$0xf]
      %v1923 = vld [vmem:[%s1919 + $0xc] sm:$0xf]
      %v1924 = vld [vmem:[%s1919 + $0x10] sm:$0xf]
      %v1925 = vld [vmem:[%s1919 + $0x14] sm:$0xf]
      %v1926 = vld [vmem:[%s1919 + $0x18] sm:$0xf]
      %v1927 = vld [vmem:[%s1919 + $0x1c] sm:$0xf]
      %v1928 = vld [vmem:[%s1919 + $0x20] sm:$0xf]
      %v1929 = vld [vmem:[%s1919 + $0x24] sm:$0xf]
      %v1930 = vld [vmem:[%s1919 + $0x28] sm:$0xf]
      %v1931 = vld [vmem:[%s1919 + $0x2c] sm:$0xf]
      %v1932 = vld [vmem:[%s1919 + $0x30] sm:$0xf]
      %v1933 = vld [vmem:[%s1919 + $0x34] sm:$0xf]
      %v1934 = vld [vmem:[%s1919 + $0x38] sm:$0xf]
      %v1935 = vld [vmem:[%s1919 + $0x3c] sm:$0xf]
      %v1944 = vunpack.c.l.b16 %v1911
      %v1945 = vunpack.c.l.b16 %v1912
      %v1946 = vunpack.c.l.b16 %v1913
      %v1947 = vunpack.c.l.b16 %v1914
      %v1948 = vunpack.c.l.b16 %v1915
      %v1949 = vunpack.c.l.b16 %v1916
      %v1950 = vunpack.c.l.b16 %v1917
      %v1951 = vunpack.c.l.b16 %v1918
      %v1952 = vpack.c.b16 %v1945, %v1944
      %v1953 = vpack.c.b16 %v1947, %v1946
      %v1954 = vpack.c.b16 %v1949, %v1948
      %v1955 = vpack.c.b16 %v1951, %v1950
      %v1976 = vunpack.c.l.b16 %v1920
      %v1977 = vunpack.c.l.b16 %v1921
      %v1978 = vunpack.c.l.b16 %v1922
      %v1979 = vunpack.c.l.b16 %v1923
      %v1980 = vunpack.c.l.b16 %v1924
      %v1981 = vunpack.c.l.b16 %v1925
      %v1982 = vunpack.c.l.b16 %v1926
      %v1983 = vunpack.c.l.b16 %v1927
      %v1984 = vunpack.c.l.b16 %v1928
      %v1985 = vunpack.c.l.b16 %v1929
      %v1986 = vunpack.c.l.b16 %v1930
      %v1987 = vunpack.c.l.b16 %v1931
      %v1988 = vunpack.c.l.b16 %v1932
      %v1989 = vunpack.c.l.b16 %v1933
      %v1990 = vunpack.c.l.b16 %v1934
      %v1991 = vunpack.c.l.b16 %v1935
      %v1992 = vpack.c.b16 %v1977, %v1976
      %v1993 = vpack.c.b16 %v1979, %v1978
      %v1994 = vpack.c.b16 %v1981, %v1980
      %v1995 = vpack.c.b16 %v1983, %v1982
      %v1996 = vpack.c.b16 %v1985, %v1984
      %v1997 = vpack.c.b16 %v1987, %v1986
      %v1998 = vpack.c.b16 %v1989, %v1988
      %v1999 = vpack.c.b16 %v1991, %v1990
      %2008 = vmatprep.subr.bf16.mxu0 0
      %2009 = vmatpush1.bf16.msra.mxu0 %v1999
      %2010 = vmatprep.subr.bf16.mxu0 0
      %2011 = vmatpush1.bf16.msra.mxu0 %v1998
      %2012 = vmatprep.subr.bf16.mxu0 0
      %2013 = vmatpush1.bf16.msra.mxu0 %v1997
      %2014 = vmatprep.subr.bf16.mxu0 0
      %2015 = vmatpush1.bf16.msra.mxu0 %v1996
      %2016 = vmatprep.subr.bf16.mxu0 0
      %2017 = vmatpush1.bf16.msra.mxu0 %v1995
      %2018 = vmatprep.subr.bf16.mxu0 0
      %2019 = vmatpush1.bf16.msra.mxu0 %v1994
      %2020 = vmatprep.subr.bf16.mxu0 0
      %2021 = vmatpush1.bf16.msra.mxu0 %v1993
      %2022 = vmatprep.subr.bf16.mxu0 0
      %2023 = vmatpush1.bf16.msra.mxu0 %v1992
      %2024 = vmatprep.subr.bf16.mxu0 0
      %2025 = vmatpush2.bf16.msra.mxu0 0
      %2026 = vmatprep.subr.bf16.mxu0 0
      %2027 = vmatpush2.bf16.msra.mxu0 0
      %2028 = vmatprep.subr.bf16.mxu0 0
      %2029 = vmatpush2.bf16.msra.mxu0 0
      %2030 = vmatprep.subr.bf16.mxu0 0
      %2031 = vmatpush2.bf16.msra.mxu0 0
      %2032 = vmatprep.subr.bf16.mxu0 0
      %2033 = vmatpush2.bf16.msra.mxu0 0
      %2034 = vmatprep.subr.bf16.mxu0 0
      %2035 = vmatpush2.bf16.msra.mxu0 0
      %2036 = vmatprep.subr.bf16.mxu0 0
      %2037 = vmatpush2.bf16.msra.mxu0 0
      %2038 = vmatprep.subr.bf16.mxu0 0
      %2039 = vmatpush2.bf16.msra.mxu0 0
      %2040 = vmatprep.mubr.bf16.mxu0 0
      %2041 = vmatmul.mubr.bf16.gmra.mxu0 %v1952
      %v2042 = vpop.f32.mrf.mxu0
      %v2043 = vadd.f32 0.0, %v2042
      %v2044 = vpop.f32.mrf.mxu0
      %v2045 = vpop.f32.mrf.mxu0
      %v2046 = vadd.f32 0.0, %v2045
      %v2047 = vpop.f32.mrf.mxu0
      %2048 = vmatprep.mubr.bf16.mxu0 0
      %2049 = vmatmul.mubr.bf16.gmra.mxu0 %v1953
      %v2050 = vpop.f32.mrf.mxu0
      %v2051 = vadd.f32 0.0, %v2050
      %v2052 = vpop.f32.mrf.mxu0
      %v2053 = vpop.f32.mrf.mxu0
      %v2054 = vadd.f32 0.0, %v2053
      %v2055 = vpop.f32.mrf.mxu0
      %2056 = vmatprep.mubr.bf16.mxu0 0
      %2057 = vmatmul.mubr.bf16.gmra.mxu0 %v1954
      %v2058 = vpop.f32.mrf.mxu0
      %v2059 = vadd.f32 0.0, %v2058
      %v2060 = vpop.f32.mrf.mxu0
      %v2061 = vpop.f32.mrf.mxu0
      %v2062 = vadd.f32 0.0, %v2061
      %v2063 = vpop.f32.mrf.mxu0
      %2064 = vmatprep.mubr.bf16.mxu0 0
      %2065 = vmatmul.mubr.bf16.gmra.mxu0 %v1955
      %v2066 = vpop.f32.mrf.mxu0
      %v2067 = vadd.f32 0.0, %v2066
      %v2068 = vpop.f32.mrf.mxu0
      %v2069 = vpop.f32.mrf.mxu0
      %v2070 = vadd.f32 0.0, %v2069
      %v2071 = vpop.f32.mrf.mxu0
      %2072 = vdwg.mxu0
      %v2073 = vld [vmem:[#allocation3] sm:$0xff]
      %v2074 = vld [vmem:[#allocation3 + $0x8] sm:$0xff]
      %v2075 = vld [vmem:[#allocation3 + $0x10] sm:$0xff]
      %v2076 = vld [vmem:[#allocation3 + $0x18] sm:$0xff]
      %v2077 = vld [vmem:[#allocation3 + $0x20] sm:$0xff]
      %v2078 = vld [vmem:[#allocation3 + $0x28] sm:$0xff]
      %v2079 = vld [vmem:[#allocation3 + $0x30] sm:$0xff]
      %v2080 = vld [vmem:[#allocation3 + $0x38] sm:$0xff]
      %v2081 = vadd.f32 %v2073, %v2043
      %v2082 = vadd.f32 %v2074, %v2046
      %v2083 = vadd.f32 %v2075, %v2051
      %v2084 = vadd.f32 %v2076, %v2054
      %v2085 = vadd.f32 %v2077, %v2059
      %v2086 = vadd.f32 %v2078, %v2062
      %v2087 = vadd.f32 %v2079, %v2067
      %v2088 = vadd.f32 %v2080, %v2070
      %2089 = vst [vmem:[#allocation3] sm:$0xff] %v2081
      %2090 = vst [vmem:[#allocation3 + $0x8] sm:$0xff] %v2082
      %2091 = vst [vmem:[#allocation3 + $0x10] sm:$0xff] %v2083
      %2092 = vst [vmem:[#allocation3 + $0x18] sm:$0xff] %v2084
      %2093 = vst [vmem:[#allocation3 + $0x20] sm:$0xff] %v2085
      %2094 = vst [vmem:[#allocation3 + $0x28] sm:$0xff] %v2086
      %2095 = vst [vmem:[#allocation3 + $0x30] sm:$0xff] %v2087
      %2096 = vst [vmem:[#allocation3 + $0x38] sm:$0xff] %v2088
      %v2097 = vld [vmem:[%s1910] sm:$0xf]
      %v2098 = vld [vmem:[%s1910 + $0x4] sm:$0x1]
      %v2099 = vld [vmem:[%s1910 + $0x8] sm:$0xf]
      %v2100 = vld [vmem:[%s1910 + $0xc] sm:$0x1]
      %v2101 = vld [vmem:[%s1910 + $0x10] sm:$0xf]
      %v2102 = vld [vmem:[%s1910 + $0x14] sm:$0x1]
      %v2103 = vld [vmem:[%s1910 + $0x18] sm:$0xf]
      %v2104 = vld [vmem:[%s1910 + $0x1c] sm:$0x1]
      %v2105 = vld [vmem:[%s1910 + $0x20] sm:$0xf]
      %v2106 = vld [vmem:[%s1910 + $0x24] sm:$0x1]
      %v2107 = vld [vmem:[%s1910 + $0x28] sm:$0xf]
      %v2108 = vld [vmem:[%s1910 + $0x2c] sm:$0x1]
      %v2109 = vld [vmem:[%s1910 + $0x30] sm:$0xf]
      %v2110 = vld [vmem:[%s1910 + $0x34] sm:$0x1]
      %v2111 = vld [vmem:[%s1910 + $0x38] sm:$0xf]
      %v2112 = vld [vmem:[%s1910 + $0x3c] sm:$0x1]
      %v2114 = vshrl.u32 %v2097, 16
      %v2116 = vrot.slane %v2114, 4
      %v2117 = vshll.u32 %v2097, 16
      %v2119 = vrot.slane %v2117, 5
      %v2120 = vor.u32 %v2116, %v2119
      %v2121 = vrot.slane %v2120, 4
      %v2123 = vshll.u32 %v2098, 16
      %v2125 = vrot.slane %v2123, 5
      %v2126 = vsel %vm672, %v2121, %v2125
      %v2128 = vshrl.u32 %v2099, 16
      %v2130 = vrot.slane %v2128, 4
      %v2131 = vshll.u32 %v2099, 16
      %v2133 = vrot.slane %v2131, 5
      %v2134 = vor.u32 %v2130, %v2133
      %v2135 = vrot.slane %v2134, 4
      %v2137 = vshll.u32 %v2100, 16
      %v2139 = vrot.slane %v2137, 5
      %v2140 = vsel %vm672, %v2135, %v2139
      %v2142 = vshrl.u32 %v2101, 16
      %v2144 = vrot.slane %v2142, 4
      %v2145 = vshll.u32 %v2101, 16
      %v2147 = vrot.slane %v2145, 5
      %v2148 = vor.u32 %v2144, %v2147
      %v2149 = vrot.slane %v2148, 4
      %v2151 = vshll.u32 %v2102, 16
      %v2153 = vrot.slane %v2151, 5
      %v2154 = vsel %vm672, %v2149, %v2153
      %v2156 = vshrl.u32 %v2103, 16
      %v2158 = vrot.slane %v2156, 4
      %v2159 = vshll.u32 %v2103, 16
      %v2161 = vrot.slane %v2159, 5
      %v2162 = vor.u32 %v2158, %v2161
      %v2163 = vrot.slane %v2162, 4
      %v2165 = vshll.u32 %v2104, 16
      %v2167 = vrot.slane %v2165, 5
      %v2168 = vsel %vm672, %v2163, %v2167
      %v2170 = vshrl.u32 %v2105, 16
      %v2172 = vrot.slane %v2170, 4
      %v2173 = vshll.u32 %v2105, 16
      %v2175 = vrot.slane %v2173, 5
      %v2176 = vor.u32 %v2172, %v2175
      %v2177 = vrot.slane %v2176, 4
      %v2179 = vshll.u32 %v2106, 16
      %v2181 = vrot.slane %v2179, 5
      %v2182 = vsel %vm672, %v2177, %v2181
      %v2184 = vshrl.u32 %v2107, 16
      %v2186 = vrot.slane %v2184, 4
      %v2187 = vshll.u32 %v2107, 16
      %v2189 = vrot.slane %v2187, 5
      %v2190 = vor.u32 %v2186, %v2189
      %v2191 = vrot.slane %v2190, 4
      %v2193 = vshll.u32 %v2108, 16
      %v2195 = vrot.slane %v2193, 5
      %v2196 = vsel %vm672, %v2191, %v2195
      %v2198 = vshrl.u32 %v2109, 16
      %v2200 = vrot.slane %v2198, 4
      %v2201 = vshll.u32 %v2109, 16
      %v2203 = vrot.slane %v2201, 5
      %v2204 = vor.u32 %v2200, %v2203
      %v2205 = vrot.slane %v2204, 4
      %v2207 = vshll.u32 %v2110, 16
      %v2209 = vrot.slane %v2207, 5
      %v2210 = vsel %vm672, %v2205, %v2209
      %v2212 = vshrl.u32 %v2111, 16
      %v2214 = vrot.slane %v2212, 4
      %v2215 = vshll.u32 %v2111, 16
      %v2217 = vrot.slane %v2215, 5
      %v2218 = vor.u32 %v2214, %v2217
      %v2219 = vrot.slane %v2218, 4
      %v2221 = vshll.u32 %v2112, 16
      %v2223 = vrot.slane %v2221, 5
      %v2224 = vsel %vm672, %v2219, %v2223
      %s2225 = scalar_lea.vmem %s2, 448
      %v2226 = vld [vmem:[%s2225] sm:$0xf]
      %v2227 = vld [vmem:[%s2225 + $0x4] sm:$0xf]
      %v2228 = vld [vmem:[%s2225 + $0x8] sm:$0xf]
      %v2229 = vld [vmem:[%s2225 + $0xc] sm:$0xf]
      %v2230 = vld [vmem:[%s2225 + $0x10] sm:$0xf]
      %v2231 = vld [vmem:[%s2225 + $0x14] sm:$0xf]
      %v2232 = vld [vmem:[%s2225 + $0x18] sm:$0xf]
      %v2233 = vld [vmem:[%s2225 + $0x1c] sm:$0xf]
      %v2234 = vld [vmem:[%s2225 + $0x20] sm:$0xf]
      %v2235 = vld [vmem:[%s2225 + $0x24] sm:$0xf]
      %v2236 = vld [vmem:[%s2225 + $0x28] sm:$0xf]
      %v2237 = vld [vmem:[%s2225 + $0x2c] sm:$0xf]
      %v2238 = vld [vmem:[%s2225 + $0x30] sm:$0xf]
      %v2239 = vld [vmem:[%s2225 + $0x34] sm:$0xf]
      %v2240 = vld [vmem:[%s2225 + $0x38] sm:$0xf]
      %v2241 = vld [vmem:[%s2225 + $0x3c] sm:$0xf]
      %v2242 = vunpack.c.l.b16 %v2126
      %v2243 = vunpack.c.l.b16 %v2140
      %v2244 = vunpack.c.l.b16 %v2154
      %v2245 = vunpack.c.l.b16 %v2168
      %v2246 = vunpack.c.l.b16 %v2182
      %v2247 = vunpack.c.l.b16 %v2196
      %v2248 = vunpack.c.l.b16 %v2210
      %v2249 = vunpack.c.l.b16 %v2224
      %v2250 = vpack.c.b16 %v2243, %v2242
      %v2251 = vpack.c.b16 %v2245, %v2244
      %v2252 = vpack.c.b16 %v2247, %v2246
      %v2253 = vpack.c.b16 %v2249, %v2248
      %v2274 = vunpack.c.l.b16 %v2226
      %v2275 = vunpack.c.l.b16 %v2227
      %v2276 = vunpack.c.l.b16 %v2228
      %v2277 = vunpack.c.l.b16 %v2229
      %v2278 = vunpack.c.l.b16 %v2230
      %v2279 = vunpack.c.l.b16 %v2231
      %v2280 = vunpack.c.l.b16 %v2232
      %v2281 = vunpack.c.l.b16 %v2233
      %v2282 = vunpack.c.l.b16 %v2234
      %v2283 = vunpack.c.l.b16 %v2235
      %v2284 = vunpack.c.l.b16 %v2236
      %v2285 = vunpack.c.l.b16 %v2237
      %v2286 = vunpack.c.l.b16 %v2238
      %v2287 = vunpack.c.l.b16 %v2239
      %v2288 = vunpack.c.l.b16 %v2240
      %v2289 = vunpack.c.l.b16 %v2241
      %v2290 = vpack.c.b16 %v2275, %v2274
      %v2291 = vpack.c.b16 %v2277, %v2276
      %v2292 = vpack.c.b16 %v2279, %v2278
      %v2293 = vpack.c.b16 %v2281, %v2280
      %v2294 = vpack.c.b16 %v2283, %v2282
      %v2295 = vpack.c.b16 %v2285, %v2284
      %v2296 = vpack.c.b16 %v2287, %v2286
      %v2297 = vpack.c.b16 %v2289, %v2288
      %2306 = vmatprep.subr.bf16.mxu0 0
      %2307 = vmatpush1.bf16.msra.mxu0 %v2297
      %2308 = vmatprep.subr.bf16.mxu0 0
      %2309 = vmatpush1.bf16.msra.mxu0 %v2296
      %2310 = vmatprep.subr.bf16.mxu0 0
      %2311 = vmatpush1.bf16.msra.mxu0 %v2295
      %2312 = vmatprep.subr.bf16.mxu0 0
      %2313 = vmatpush1.bf16.msra.mxu0 %v2294
      %2314 = vmatprep.subr.bf16.mxu0 0
      %2315 = vmatpush1.bf16.msra.mxu0 %v2293
      %2316 = vmatprep.subr.bf16.mxu0 0
      %2317 = vmatpush1.bf16.msra.mxu0 %v2292
      %2318 = vmatprep.subr.bf16.mxu0 0
      %2319 = vmatpush1.bf16.msra.mxu0 %v2291
      %2320 = vmatprep.subr.bf16.mxu0 0
      %2321 = vmatpush1.bf16.msra.mxu0 %v2290
      %2322 = vmatprep.subr.bf16.mxu0 0
      %2323 = vmatpush2.bf16.msra.mxu0 0
      %2324 = vmatprep.subr.bf16.mxu0 0
      %2325 = vmatpush2.bf16.msra.mxu0 0
      %2326 = vmatprep.subr.bf16.mxu0 0
      %2327 = vmatpush2.bf16.msra.mxu0 0
      %2328 = vmatprep.subr.bf16.mxu0 0
      %2329 = vmatpush2.bf16.msra.mxu0 0
      %2330 = vmatprep.subr.bf16.mxu0 0
      %2331 = vmatpush2.bf16.msra.mxu0 0
      %2332 = vmatprep.subr.bf16.mxu0 0
      %2333 = vmatpush2.bf16.msra.mxu0 0
      %2334 = vmatprep.subr.bf16.mxu0 0
      %2335 = vmatpush2.bf16.msra.mxu0 0
      %2336 = vmatprep.subr.bf16.mxu0 0
      %2337 = vmatpush2.bf16.msra.mxu0 0
      %2338 = vmatprep.mubr.bf16.mxu0 0
      %2339 = vmatmul.mubr.bf16.gmra.mxu0 %v2250
      %v2340 = vpop.f32.mrf.mxu0
      %v2341 = vadd.f32 0.0, %v2340
      %v2342 = vpop.f32.mrf.mxu0
      %v2343 = vpop.f32.mrf.mxu0
      %v2344 = vadd.f32 0.0, %v2343
      %v2345 = vpop.f32.mrf.mxu0
      %2346 = vmatprep.mubr.bf16.mxu0 0
      %2347 = vmatmul.mubr.bf16.gmra.mxu0 %v2251
      %v2348 = vpop.f32.mrf.mxu0
      %v2349 = vadd.f32 0.0, %v2348
      %v2350 = vpop.f32.mrf.mxu0
      %v2351 = vpop.f32.mrf.mxu0
      %v2352 = vadd.f32 0.0, %v2351
      %v2353 = vpop.f32.mrf.mxu0
      %2354 = vmatprep.mubr.bf16.mxu0 0
      %2355 = vmatmul.mubr.bf16.gmra.mxu0 %v2252
      %v2356 = vpop.f32.mrf.mxu0
      %v2357 = vadd.f32 0.0, %v2356
      %v2358 = vpop.f32.mrf.mxu0
      %v2359 = vpop.f32.mrf.mxu0
      %v2360 = vadd.f32 0.0, %v2359
      %v2361 = vpop.f32.mrf.mxu0
      %2362 = vmatprep.mubr.bf16.mxu0 0
      %2363 = vmatmul.mubr.bf16.gmra.mxu0 %v2253
      %v2364 = vpop.f32.mrf.mxu0
      %v2365 = vadd.f32 0.0, %v2364
      %v2366 = vpop.f32.mrf.mxu0
      %v2367 = vpop.f32.mrf.mxu0
      %v2368 = vadd.f32 0.0, %v2367
      %v2369 = vpop.f32.mrf.mxu0
      %2370 = vdwg.mxu0
      %v2371 = vld [vmem:[#allocation3] sm:$0xff]
      %v2372 = vld [vmem:[#allocation3 + $0x8] sm:$0xff]
      %v2373 = vld [vmem:[#allocation3 + $0x10] sm:$0xff]
      %v2374 = vld [vmem:[#allocation3 + $0x18] sm:$0xff]
      %v2375 = vld [vmem:[#allocation3 + $0x20] sm:$0xff]
      %v2376 = vld [vmem:[#allocation3 + $0x28] sm:$0xff]
      %v2377 = vld [vmem:[#allocation3 + $0x30] sm:$0xff]
      %v2378 = vld [vmem:[#allocation3 + $0x38] sm:$0xff]
      %v2379 = vadd.f32 %v2371, %v2341
      %v2380 = vadd.f32 %v2372, %v2344
      %v2381 = vadd.f32 %v2373, %v2349
      %v2382 = vadd.f32 %v2374, %v2352
      %v2383 = vadd.f32 %v2375, %v2357
      %v2384 = vadd.f32 %v2376, %v2360
      %v2385 = vadd.f32 %v2377, %v2365
      %v2386 = vadd.f32 %v2378, %v2368
      %2387 = vst [vmem:[#allocation3] sm:$0xff] %v2379
      %2388 = vst [vmem:[#allocation3 + $0x8] sm:$0xff] %v2380
      %2389 = vst [vmem:[#allocation3 + $0x10] sm:$0xff] %v2381
      %2390 = vst [vmem:[#allocation3 + $0x18] sm:$0xff] %v2382
      %2391 = vst [vmem:[#allocation3 + $0x20] sm:$0xff] %v2383
      %2392 = vst [vmem:[#allocation3 + $0x28] sm:$0xff] %v2384
      %2393 = vst [vmem:[#allocation3 + $0x30] sm:$0xff] %v2385
      %2394 = vst [vmem:[#allocation3 + $0x38] sm:$0xff] %v2386
      %v2395 = vld [vmem:[%s1910] sm:$0xe]
      %v2396 = vld [vmem:[%s1910 + $0x4] sm:$0x1]
      %v2397 = vld [vmem:[%s1910 + $0x8] sm:$0xe]
      %v2398 = vld [vmem:[%s1910 + $0xc] sm:$0x1]
      %v2399 = vld [vmem:[%s1910 + $0x10] sm:$0xe]
      %v2400 = vld [vmem:[%s1910 + $0x14] sm:$0x1]
      %v2401 = vld [vmem:[%s1910 + $0x18] sm:$0xe]
      %v2402 = vld [vmem:[%s1910 + $0x1c] sm:$0x1]
      %v2403 = vld [vmem:[%s1910 + $0x20] sm:$0xe]
      %v2404 = vld [vmem:[%s1910 + $0x24] sm:$0x1]
      %v2405 = vld [vmem:[%s1910 + $0x28] sm:$0xe]
      %v2406 = vld [vmem:[%s1910 + $0x2c] sm:$0x1]
      %v2407 = vld [vmem:[%s1910 + $0x30] sm:$0xe]
      %v2408 = vld [vmem:[%s1910 + $0x34] sm:$0x1]
      %v2409 = vld [vmem:[%s1910 + $0x38] sm:$0xe]
      %v2410 = vld [vmem:[%s1910 + $0x3c] sm:$0x1]
      %v2427 = vrot.slane %v2395, 5
      %v2428 = vrot.slane %v2427, 4
      %v2429 = vrot.slane %v2396, 5
      %v2430 = vsel %vm989, %v2428, %v2429
      %v2431 = vrot.slane %v2397, 5
      %v2432 = vrot.slane %v2431, 4
      %v2433 = vrot.slane %v2398, 5
      %v2434 = vsel %vm989, %v2432, %v2433
      %v2435 = vrot.slane %v2399, 5
      %v2436 = vrot.slane %v2435, 4
      %v2437 = vrot.slane %v2400, 5
      %v2438 = vsel %vm989, %v2436, %v2437
      %v2439 = vrot.slane %v2401, 5
      %v2440 = vrot.slane %v2439, 4
      %v2441 = vrot.slane %v2402, 5
      %v2442 = vsel %vm989, %v2440, %v2441
      %v2443 = vrot.slane %v2403, 5
      %v2444 = vrot.slane %v2443, 4
      %v2445 = vrot.slane %v2404, 5
      %v2446 = vsel %vm989, %v2444, %v2445
      %v2447 = vrot.slane %v2405, 5
      %v2448 = vrot.slane %v2447, 4
      %v2449 = vrot.slane %v2406, 5
      %v2450 = vsel %vm989, %v2448, %v2449
      %v2451 = vrot.slane %v2407, 5
      %v2452 = vrot.slane %v2451, 4
      %v2453 = vrot.slane %v2408, 5
      %v2454 = vsel %vm989, %v2452, %v2453
      %v2455 = vrot.slane %v2409, 5
      %v2456 = vrot.slane %v2455, 4
      %v2457 = vrot.slane %v2410, 5
      %v2458 = vsel %vm989, %v2456, %v2457
      %s2459 = scalar_lea.vmem %s2, 512
      %v2460 = vld [vmem:[%s2459] sm:$0xf]
      %v2461 = vld [vmem:[%s2459 + $0x4] sm:$0xf]
      %v2462 = vld [vmem:[%s2459 + $0x8] sm:$0xf]
      %v2463 = vld [vmem:[%s2459 + $0xc] sm:$0xf]
      %v2464 = vld [vmem:[%s2459 + $0x10] sm:$0xf]
      %v2465 = vld [vmem:[%s2459 + $0x14] sm:$0xf]
      %v2466 = vld [vmem:[%s2459 + $0x18] sm:$0xf]
      %v2467 = vld [vmem:[%s2459 + $0x1c] sm:$0xf]
      %v2468 = vld [vmem:[%s2459 + $0x20] sm:$0xf]
      %v2469 = vld [vmem:[%s2459 + $0x24] sm:$0xf]
      %v2470 = vld [vmem:[%s2459 + $0x28] sm:$0xf]
      %v2471 = vld [vmem:[%s2459 + $0x2c] sm:$0xf]
      %v2472 = vld [vmem:[%s2459 + $0x30] sm:$0xf]
      %v2473 = vld [vmem:[%s2459 + $0x34] sm:$0xf]
      %v2474 = vld [vmem:[%s2459 + $0x38] sm:$0xf]
      %v2475 = vld [vmem:[%s2459 + $0x3c] sm:$0xf]
      %v2476 = vunpack.c.l.b16 %v2430
      %v2477 = vunpack.c.l.b16 %v2434
      %v2478 = vunpack.c.l.b16 %v2438
      %v2479 = vunpack.c.l.b16 %v2442
      %v2480 = vunpack.c.l.b16 %v2446
      %v2481 = vunpack.c.l.b16 %v2450
      %v2482 = vunpack.c.l.b16 %v2454
      %v2483 = vunpack.c.l.b16 %v2458
      %v2484 = vpack.c.b16 %v2477, %v2476
      %v2485 = vpack.c.b16 %v2479, %v2478
      %v2486 = vpack.c.b16 %v2481, %v2480
      %v2487 = vpack.c.b16 %v2483, %v2482
      %v2508 = vunpack.c.l.b16 %v2460
      %v2509 = vunpack.c.l.b16 %v2461
      %v2510 = vunpack.c.l.b16 %v2462
      %v2511 = vunpack.c.l.b16 %v2463
      %v2512 = vunpack.c.l.b16 %v2464
      %v2513 = vunpack.c.l.b16 %v2465
      %v2514 = vunpack.c.l.b16 %v2466
      %v2515 = vunpack.c.l.b16 %v2467
      %v2516 = vunpack.c.l.b16 %v2468
      %v2517 = vunpack.c.l.b16 %v2469
      %v2518 = vunpack.c.l.b16 %v2470
      %v2519 = vunpack.c.l.b16 %v2471
      %v2520 = vunpack.c.l.b16 %v2472
      %v2521 = vunpack.c.l.b16 %v2473
      %v2522 = vunpack.c.l.b16 %v2474
      %v2523 = vunpack.c.l.b16 %v2475
      %v2524 = vpack.c.b16 %v2509, %v2508
      %v2525 = vpack.c.b16 %v2511, %v2510
      %v2526 = vpack.c.b16 %v2513, %v2512
      %v2527 = vpack.c.b16 %v2515, %v2514
      %v2528 = vpack.c.b16 %v2517, %v2516
      %v2529 = vpack.c.b16 %v2519, %v2518
      %v2530 = vpack.c.b16 %v2521, %v2520
      %v2531 = vpack.c.b16 %v2523, %v2522
      %2540 = vmatprep.subr.bf16.mxu0 0
      %2541 = vmatpush1.bf16.msra.mxu0 %v2531
      %2542 = vmatprep.subr.bf16.mxu0 0
      %2543 = vmatpush1.bf16.msra.mxu0 %v2530
      %2544 = vmatprep.subr.bf16.mxu0 0
      %2545 = vmatpush1.bf16.msra.mxu0 %v2529
      %2546 = vmatprep.subr.bf16.mxu0 0
      %2547 = vmatpush1.bf16.msra.mxu0 %v2528
      %2548 = vmatprep.subr.bf16.mxu0 0
      %2549 = vmatpush1.bf16.msra.mxu0 %v2527
      %2550 = vmatprep.subr.bf16.mxu0 0
      %2551 = vmatpush1.bf16.msra.mxu0 %v2526
      %2552 = vmatprep.subr.bf16.mxu0 0
      %2553 = vmatpush1.bf16.msra.mxu0 %v2525
      %2554 = vmatprep.subr.bf16.mxu0 0
      %2555 = vmatpush1.bf16.msra.mxu0 %v2524
      %2556 = vmatprep.subr.bf16.mxu0 0
      %2557 = vmatpush2.bf16.msra.mxu0 0
      %2558 = vmatprep.subr.bf16.mxu0 0
      %2559 = vmatpush2.bf16.msra.mxu0 0
      %2560 = vmatprep.subr.bf16.mxu0 0
      %2561 = vmatpush2.bf16.msra.mxu0 0
      %2562 = vmatprep.subr.bf16.mxu0 0
      %2563 = vmatpush2.bf16.msra.mxu0 0
      %2564 = vmatprep.subr.bf16.mxu0 0
      %2565 = vmatpush2.bf16.msra.mxu0 0
      %2566 = vmatprep.subr.bf16.mxu0 0
      %2567 = vmatpush2.bf16.msra.mxu0 0
      %2568 = vmatprep.subr.bf16.mxu0 0
      %2569 = vmatpush2.bf16.msra.mxu0 0
      %2570 = vmatprep.subr.bf16.mxu0 0
      %2571 = vmatpush2.bf16.msra.mxu0 0
      %2572 = vmatprep.mubr.bf16.mxu0 0
      %2573 = vmatmul.mubr.bf16.gmra.mxu0 %v2484
      %v2574 = vpop.f32.mrf.mxu0
      %v2575 = vadd.f32 0.0, %v2574
      %v2576 = vpop.f32.mrf.mxu0
      %v2577 = vpop.f32.mrf.mxu0
      %v2578 = vadd.f32 0.0, %v2577
      %v2579 = vpop.f32.mrf.mxu0
      %2580 = vmatprep.mubr.bf16.mxu0 0
      %2581 = vmatmul.mubr.bf16.gmra.mxu0 %v2485
      %v2582 = vpop.f32.mrf.mxu0
      %v2583 = vadd.f32 0.0, %v2582
      %v2584 = vpop.f32.mrf.mxu0
      %v2585 = vpop.f32.mrf.mxu0
      %v2586 = vadd.f32 0.0, %v2585
      %v2587 = vpop.f32.mrf.mxu0
      %2588 = vmatprep.mubr.bf16.mxu0 0
      %2589 = vmatmul.mubr.bf16.gmra.mxu0 %v2486
      %v2590 = vpop.f32.mrf.mxu0
      %v2591 = vadd.f32 0.0, %v2590
      %v2592 = vpop.f32.mrf.mxu0
      %v2593 = vpop.f32.mrf.mxu0
      %v2594 = vadd.f32 0.0, %v2593
      %v2595 = vpop.f32.mrf.mxu0
      %2596 = vmatprep.mubr.bf16.mxu0 0
      %2597 = vmatmul.mubr.bf16.gmra.mxu0 %v2487
      %v2598 = vpop.f32.mrf.mxu0
      %v2599 = vadd.f32 0.0, %v2598
      %v2600 = vpop.f32.mrf.mxu0
      %v2601 = vpop.f32.mrf.mxu0
      %v2602 = vadd.f32 0.0, %v2601
      %v2603 = vpop.f32.mrf.mxu0
      %2604 = vdwg.mxu0
      %v2605 = vld [vmem:[#allocation3] sm:$0xff]
      %v2606 = vld [vmem:[#allocation3 + $0x8] sm:$0xff]
      %v2607 = vld [vmem:[#allocation3 + $0x10] sm:$0xff]
      %v2608 = vld [vmem:[#allocation3 + $0x18] sm:$0xff]
      %v2609 = vld [vmem:[#allocation3 + $0x20] sm:$0xff]
      %v2610 = vld [vmem:[#allocation3 + $0x28] sm:$0xff]
      %v2611 = vld [vmem:[#allocation3 + $0x30] sm:$0xff]
      %v2612 = vld [vmem:[#allocation3 + $0x38] sm:$0xff]
      %v2613 = vadd.f32 %v2605, %v2575
      %v2614 = vadd.f32 %v2606, %v2578
      %v2615 = vadd.f32 %v2607, %v2583
      %v2616 = vadd.f32 %v2608, %v2586
      %v2617 = vadd.f32 %v2609, %v2591
      %v2618 = vadd.f32 %v2610, %v2594
      %v2619 = vadd.f32 %v2611, %v2599
      %v2620 = vadd.f32 %v2612, %v2602
      %2621 = vst [vmem:[#allocation3] sm:$0xff] %v2613
      %2622 = vst [vmem:[#allocation3 + $0x8] sm:$0xff] %v2614
      %2623 = vst [vmem:[#allocation3 + $0x10] sm:$0xff] %v2615
      %2624 = vst [vmem:[#allocation3 + $0x18] sm:$0xff] %v2616
      %2625 = vst [vmem:[#allocation3 + $0x20] sm:$0xff] %v2617
      %2626 = vst [vmem:[#allocation3 + $0x28] sm:$0xff] %v2618
      %2627 = vst [vmem:[#allocation3 + $0x30] sm:$0xff] %v2619
      %2628 = vst [vmem:[#allocation3 + $0x38] sm:$0xff] %v2620
      %v2629 = vld [vmem:[#allocation3] sm:$0xff]
      %v2630 = vld [vmem:[#allocation3 + $0x8] sm:$0xff]
      %v2631 = vld [vmem:[#allocation3 + $0x10] sm:$0xff]
      %v2632 = vld [vmem:[#allocation3 + $0x18] sm:$0xff]
      %v2633 = vld [vmem:[#allocation3 + $0x20] sm:$0xff]
      %v2634 = vld [vmem:[#allocation3 + $0x28] sm:$0xff]
      %v2635 = vld [vmem:[#allocation3 + $0x30] sm:$0xff]
      %v2636 = vld [vmem:[#allocation3 + $0x38] sm:$0xff]
      %2637 = vst [vmem:[%s204] sm:$0xff] %v2629
      %2638 = vst [vmem:[%s204 + $0x8] sm:$0xff] %v2630
      %2639 = vst [vmem:[%s204 + $0x10] sm:$0xff] %v2631
      %2640 = vst [vmem:[%s204 + $0x18] sm:$0xff] %v2632
      %2641 = vst [vmem:[%s204 + $0x20] sm:$0xff] %v2633
      %2642 = vst [vmem:[%s204 + $0x28] sm:$0xff] %v2634
      %2643 = vst [vmem:[%s204 + $0x30] sm:$0xff] %v2635
      %2644 = vst [vmem:[%s204 + $0x38] sm:$0xff] %v2636
      %v2645 = vadd.f32 %v2629, %v2630
      %v2646 = vadd.f32 %v2645, %v2631
      %v2647 = vadd.f32 %v2646, %v2632
      %v2648 = vadd.f32 %v2647, %v2633
      %v2649 = vadd.f32 %v2648, %v2634
      %v2650 = vadd.f32 %v2649, %v2635
      %v2651 = vadd.f32 %v2650, %v2636
      %v2652 = vrot.slane %v2651, 4
      %v2653 = vadd.f32 %v2651, %v2652
      %v2654 = vrot.slane %v2653, 2
      %v2655 = vadd.f32 %v2653, %v2654
      %v2656 = vrot.slane %v2655, 1
      %v2657 = vadd.f32 %v2655, %v2656
      %2658 = vst [vmem:[%s208] sm:$0x1] %v2657
      %v2659 = vmul.f32 %v2629, %v2629
      %v2660 = vmul.f32 %v2630, %v2630
      %v2661 = vmul.f32 %v2631, %v2631
      %v2662 = vmul.f32 %v2632, %v2632
      %v2663 = vmul.f32 %v2633, %v2633
      %v2664 = vmul.f32 %v2634, %v2634
      %v2665 = vmul.f32 %v2635, %v2635
      %v2666 = vmul.f32 %v2636, %v2636
      %v2667 = vadd.f32 %v2659, %v2660
      %v2668 = vadd.f32 %v2667, %v2661
      %v2669 = vadd.f32 %v2668, %v2662
      %v2670 = vadd.f32 %v2669, %v2663
      %v2671 = vadd.f32 %v2670, %v2664
      %v2672 = vadd.f32 %v2671, %v2665
      %v2673 = vadd.f32 %v2672, %v2666
      %v2674 = vrot.slane %v2673, 4
      %v2675 = vadd.f32 %v2673, %v2674
      %v2676 = vrot.slane %v2675, 2
      %v2677 = vadd.f32 %v2675, %v2676
      %v2678 = vrot.slane %v2677, 1
      %v2679 = vadd.f32 %v2677, %v2678
      %2680 = vst [vmem:[%s208 + $0x1] sm:$0x1] %v2679
      %p2681 = scmp.lt.s32.totalorder %s16, 1
      %s2682 = scalar_select %p2681, %s16, 1
      %s2683 = smul.addr %s2682, 8
      %s2684 = smul.addr %s2683, 8
      %s2685 = scalar_lea.vmem %s3, %s2684
      %p2686 = scmp.lt.s32.totalorder %s16, 1
      %s2687 = scalar_select %p2686, %s16, 1
      %s2688 = smul.addr %s2687, 2
      %s2689 = scalar_lea.vmem %s4, %s2688
      // Predicated region
      $region33: #{res_block_forward.4} parent=31 // pred_check
        %p2690 = pneg %p102
      $region34: #{res_block_forward.4} parent=31 // pred_check_branch
        %2692 = sbr.rel (%p2690) target = $region36
      $region35: #{res_block_forward.4} parent=31 // pred_region
        _
      $region36: #{res_block_forward.4} parent=31 // pred_fallthru
        _
      // Predicated region
      $region37: #{res_block_forward.4} parent=31 // pred_check
        %p2693 = pneg %p128
      $region38: #{res_block_forward.4} parent=31 // pred_check_branch
        %2695 = sbr.rel (%p2693) target = $region40
      $region39: #{res_block_forward.4} parent=31 // pred_region
        _
      $region40: #{res_block_forward.4} parent=31 // pred_fallthru
        _
    $region32: #{res_block_forward.4} parent=5 // pred_fallthru
      _
    %p2696 = scmp.le.s32.totalorder 2, %s11
    // Predicated region
    $region41: #{res_block_forward.4} parent=5 // pred_check
      %p2697 = pneg %p2696
    $region42: #{res_block_forward.4} parent=5 // pred_check_branch
      %2699 = sbr.rel (%p2697) target = $region44
    $region43: #{res_block_forward.4} parent=5 // pred_region
      %s2700 = ssub.s32 %s11, 2
      // Predicated region
      $region45: #{res_block_forward.4} parent=43 // pred_check
        %p2701 = pneg %p108
      $region46: #{res_block_forward.4} parent=43 // pred_check_branch
        %2703 = sbr.rel (%p2701) target = $region48
      $region47: #{res_block_forward.4} parent=43 // pred_region
        %p2704 = scmp.lt.s32.totalorder %s17, 1
        %s2705 = scalar_select %p2704, %s17, 1
        %s2706 = smul.addr %s2705, 8
        %s2707 = smul.addr %s2706, 8
        %s2708 = scalar_lea.vmem %s3, %s2707
      $region48: #{res_block_forward.4} parent=43 // pred_fallthru
        _
      // Predicated region
      $region49: #{res_block_forward.4} parent=43 // pred_check
        %p2709 = pneg %p134
      $region50: #{res_block_forward.4} parent=43 // pred_check_branch
        %2711 = sbr.rel (%p2709) target = $region52
      $region51: #{res_block_forward.4} parent=43 // pred_region
        %p2712 = scmp.lt.s32.totalorder %s17, 1
        %s2713 = scalar_select %p2712, %s17, 1
        %s2714 = smul.addr %s2713, 2
        %s2715 = scalar_lea.vmem %s4, %s2714
      $region52: #{res_block_forward.4} parent=43 // pred_fallthru
        _
    $region44: #{res_block_forward.4} parent=5 // pred_fallthru
      _
  $region6: #{res_block_forward.4} parent=0 // loop_footer
    %s15 = sadd.s32 1, %s11
  $region7: #{res_block_forward.4} parent=0 // loop_footer_branch
    %10 = sbr.rel target = $region3
  $region8: #{res_block_forward.4} parent=0 // loop_exit
    _

</llo_original>
